<compile_context>
chip_gen: v6e
topology: v6e:2x2x1
jax: 0.10.0
libtpu: 0.0.40
codegen_flags: <defaults>
</compile_context>

<pallas_src>
import jax
import jax.numpy as jnp
from jax import lax
from jax.experimental import pallas as pl
from jax.experimental.pallas import tpu as pltpu

LANE = 128


# ----------------------------------------------------------------------------
# Kernel 1/2: fused conv-as-patch-matmul + bias + ReLU + 2x2 max-pool
#   x_ref: (4, P, K) bf16  -- 4 pool members, P pooled positions, K = C*kh*kw
#   w_ref: (K, N) bf16, b_ref: (1, N) f32, o_ref: (P, N) bf16
# ----------------------------------------------------------------------------
def _conv_pool_relu_kernel(x_ref, w_ref, b_ref, o_ref):
    w = w_ref[...]
    acc = jnp.dot(x_ref[0], w, preferred_element_type=jnp.float32)
    for m in range(1, 4):                       # static unroll: 4 pool members
        acc = jnp.maximum(
            acc, jnp.dot(x_ref[m], w, preferred_element_type=jnp.float32))
    y = jnp.maximum(acc + b_ref[...], 0.0)      # shared bias+ReLU after the max
    o_ref[...] = y.astype(o_ref.dtype)


def conv_pool_relu_pallas(x_nhwc, w, b, out_ch, kh, kw):
    """maxpool2x2(relu(conv2d_valid(x, w) + b)), NHWC, one image per grid step."""
    B, H, W, C = x_nhwc.shape
    oh, ow = H - kh + 1, W - kw + 1
    assert oh % 2 == 0 and ow % 2 == 0
    ph, pw = oh // 2, ow // 2
    K = C * kh * kw
    N = w.shape[1]

    # im2col (single XLA op); feature order (c, kh, kw) == torch flatten order.
    p = lax.conv_general_dilated_patches(
        x_nhwc, filter_shape=(kh, kw), window_strides=(1, 1), padding="VALID",
        dimension_numbers=("NHWC", "HWIO", "NHWC"))          # (B, oh, ow, K)
    # Group the 4 members of each 2x2 pool window: (B, 4, ph*pw, K).
    p = (p.reshape(B, ph, 2, pw, 2, K)
           .transpose(0, 2, 4, 1, 3, 5)
           .reshape(B, 4, ph * pw, K))

    y = pl.pallas_call(
        _conv_pool_relu_kernel,
        out_shape=jax.ShapeDtypeStruct((B, ph * pw, N), jnp.bfloat16),
        grid=(B,),
        in_specs=[
            # trailing dims equal full array dims -> no K padding needed
            pl.BlockSpec((None, 4, ph * pw, K), lambda i: (i, 0, 0, 0)),
            pl.BlockSpec((K, N), lambda i: (0, 0)),          # weights resident
            pl.BlockSpec((1, N), lambda i: (0, 0)),
        ],
        out_specs=pl.BlockSpec((None, ph * pw, N), lambda i: (i, 0, 0)),
        compiler_params=pltpu.CompilerParams(
            dimension_semantics=("parallel",)),
    )(p, w, b)
    return y[:, :, :out_ch].reshape(B, ph, pw, out_ch)


# ----------------------------------------------------------------------------
# Kernel 3: fused FC tail  fc1 -> ReLU -> fc2 -> ReLU -> MoE(top-1, 2 experts)
#           -> fc4.  Experts fused in one bf16 matmul; gate dot kept in f32.
# ----------------------------------------------------------------------------
def _tail_kernel(x_ref, w1_ref, b1_ref, w2_ref, b2_ref,
                 we_ref, be_ref, wg_ref, w4_ref, b4_ref, o_ref):
    f32 = jnp.float32
    x = x_ref[...]                                                    # (R,400) bf16

    h1 = jnp.dot(x, w1_ref[...], preferred_element_type=f32) + b1_ref[...]
    h1 = jnp.maximum(h1, 0.0)                                         # fc1+ReLU

    h2 = jnp.dot(h1.astype(jnp.bfloat16), w2_ref[...],
                 preferred_element_type=f32) + b2_ref[...]
    h2 = jnp.maximum(h2, 0.0)                                         # fc2+ReLU

    # Both experts in one bf16 matmul over 128-lane segments [expert0|expert1].
    ye = jnp.dot(h2.astype(jnp.bfloat16), we_ref[...],
                 preferred_element_type=f32) + be_ref[...]            # (R,256)
    y0 = ye[:, 0:128]
    y1 = ye[:, 128:256]

    # Gate logits in f32 (84x2, trivially cheap) for faithful top-1 selection.
    gl = jnp.dot(h2, wg_ref[...], preferred_element_type=f32)         # (R,128)
    l0 = gl[:, 0:1]
    l1 = gl[:, 1:2]
    m = jnp.maximum(l0, l1)
    e0 = jnp.exp(l0 - m)
    e1 = jnp.exp(l1 - m)
    sel0 = l0 >= l1                                   # top-1 index (ties -> expert 0)
    gate = jnp.where(sel0, e0, e1) / (e0 + e1)        # softmax prob of selected expert
    moe = gate * jnp.where(sel0, y0, y1)              # (R,128)

    out = jnp.dot(moe.astype(jnp.bfloat16), w4_ref[...],
                  preferred_element_type=f32) + b4_ref[...]           # fc4
    o_ref[...] = out


def pallas_fc_moe_tail(x, w1, b1, w2, b2, we, be, wg, w4, b4):
    B, K = x.shape
    N4 = w4.shape[1]
    # >=2 grid steps (v7x megacore), chunks of <=512 rows; pad batch if ragged.
    G = 1 if B == 1 else max(2, -(-B // 512))
    R = -(-B // G)
    xp = x if G * R == B else jnp.pad(x, ((0, G * R - B), (0, 0)))
    xg = xp.reshape(G, R, K)

    out = pl.pallas_call(
        _tail_kernel,
        out_shape=jax.ShapeDtypeStruct((G, R, N4), jnp.float32),
        grid=(G,),
        in_specs=[
            pl.BlockSpec((None, R, K), lambda i: (i, 0, 0)),
            pl.BlockSpec(w1.shape, lambda i: (0, 0)),
            pl.BlockSpec(b1.shape, lambda i: (0, 0)),
            pl.BlockSpec(w2.shape, lambda i: (0, 0)),
            pl.BlockSpec(b2.shape, lambda i: (0, 0)),
            pl.BlockSpec(we.shape, lambda i: (0, 0)),
            pl.BlockSpec(be.shape, lambda i: (0, 0)),
            pl.BlockSpec(wg.shape, lambda i: (0, 0)),
            pl.BlockSpec(w4.shape, lambda i: (0, 0)),
            pl.BlockSpec(b4.shape, lambda i: (0, 0)),
        ],
        out_specs=pl.BlockSpec((None, R, N4), lambda i: (i, 0, 0)),
        compiler_params=pltpu.CompilerParams(
            dimension_semantics=("parallel",)),
    )(xg, w1, b1, w2, b2, we, be, wg, w4, b4)
    return out.reshape(G * R, N4)[:B]


# ----------------------------------------------------------------------------
# Parameters (deterministic synthetic init, PyTorch-like uniform bounds)
# ----------------------------------------------------------------------------
def init_params(key):
    def uinit(k, shape, fan_in):
        bound = 1.0 / jnp.sqrt(float(fan_in))
        return jax.random.uniform(k, shape, jnp.float32, -bound, bound)

    ks = jax.random.split(key, 15)
    p = {}
    p["conv1_w"] = uinit(ks[0], (6, 3, 5, 5), 3 * 25)
    p["conv1_b"] = uinit(ks[1], (6,), 3 * 25)
    p["conv2_w"] = uinit(ks[2], (16, 6, 5, 5), 6 * 25)
    p["conv2_b"] = uinit(ks[3], (16,), 6 * 25)
    p["fc1_w"] = uinit(ks[4], (400, 120), 400)
    p["fc1_b"] = uinit(ks[5], (120,), 400)
    p["fc2_w"] = uinit(ks[6], (120, 84), 120)
    p["fc2_b"] = uinit(ks[7], (84,), 120)
    p["gate_w"] = uinit(ks[8], (84, 2), 84)      # TopKGate: Linear(84, 2, bias=False)
    p["exp0_w"] = uinit(ks[9], (84, 84), 84)     # expert 0 (copy of fc3 Linear(84, 84))
    p["exp0_b"] = uinit(ks[10], (84,), 84)
    p["exp1_w"] = uinit(ks[11], (84, 84), 84)    # expert 1
    p["exp1_b"] = uinit(ks[12], (84,), 84)
    p["fc4_w"] = uinit(ks[13], (84, 10), 84)
    p["fc4_b"] = uinit(ks[14], (10,), 84)
    return p


def prepare_params(p):
    """One-time host-side prep: torch-layout f32 -> lane-dense (N padded to 128)
    bf16 kernel operands.  Contraction dims are NOT padded (kept at 75/150/400);
    padded columns / bias entries are exact zeros, wrappers slice back."""
    bf = jnp.bfloat16

    def padcols(w, cols):
        return jnp.pad(w, ((0, 0), (0, cols - w.shape[1])))

    def pad2(w, rows, cols):
        r, c = w.shape
        return jnp.pad(w, ((0, rows - r), (0, cols - c)))

    def padb(b, cols):
        return jnp.pad(b, (0, cols - b.shape[0])).reshape(1, cols).astype(jnp.float32)

    kp = {}
    # conv weights: (O, C, KH, KW) -> (C*KH*KW, O), pad O to 128 lanes only.
    kp["conv1_w"] = padcols(p["conv1_w"].reshape(6, -1).T, LANE).astype(bf)   # (75, 128)
    kp["conv1_b"] = padb(p["conv1_b"], LANE)
    kp["conv2_w"] = padcols(p["conv2_w"].reshape(16, -1).T, LANE).astype(bf)  # (150, 128)
    kp["conv2_b"] = padb(p["conv2_b"], LANE)

    # fc1 expects a (C, H, W)-flattened input (torch view); our NHWC pipeline
    # flattens (H, W, C) -> permute fc1 weight rows once here instead.
    fc1 = p["fc1_w"].reshape(16, 5, 5, 120).transpose(1, 2, 0, 3).reshape(400, 120)
    kp["fc1_w"] = padcols(fc1, LANE).astype(bf)               # (400, 128)
    kp["fc1_b"] = padb(p["fc1_b"], LANE)
    kp["fc2_w"] = pad2(p["fc2_w"], LANE, LANE).astype(bf)     # (128, 128)
    kp["fc2_b"] = padb(p["fc2_b"], LANE)

    # Fused expert weight: two 128-lane segments [expert0 | expert1] (bf16).
    we = jnp.zeros((LANE, 2 * LANE), jnp.float32)
    we = we.at[:84, 0:84].set(p["exp0_w"])
    we = we.at[:84, 128:212].set(p["exp1_w"])
    kp["moe_we"] = we.astype(bf)                              # (128, 256)
    be = jnp.zeros((1, 2 * LANE), jnp.float32)
    be = be.at[0, 0:84].set(p["exp0_b"])
    be = be.at[0, 128:212].set(p["exp1_b"])
    kp["moe_be"] = be

    # Gate weight stays f32 (kept out of the bf16 fused matmul).
    wg = jnp.zeros((LANE, LANE), jnp.float32)
    wg = wg.at[:84, 0:2].set(p["gate_w"])
    kp["gate_w"] = wg                                         # (128, 128) f32

    kp["fc4_w"] = pad2(p["fc4_w"], LANE, LANE).astype(bf)     # (128, 128)
    kp["fc4_b"] = padb(p["fc4_b"], LANE)
    return kp


# ----------------------------------------------------------------------------
# Forward pass (mirrors Net.forward)
# ----------------------------------------------------------------------------
@jax.jit
def net_forward(kp, x_nchw):
    x = jnp.transpose(x_nchw, (0, 2, 3, 1)).astype(jnp.bfloat16)          # NHWC once
    x = conv_pool_relu_pallas(x, kp["conv1_w"], kp["conv1_b"], 6, 5, 5)   # (B,14,14,6)
    x = conv_pool_relu_pallas(x, kp["conv2_w"], kp["conv2_b"], 16, 5, 5)  # (B,5,5,16)
    B = x.shape[0]
    x = x.reshape(B, 16 * 5 * 5)                   # (H,W,C) flatten; fc1 rows permuted
    y = pallas_fc_moe_tail(x, kp["fc1_w"], kp["fc1_b"],
                           kp["fc2_w"], kp["fc2_b"],
                           kp["moe_we"], kp["moe_be"], kp["gate_w"],
                           kp["fc4_w"], kp["fc4_b"])                      # (B, 128)
    return y[:, :10]


if __name__ == "__main__":
    key = jax.random.PRNGKey(0)
    pkey, xkey = jax.random.split(key)
    params = init_params(pkey)
    kparams = prepare_params(params)
    # CIFAR-like input (B=2, C=3, 32x32) — the only spatial size consistent
    # with the 16*5*5 flatten in the reference forward.
    x = jax.random.normal(xkey, (2, 3, 32, 32), dtype=jnp.float32)
    out = net_forward(kparams, x)
    jax.block_until_ready(out)
    assert out.shape == (2, 10)
    print("KERNEL_OK")
</pallas_src>

<mosaic_0001>
module attributes {stable_mosaic.version = 11 : i64} {
  func.func @_conv_pool_relu_kernel(%arg0: i32, %arg1: memref<1x4x196x75xbf16, #tpu.memory_space<vmem>>, %arg2: memref<75x128xbf16, #tpu.memory_space<vmem>>, %arg3: memref<1x128xf32, #tpu.memory_space<vmem>>, %arg4: memref<1x196x128xbf16, #tpu.memory_space<vmem>>) attributes {dimension_semantics = [#tpu.dimension_semantics<parallel>], iteration_bounds = array<i64: 2>, scalar_prefetch = 0 : i64, scratch_operands = 0 : i64, tpu.core_type = #tpu.core_type<tc>, window_params = [{transform_indices = @transform_0, window_bounds = array<i64: 1, 4, 196, 75>}, {pipeline_mode = #tpu.pipeline_mode<synchronous>, transform_indices = @transform_1, window_bounds = array<i64: 75, 128>}, {pipeline_mode = #tpu.pipeline_mode<synchronous>, transform_indices = @transform_2, window_bounds = array<i64: 1, 128>}, {transform_indices = @transform_3, window_bounds = array<i64: 1, 196, 128>}]} {
    %c0 = arith.constant 0 : index
    %c0_0 = arith.constant 0 : index
    %0 = vector.load %arg2[%c0, %c0_0] : memref<75x128xbf16, #tpu.memory_space<vmem>>, vector<75x128xbf16>
    %c0_1 = arith.constant 0 : index
    %c0_2 = arith.constant 0 : index
    %c0_3 = arith.constant 0 : index
    %c0_4 = arith.constant 0 : index
    %1 = vector.load %arg1[%c0_1, %c0_2, %c0_3, %c0_4] : memref<1x4x196x75xbf16, #tpu.memory_space<vmem>>, vector<1x1x196x75xbf16>
    %2 = vector.shape_cast %1 : vector<1x1x196x75xbf16> to vector<196x75xbf16>
    %cst = arith.constant dense<0.000000e+00> : vector<196x128xf32>
    %3 = tpu.matmul %2, %0, %cst {dimension_numbers = #tpu.dot_dimension_numbers<[1], [0], [0], [1], [0, 0, 1, 1], [], []>} : vector<196x75xbf16>, vector<75x128xbf16>, vector<196x128xf32> -> vector<196x128xf32>
    %c0_5 = arith.constant 0 : index
    %c1 = arith.constant 1 : index
    %c0_6 = arith.constant 0 : index
    %c0_7 = arith.constant 0 : index
    %4 = vector.load %arg1[%c0_5, %c1, %c0_6, %c0_7] : memref<1x4x196x75xbf16, #tpu.memory_space<vmem>>, vector<1x1x196x75xbf16>
    %5 = vector.shape_cast %4 : vector<1x1x196x75xbf16> to vector<196x75xbf16>
    %cst_8 = arith.constant dense<0.000000e+00> : vector<196x128xf32>
    %6 = tpu.matmul %5, %0, %cst_8 {dimension_numbers = #tpu.dot_dimension_numbers<[1], [0], [0], [1], [0, 0, 1, 1], [], []>} : vector<196x75xbf16>, vector<75x128xbf16>, vector<196x128xf32> -> vector<196x128xf32>
    %7 = arith.maximumf %3, %6 : vector<196x128xf32>
    %c0_9 = arith.constant 0 : index
    %c2 = arith.constant 2 : index
    %c0_10 = arith.constant 0 : index
    %c0_11 = arith.constant 0 : index
    %8 = vector.load %arg1[%c0_9, %c2, %c0_10, %c0_11] : memref<1x4x196x75xbf16, #tpu.memory_space<vmem>>, vector<1x1x196x75xbf16>
    %9 = vector.shape_cast %8 : vector<1x1x196x75xbf16> to vector<196x75xbf16>
    %cst_12 = arith.constant dense<0.000000e+00> : vector<196x128xf32>
    %10 = tpu.matmul %9, %0, %cst_12 {dimension_numbers = #tpu.dot_dimension_numbers<[1], [0], [0], [1], [0, 0, 1, 1], [], []>} : vector<196x75xbf16>, vector<75x128xbf16>, vector<196x128xf32> -> vector<196x128xf32>
    %11 = arith.maximumf %7, %10 : vector<196x128xf32>
    %c0_13 = arith.constant 0 : index
    %c3 = arith.constant 3 : index
    %c0_14 = arith.constant 0 : index
    %c0_15 = arith.constant 0 : index
    %12 = vector.load %arg1[%c0_13, %c3, %c0_14, %c0_15] : memref<1x4x196x75xbf16, #tpu.memory_space<vmem>>, vector<1x1x196x75xbf16>
    %13 = vector.shape_cast %12 : vector<1x1x196x75xbf16> to vector<196x75xbf16>
    %cst_16 = arith.constant dense<0.000000e+00> : vector<196x128xf32>
    %14 = tpu.matmul %13, %0, %cst_16 {dimension_numbers = #tpu.dot_dimension_numbers<[1], [0], [0], [1], [0, 0, 1, 1], [], []>} : vector<196x75xbf16>, vector<75x128xbf16>, vector<196x128xf32> -> vector<196x128xf32>
    %15 = arith.maximumf %11, %14 : vector<196x128xf32>
    %c0_17 = arith.constant 0 : index
    %c0_18 = arith.constant 0 : index
    %16 = vector.load %arg3[%c0_17, %c0_18] : memref<1x128xf32, #tpu.memory_space<vmem>>, vector<1x128xf32>
    %17 = vector.broadcast %16 : vector<1x128xf32> to vector<196x128xf32>
    %18 = arith.addf %15, %17 : vector<196x128xf32>
    %cst_19 = arith.constant 0.000000e+00 : f32
    %19 = vector.broadcast %cst_19 : f32 to vector<196x128xf32>
    %20 = arith.maximumf %18, %19 : vector<196x128xf32>
    %21 = arith.truncf %20 : vector<196x128xf32> to vector<196x128xbf16>
    %c0_20 = arith.constant 0 : index
    %c0_21 = arith.constant 0 : index
    %c0_22 = arith.constant 0 : index
    %22 = vector.load %arg4[%c0_20, %c0_21, %c0_22] : memref<1x196x128xbf16, #tpu.memory_space<vmem>>, vector<1x196x128xbf16>
    %23 = vector.shape_cast %22 : vector<1x196x128xbf16> to vector<196x128xbf16>
    %24 = vector.shape_cast %21 : vector<196x128xbf16> to vector<1x196x128xbf16>
    tpu.vector_store %arg4[%c0_20, %c0_21, %c0_22], %24 {strides = array<i32>} : memref<1x196x128xbf16, #tpu.memory_space<vmem>>, vector<1x196x128xbf16>,
    return
  }
  func.func @transform_0(%arg0: i32) -> (i32, i32, i32, i32) {
    %c0_i32 = arith.constant 0 : i32
    %c0_i32_0 = arith.constant 0 : i32
    %c0_i32_1 = arith.constant 0 : i32
    %c0_i32_2 = arith.constant 0 : i32
    return %arg0, %c0_i32, %c0_i32_0, %c0_i32_1 : i32, i32, i32, i32
  }
  func.func @transform_1(%arg0: i32) -> (i32, i32) {
    %c0_i32 = arith.constant 0 : i32
    %c0_i32_0 = arith.constant 0 : i32
    %c0_i32_1 = arith.constant 0 : i32
    return %c0_i32, %c0_i32_0 : i32, i32
  }
  func.func @transform_2(%arg0: i32) -> (i32, i32) {
    %c0_i32 = arith.constant 0 : i32
    %c0_i32_0 = arith.constant 0 : i32
    %c0_i32_1 = arith.constant 0 : i32
    return %c0_i32, %c0_i32_0 : i32, i32
  }
  func.func @transform_3(%arg0: i32) -> (i32, i32, i32) {
    %c0_i32 = arith.constant 0 : i32
    %c0_i32_0 = arith.constant 0 : i32
    %c0_i32_1 = arith.constant 0 : i32
    return %arg0, %c0_i32, %c0_i32_0 : i32, i32, i32
  }
}

module attributes {stable_mosaic.version = 11 : i64} {
  func.func @_conv_pool_relu_kernel(%arg0: i32, %arg1: memref<1x4x25x150xbf16, #tpu.memory_space<vmem>>, %arg2: memref<150x128xbf16, #tpu.memory_space<vmem>>, %arg3: memref<1x128xf32, #tpu.memory_space<vmem>>, %arg4: memref<1x25x128xbf16, #tpu.memory_space<vmem>>) attributes {dimension_semantics = [#tpu.dimension_semantics<parallel>], iteration_bounds = array<i64: 2>, scalar_prefetch = 0 : i64, scratch_operands = 0 : i64, tpu.core_type = #tpu.core_type<tc>, window_params = [{transform_indices = @transform_0, window_bounds = array<i64: 1, 4, 25, 150>}, {pipeline_mode = #tpu.pipeline_mode<synchronous>, transform_indices = @transform_1, window_bounds = array<i64: 150, 128>}, {pipeline_mode = #tpu.pipeline_mode<synchronous>, transform_indices = @transform_2, window_bounds = array<i64: 1, 128>}, {transform_indices = @transform_3, window_bounds = array<i64: 1, 25, 128>}]} {
    %c0 = arith.constant 0 : index
    %c0_0 = arith.constant 0 : index
    %0 = vector.load %arg2[%c0, %c0_0] : memref<150x128xbf16, #tpu.memory_space<vmem>>, vector<150x128xbf16>
    %c0_1 = arith.constant 0 : index
    %c0_2 = arith.constant 0 : index
    %c0_3 = arith.constant 0 : index
    %c0_4 = arith.constant 0 : index
    %1 = vector.load %arg1[%c0_1, %c0_2, %c0_3, %c0_4] : memref<1x4x25x150xbf16, #tpu.memory_space<vmem>>, vector<1x1x25x150xbf16>
    %2 = vector.shape_cast %1 : vector<1x1x25x150xbf16> to vector<25x150xbf16>
    %cst = arith.constant dense<0.000000e+00> : vector<25x128xf32>
    %3 = tpu.matmul %2, %0, %cst {dimension_numbers = #tpu.dot_dimension_numbers<[1], [0], [0], [1], [0, 0, 1, 1], [], []>} : vector<25x150xbf16>, vector<150x128xbf16>, vector<25x128xf32> -> vector<25x128xf32>
    %c0_5 = arith.constant 0 : index
    %c1 = arith.constant 1 : index
    %c0_6 = arith.constant 0 : index
    %c0_7 = arith.constant 0 : index
    %4 = vector.load %arg1[%c0_5, %c1, %c0_6, %c0_7] : memref<1x4x25x150xbf16, #tpu.memory_space<vmem>>, vector<1x1x25x150xbf16>
    %5 = vector.shape_cast %4 : vector<1x1x25x150xbf16> to vector<25x150xbf16>
    %cst_8 = arith.constant dense<0.000000e+00> : vector<25x128xf32>
    %6 = tpu.matmul %5, %0, %cst_8 {dimension_numbers = #tpu.dot_dimension_numbers<[1], [0], [0], [1], [0, 0, 1, 1], [], []>} : vector<25x150xbf16>, vector<150x128xbf16>, vector<25x128xf32> -> vector<25x128xf32>
    %7 = arith.maximumf %3, %6 : vector<25x128xf32>
    %c0_9 = arith.constant 0 : index
    %c2 = arith.constant 2 : index
    %c0_10 = arith.constant 0 : index
    %c0_11 = arith.constant 0 : index
    %8 = vector.load %arg1[%c0_9, %c2, %c0_10, %c0_11] : memref<1x4x25x150xbf16, #tpu.memory_space<vmem>>, vector<1x1x25x150xbf16>
    %9 = vector.shape_cast %8 : vector<1x1x25x150xbf16> to vector<25x150xbf16>
    %cst_12 = arith.constant dense<0.000000e+00> : vector<25x128xf32>
    %10 = tpu.matmul %9, %0, %cst_12 {dimension_numbers = #tpu.dot_dimension_numbers<[1], [0], [0], [1], [0, 0, 1, 1], [], []>} : vector<25x150xbf16>, vector<150x128xbf16>, vector<25x128xf32> -> vector<25x128xf32>
    %11 = arith.maximumf %7, %10 : vector<25x128xf32>
    %c0_13 = arith.constant 0 : index
    %c3 = arith.constant 3 : index
    %c0_14 = arith.constant 0 : index
    %c0_15 = arith.constant 0 : index
    %12 = vector.load %arg1[%c0_13, %c3, %c0_14, %c0_15] : memref<1x4x25x150xbf16, #tpu.memory_space<vmem>>, vector<1x1x25x150xbf16>
    %13 = vector.shape_cast %12 : vector<1x1x25x150xbf16> to vector<25x150xbf16>
    %cst_16 = arith.constant dense<0.000000e+00> : vector<25x128xf32>
    %14 = tpu.matmul %13, %0, %cst_16 {dimension_numbers = #tpu.dot_dimension_numbers<[1], [0], [0], [1], [0, 0, 1, 1], [], []>} : vector<25x150xbf16>, vector<150x128xbf16>, vector<25x128xf32> -> vector<25x128xf32>
    %15 = arith.maximumf %11, %14 : vector<25x128xf32>
    %c0_17 = arith.constant 0 : index
    %c0_18 = arith.constant 0 : index
    %16 = vector.load %arg3[%c0_17, %c0_18] : memref<1x128xf32, #tpu.memory_space<vmem>>, vector<1x128xf32>
    %17 = vector.broadcast %16 : vector<1x128xf32> to vector<25x128xf32>
    %18 = arith.addf %15, %17 : vector<25x128xf32>
    %cst_19 = arith.constant 0.000000e+00 : f32
    %19 = vector.broadcast %cst_19 : f32 to vector<25x128xf32>
    %20 = arith.maximumf %18, %19 : vector<25x128xf32>
    %21 = arith.truncf %20 : vector<25x128xf32> to vector<25x128xbf16>
    %c0_20 = arith.constant 0 : index
    %c0_21 = arith.constant 0 : index
    %c0_22 = arith.constant 0 : index
    %22 = vector.load %arg4[%c0_20, %c0_21, %c0_22] : memref<1x25x128xbf16, #tpu.memory_space<vmem>>, vector<1x25x128xbf16>
    %23 = vector.shape_cast %22 : vector<1x25x128xbf16> to vector<25x128xbf16>
    %24 = vector.shape_cast %21 : vector<25x128xbf16> to vector<1x25x128xbf16>
    tpu.vector_store %arg4[%c0_20, %c0_21, %c0_22], %24 {strides = array<i32>} : memref<1x25x128xbf16, #tpu.memory_space<vmem>>, vector<1x25x128xbf16>,
    return
  }
  func.func @transform_0(%arg0: i32) -> (i32, i32, i32, i32) {
    %c0_i32 = arith.constant 0 : i32
    %c0_i32_0 = arith.constant 0 : i32
    %c0_i32_1 = arith.constant 0 : i32
    %c0_i32_2 = arith.constant 0 : i32
    return %arg0, %c0_i32, %c0_i32_0, %c0_i32_1 : i32, i32, i32, i32
  }
  func.func @transform_1(%arg0: i32) -> (i32, i32) {
    %c0_i32 = arith.constant 0 : i32
    %c0_i32_0 = arith.constant 0 : i32
    %c0_i32_1 = arith.constant 0 : i32
    return %c0_i32, %c0_i32_0 : i32, i32
  }
  func.func @transform_2(%arg0: i32) -> (i32, i32) {
    %c0_i32 = arith.constant 0 : i32
    %c0_i32_0 = arith.constant 0 : i32
    %c0_i32_1 = arith.constant 0 : i32
    return %c0_i32, %c0_i32_0 : i32, i32
  }
  func.func @transform_3(%arg0: i32) -> (i32, i32, i32) {
    %c0_i32 = arith.constant 0 : i32
    %c0_i32_0 = arith.constant 0 : i32
    %c0_i32_1 = arith.constant 0 : i32
    return %arg0, %c0_i32, %c0_i32_0 : i32, i32, i32
  }
}

module attributes {stable_mosaic.version = 11 : i64} {
  func.func @_tail_kernel(%arg0: i32, %arg1: memref<1x1x400xbf16, #tpu.memory_space<vmem>>, %arg2: memref<400x128xbf16, #tpu.memory_space<vmem>>, %arg3: memref<1x128xf32, #tpu.memory_space<vmem>>, %arg4: memref<128x128xbf16, #tpu.memory_space<vmem>>, %arg5: memref<1x128xf32, #tpu.memory_space<vmem>>, %arg6: memref<128x256xbf16, #tpu.memory_space<vmem>>, %arg7: memref<1x256xf32, #tpu.memory_space<vmem>>, %arg8: memref<128x128xf32, #tpu.memory_space<vmem>>, %arg9: memref<128x128xbf16, #tpu.memory_space<vmem>>, %arg10: memref<1x128xf32, #tpu.memory_space<vmem>>, %arg11: memref<1x1x128xf32, #tpu.memory_space<vmem>>) attributes {dimension_semantics = [#tpu.dimension_semantics<parallel>], iteration_bounds = array<i64: 2>, scalar_prefetch = 0 : i64, scratch_operands = 0 : i64, tpu.core_type = #tpu.core_type<tc>, window_params = [{transform_indices = @transform_0, window_bounds = array<i64: 1, 1, 400>}, {pipeline_mode = #tpu.pipeline_mode<synchronous>, transform_indices = @transform_1, window_bounds = array<i64: 400, 128>}, {pipeline_mode = #tpu.pipeline_mode<synchronous>, transform_indices = @transform_2, window_bounds = array<i64: 1, 128>}, {pipeline_mode = #tpu.pipeline_mode<synchronous>, transform_indices = @transform_3, window_bounds = array<i64: 128, 128>}, {pipeline_mode = #tpu.pipeline_mode<synchronous>, transform_indices = @transform_4, window_bounds = array<i64: 1, 128>}, {pipeline_mode = #tpu.pipeline_mode<synchronous>, transform_indices = @transform_5, window_bounds = array<i64: 128, 256>}, {pipeline_mode = #tpu.pipeline_mode<synchronous>, transform_indices = @transform_6, window_bounds = array<i64: 1, 256>}, {pipeline_mode = #tpu.pipeline_mode<synchronous>, transform_indices = @transform_7, window_bounds = array<i64: 128, 128>}, {pipeline_mode = #tpu.pipeline_mode<synchronous>, transform_indices = @transform_8, window_bounds = array<i64: 128, 128>}, {pipeline_mode = #tpu.pipeline_mode<synchronous>, transform_indices = @transform_9, window_bounds = array<i64: 1, 128>}, {transform_indices = @transform_10, window_bounds = array<i64: 1, 1, 128>}]} {
    %c0 = arith.constant 0 : index
    %c0_0 = arith.constant 0 : index
    %c0_1 = arith.constant 0 : index
    %0 = vector.load %arg1[%c0, %c0_0, %c0_1] : memref<1x1x400xbf16, #tpu.memory_space<vmem>>, vector<1x1x400xbf16>
    %1 = vector.shape_cast %0 : vector<1x1x400xbf16> to vector<1x400xbf16>
    %c0_2 = arith.constant 0 : index
    %c0_3 = arith.constant 0 : index
    %2 = vector.load %arg2[%c0_2, %c0_3] : memref<400x128xbf16, #tpu.memory_space<vmem>>, vector<400x128xbf16>
    %cst = arith.constant dense<0.000000e+00> : vector<1x128xf32>
    %3 = tpu.matmul %1, %2, %cst {dimension_numbers = #tpu.dot_dimension_numbers<[1], [0], [0], [1], [0, 0, 1, 1], [], []>} : vector<1x400xbf16>, vector<400x128xbf16>, vector<1x128xf32> -> vector<1x128xf32>
    %c0_4 = arith.constant 0 : index
    %c0_5 = arith.constant 0 : index
    %4 = vector.load %arg3[%c0_4, %c0_5] : memref<1x128xf32, #tpu.memory_space<vmem>>, vector<1x128xf32>
    %5 = arith.addf %3, %4 : vector<1x128xf32>
    %cst_6 = arith.constant 0.000000e+00 : f32
    %6 = vector.broadcast %cst_6 : f32 to vector<1x128xf32>
    %7 = arith.maximumf %5, %6 : vector<1x128xf32>
    %8 = arith.truncf %7 : vector<1x128xf32> to vector<1x128xbf16>
    %c0_7 = arith.constant 0 : index
    %c0_8 = arith.constant 0 : index
    %9 = vector.load %arg4[%c0_7, %c0_8] : memref<128x128xbf16, #tpu.memory_space<vmem>>, vector<128x128xbf16>
    %cst_9 = arith.constant dense<0.000000e+00> : vector<1x128xf32>
    %10 = tpu.matmul %8, %9, %cst_9 {dimension_numbers = #tpu.dot_dimension_numbers<[1], [0], [0], [1], [0, 0, 1, 1], [], []>} : vector<1x128xbf16>, vector<128x128xbf16>, vector<1x128xf32> -> vector<1x128xf32>
    %c0_10 = arith.constant 0 : index
    %c0_11 = arith.constant 0 : index
    %11 = vector.load %arg5[%c0_10, %c0_11] : memref<1x128xf32, #tpu.memory_space<vmem>>, vector<1x128xf32>
    %12 = arith.addf %10, %11 : vector<1x128xf32>
    %cst_12 = arith.constant 0.000000e+00 : f32
    %13 = vector.broadcast %cst_12 : f32 to vector<1x128xf32>
    %14 = arith.maximumf %12, %13 : vector<1x128xf32>
    %15 = arith.truncf %14 : vector<1x128xf32> to vector<1x128xbf16>
    %c0_13 = arith.constant 0 : index
    %c0_14 = arith.constant 0 : index
    %16 = vector.load %arg6[%c0_13, %c0_14] : memref<128x256xbf16, #tpu.memory_space<vmem>>, vector<128x256xbf16>
    %cst_15 = arith.constant dense<0.000000e+00> : vector<1x256xf32>
    %17 = tpu.matmul %15, %16, %cst_15 {dimension_numbers = #tpu.dot_dimension_numbers<[1], [0], [0], [1], [0, 0, 1, 1], [], []>} : vector<1x128xbf16>, vector<128x256xbf16>, vector<1x256xf32> -> vector<1x256xf32>
    %c0_16 = arith.constant 0 : index
    %c0_17 = arith.constant 0 : index
    %18 = vector.load %arg7[%c0_16, %c0_17] : memref<1x256xf32, #tpu.memory_space<vmem>>, vector<1x256xf32>
    %19 = arith.addf %17, %18 : vector<1x256xf32>
    %20 = vector.extract_strided_slice %19 {offsets = [0, 0], sizes = [1, 128], strides = [1, 1]} : vector<1x256xf32> to vector<1x128xf32>
    %21 = vector.extract_strided_slice %19 {offsets = [0, 128], sizes = [1, 128], strides = [1, 1]} : vector<1x256xf32> to vector<1x128xf32>
    %c0_18 = arith.constant 0 : index
    %c0_19 = arith.constant 0 : index
    %22 = vector.load %arg8[%c0_18, %c0_19] : memref<128x128xf32, #tpu.memory_space<vmem>>, vector<128x128xf32>
    %cst_20 = arith.constant dense<0.000000e+00> : vector<1x128xf32>
    %23 = tpu.matmul %14, %22, %cst_20 {dimension_numbers = #tpu.dot_dimension_numbers<[1], [0], [0], [1], [0, 0, 1, 1], [], []>} : vector<1x128xf32>, vector<128x128xf32>, vector<1x128xf32> -> vector<1x128xf32>
    %24 = vector.extract_strided_slice %23 {offsets = [0, 0], sizes = [1, 1], strides = [1, 1]} : vector<1x128xf32> to vector<1x1xf32>
    %25 = vector.extract_strided_slice %23 {offsets = [0, 1], sizes = [1, 1], strides = [1, 1]} : vector<1x128xf32> to vector<1x1xf32>
    %26 = arith.maximumf %24, %25 : vector<1x1xf32>
    %27 = arith.subf %24, %26 : vector<1x1xf32>
    %28 = math.exp %27 : vector<1x1xf32>
    %29 = arith.subf %25, %26 : vector<1x1xf32>
    %30 = math.exp %29 : vector<1x1xf32>
    %31 = arith.cmpf oge, %24, %25 : vector<1x1xf32>
    %32 = arith.select %31, %28, %30 : vector<1x1xi1>, vector<1x1xf32>
    %33 = arith.addf %28, %30 : vector<1x1xf32>
    %34 = arith.divf %32, %33 : vector<1x1xf32>
    %35 = vector.shape_cast %31 : vector<1x1xi1> to vector<1x1xi1>
    %36 = vector.broadcast %35 : vector<1x1xi1> to vector<1x128xi1>
    %37 = arith.select %36, %20, %21 : vector<1x128xi1>, vector<1x128xf32>
    %38 = vector.broadcast %34 : vector<1x1xf32> to vector<1x128xf32>
    %39 = arith.mulf %38, %37 : vector<1x128xf32>
    %40 = arith.truncf %39 : vector<1x128xf32> to vector<1x128xbf16>
    %c0_21 = arith.constant 0 : index
    %c0_22 = arith.constant 0 : index
    %41 = vector.load %arg9[%c0_21, %c0_22] : memref<128x128xbf16, #tpu.memory_space<vmem>>, vector<128x128xbf16>
    %cst_23 = arith.constant dense<0.000000e+00> : vector<1x128xf32>
    %42 = tpu.matmul %40, %41, %cst_23 {dimension_numbers = #tpu.dot_dimension_numbers<[1], [0], [0], [1], [0, 0, 1, 1], [], []>} : vector<1x128xbf16>, vector<128x128xbf16>, vector<1x128xf32> -> vector<1x128xf32>
    %c0_24 = arith.constant 0 : index
    %c0_25 = arith.constant 0 : index
    %43 = vector.load %arg10[%c0_24, %c0_25] : memref<1x128xf32, #tpu.memory_space<vmem>>, vector<1x128xf32>
    %44 = arith.addf %42, %43 : vector<1x128xf32>
    %c0_26 = arith.constant 0 : index
    %c0_27 = arith.constant 0 : index
    %c0_28 = arith.constant 0 : index
    %45 = vector.load %arg11[%c0_26, %c0_27, %c0_28] : memref<1x1x128xf32, #tpu.memory_space<vmem>>, vector<1x1x128xf32>
    %46 = vector.shape_cast %45 : vector<1x1x128xf32> to vector<1x128xf32>
    %47 = vector.shape_cast %44 : vector<1x128xf32> to vector<1x1x128xf32>
    tpu.vector_store %arg11[%c0_26, %c0_27, %c0_28], %47 {strides = array<i32>} : memref<1x1x128xf32, #tpu.memory_space<vmem>>, vector<1x1x128xf32>,
    return
  }
  func.func @transform_0(%arg0: i32) -> (i32, i32, i32) {
    %c0_i32 = arith.constant 0 : i32
    %c0_i32_0 = arith.constant 0 : i32
    %c0_i32_1 = arith.constant 0 : i32
    return %arg0, %c0_i32, %c0_i32_0 : i32, i32, i32
  }
  func.func @transform_1(%arg0: i32) -> (i32, i32) {
    %c0_i32 = arith.constant 0 : i32
    %c0_i32_0 = arith.constant 0 : i32
    %c0_i32_1 = arith.constant 0 : i32
    return %c0_i32, %c0_i32_0 : i32, i32
  }
  func.func @transform_2(%arg0: i32) -> (i32, i32) {
    %c0_i32 = arith.constant 0 : i32
    %c0_i32_0 = arith.constant 0 : i32
    %c0_i32_1 = arith.constant 0 : i32
    return %c0_i32, %c0_i32_0 : i32, i32
  }
  func.func @transform_3(%arg0: i32) -> (i32, i32) {
    %c0_i32 = arith.constant 0 : i32
    %c0_i32_0 = arith.constant 0 : i32
    %c0_i32_1 = arith.constant 0 : i32
    return %c0_i32, %c0_i32_0 : i32, i32
  }
  func.func @transform_4(%arg0: i32) -> (i32, i32) {
    %c0_i32 = arith.constant 0 : i32
    %c0_i32_0 = arith.constant 0 : i32
    %c0_i32_1 = arith.constant 0 : i32
    return %c0_i32, %c0_i32_0 : i32, i32
  }
  func.func @transform_5(%arg0: i32) -> (i32, i32) {
    %c0_i32 = arith.constant 0 : i32
    %c0_i32_0 = arith.constant 0 : i32
    %c0_i32_1 = arith.constant 0 : i32
    return %c0_i32, %c0_i32_0 : i32, i32
  }
  func.func @transform_6(%arg0: i32) -> (i32, i32) {
    %c0_i32 = arith.constant 0 : i32
    %c0_i32_0 = arith.constant 0 : i32
    %c0_i32_1 = arith.constant 0 : i32
    return %c0_i32, %c0_i32_0 : i32, i32
  }
  func.func @transform_7(%arg0: i32) -> (i32, i32) {
    %c0_i32 = arith.constant 0 : i32
    %c0_i32_0 = arith.constant 0 : i32
    %c0_i32_1 = arith.constant 0 : i32
    return %c0_i32, %c0_i32_0 : i32, i32
  }
  func.func @transform_8(%arg0: i32) -> (i32, i32) {
    %c0_i32 = arith.constant 0 : i32
    %c0_i32_0 = arith.constant 0 : i32
    %c0_i32_1 = arith.constant 0 : i32
    return %c0_i32, %c0_i32_0 : i32, i32
  }
  func.func @transform_9(%arg0: i32) -> (i32, i32) {
    %c0_i32 = arith.constant 0 : i32
    %c0_i32_0 = arith.constant 0 : i32
    %c0_i32_1 = arith.constant 0 : i32
    return %c0_i32, %c0_i32_0 : i32, i32
  }
  func.func @transform_10(%arg0: i32) -> (i32, i32, i32) {
    %c0_i32 = arith.constant 0 : i32
    %c0_i32_0 = arith.constant 0 : i32
    %c0_i32_1 = arith.constant 0 : i32
    return %arg0, %c0_i32, %c0_i32_0 : i32, i32, i32
  }
}

</mosaic_0001>

<llo_original>
// kernel: net_forward.3
$region0: #{net_forward.3}
  #allocation0 [shape = 'u32[]', space=smem, size = 0x4, offset = 0x4, fixed_abs, tag = 'smem constant byte address 0x4 - core index']
  #allocation1 [shape = 'u32[144,128]{1,0:T(1,128)}', space=vmem, size = 0x12000, scoped, tag = 'internal scratch']
  %s0 = inlined_call_operand.vmem [shape: bf16[2,4,196,75], index: 0, kind: input, shape index: {}]
  %s1 = inlined_call_operand.vmem [shape: bf16[75,128], index: 1, kind: input, shape index: {}]
  %s2 = inlined_call_operand.vmem [shape: f32[1,128], index: 2, kind: input, shape index: {}]
  %s3 = inlined_call_operand.vmem [shape: bf16[2,196,128], index: 3, kind: output, shape index: {}]
  %s4 = sld [smem:[#allocation0]]
  $region45: #{net_forward.3} parent=0
    _
  %s6 = ssub.s32 1, %s4
  %s7 = scalar_select 0, %s6, %s4
  loop: start=0, step=1, limit=4
  $region2: #{net_forward.3} parent=0 // loop_pre_header
    _
  $region3: #{net_forward.3} parent=0 // loop_header
    %s9 = sphi 0, %s13
    %p10 = scmp.ge.s32.totalorder %s9, 4
    %s19 = sphi 0, %s21
    %s22 = sphi 0, %s19
    %s23 = sphi 0, %s22
    %s39 = sphi 0, %s23
    %s43 = sphi 0, %s43
    %s45 = sphi 0, %s43
    %s46 = sphi 0, %s45
    %s60 = sphi 0, %s46
    %s64 = sphi 0, %s64
    %s66 = sphi 0, %s64
    %s67 = sphi 0, %s66
    %s81 = sphi 0, %s67
    %s87 = sphi 0, %s89
    %s90 = sphi 0, %s87
    %s91 = sphi 0, %s90
    %s107 = sphi 0, %s91
  $region4: #{net_forward.3} parent=0 // loop_header_branch
    %12 = sbr.rel (%p10) target = $region8
  $region5: #{net_forward.3} parent=0 // loop_body
    %s14 = ssub.s32 %s9, 1
    %s15 = ssub.s32 %s9, 2
    %s16 = sadd.s32 %s9, 1
    %s17 = ssub.s32 %s9, %s16
    %p18 = scmp.eq.s32.totalorder %s17, 0
    %s20 = sadd.s32 %s19, 1
    %s21 = scalar_select %p18, %s19, %s20
    %p24 = pneg %p18
    %p25 = scmp.eq.s32.totalorder %s9, 1
    %p26 = por %p24, %p25
    %p27 = scmp.ne.s32.totalorder %s19, %s22
    %p28 = scmp.eq.s32.totalorder %s9, 0
    %p29 = por %p27, %p28
    %p30 = scmp.ne.s32.totalorder %s19, %s22
    %p31 = scmp.eq.s32.totalorder %s14, 1
    %p32 = por %p30, %p31
    %p33 = scmp.ne.s32.totalorder %s22, %s23
    %p34 = scmp.eq.s32.totalorder %s14, 0
    %p35 = por %p33, %p34
    %p36 = scmp.ne.s32.totalorder %s22, %s23
    %p37 = scmp.eq.s32.totalorder %s15, 1
    %p38 = por %p36, %p37
    %p40 = scmp.ne.s32.totalorder %s23, %s39
    %p41 = scmp.eq.s32.totalorder %s15, 0
    %p42 = por %p40, %p41
    %s44 = sadd.s32 %s43, 1
    %p47 = scmp.eq.s32.totalorder %s9, 1
    %p48 = scmp.ne.s32.totalorder %s43, %s45
    %p49 = scmp.eq.s32.totalorder %s9, 0
    %p50 = por %p48, %p49
    %p51 = scmp.ne.s32.totalorder %s43, %s45
    %p52 = scmp.eq.s32.totalorder %s14, 1
    %p53 = por %p51, %p52
    %p54 = scmp.ne.s32.totalorder %s45, %s46
    %p55 = scmp.eq.s32.totalorder %s14, 0
    %p56 = por %p54, %p55
    %p57 = scmp.ne.s32.totalorder %s45, %s46
    %p58 = scmp.eq.s32.totalorder %s15, 1
    %p59 = por %p57, %p58
    %p61 = scmp.ne.s32.totalorder %s46, %s60
    %p62 = scmp.eq.s32.totalorder %s15, 0
    %p63 = por %p61, %p62
    %s65 = sadd.s32 %s64, 1
    %p68 = scmp.eq.s32.totalorder %s9, 1
    %p69 = scmp.ne.s32.totalorder %s64, %s66
    %p70 = scmp.eq.s32.totalorder %s9, 0
    %p71 = por %p69, %p70
    %p72 = scmp.ne.s32.totalorder %s64, %s66
    %p73 = scmp.eq.s32.totalorder %s14, 1
    %p74 = por %p72, %p73
    %p75 = scmp.ne.s32.totalorder %s66, %s67
    %p76 = scmp.eq.s32.totalorder %s14, 0
    %p77 = por %p75, %p76
    %p78 = scmp.ne.s32.totalorder %s66, %s67
    %p79 = scmp.eq.s32.totalorder %s15, 1
    %p80 = por %p78, %p79
    %p82 = scmp.ne.s32.totalorder %s67, %s81
    %p83 = scmp.eq.s32.totalorder %s15, 0
    %p84 = por %p82, %p83
    %s85 = ssub.s32 %s9, %s16
    %p86 = scmp.eq.s32.totalorder %s85, 0
    %s88 = sadd.s32 %s87, 1
    %s89 = scalar_select %p86, %s87, %s88
    %p92 = pneg %p86
    %p93 = scmp.eq.s32.totalorder %s9, 1
    %p94 = por %p92, %p93
    %p95 = scmp.ne.s32.totalorder %s87, %s90
    %p96 = scmp.eq.s32.totalorder %s9, 0
    %p97 = por %p95, %p96
    %p98 = scmp.ne.s32.totalorder %s87, %s90
    %p99 = scmp.eq.s32.totalorder %s14, 1
    %p100 = por %p98, %p99
    %p101 = scmp.ne.s32.totalorder %s90, %s91
    %p102 = scmp.eq.s32.totalorder %s14, 0
    %p103 = por %p101, %p102
    %p104 = scmp.ne.s32.totalorder %s90, %s91
    %p105 = scmp.eq.s32.totalorder %s15, 1
    %p106 = por %p104, %p105
    %p108 = scmp.ne.s32.totalorder %s91, %s107
    %p109 = scmp.eq.s32.totalorder %s15, 0
    %p110 = por %p108, %p109
    %p111 = scmp.le.s32.totalorder 1, %s9
    %p112 = scmp.lt.s32.totalorder %s9, 3
    %p113 = pnand %p111, %p112
    %p114 = pneg %p113
    // Predicated region
    $region9: #{net_forward.3} parent=5 // pred_check
      _
    $region10: #{net_forward.3} parent=5 // pred_check_branch
      %116 = sbr.rel (%p113) target = $region12
    $region11: #{net_forward.3} parent=5 // pred_region
      %s117 = ssub.s32 %s9, 1
      // Predicated region
      $region13: #{net_forward.3} parent=11 // pred_check
        %p118 = pneg %p56
      $region14: #{net_forward.3} parent=11 // pred_check_branch
        %120 = sbr.rel (%p118) target = $region16
      $region15: #{net_forward.3} parent=11 // pred_region
        _
      $region16: #{net_forward.3} parent=11 // pred_fallthru
        _
      // Predicated region
      $region17: #{net_forward.3} parent=11 // pred_check
        %p121 = pneg %p77
      $region18: #{net_forward.3} parent=11 // pred_check_branch
        %123 = sbr.rel (%p121) target = $region20
      $region19: #{net_forward.3} parent=11 // pred_region
        _
      $region20: #{net_forward.3} parent=11 // pred_fallthru
        _
    $region12: #{net_forward.3} parent=5 // pred_fallthru
      _
    %p124 = scmp.lt.s32.totalorder %s9, 2
    // Predicated region
    $region21: #{net_forward.3} parent=5 // pred_check
      %p125 = pneg %p124
    $region22: #{net_forward.3} parent=5 // pred_check_branch
      %127 = sbr.rel (%p125) target = $region24
    $region23: #{net_forward.3} parent=5 // pred_region
      // Predicated region
      $region25: #{net_forward.3} parent=23 // pred_check
        %p128 = pneg %p29
      $region26: #{net_forward.3} parent=23 // pred_check_branch
        %130 = sbr.rel (%p128) target = $region28
      $region27: #{net_forward.3} parent=23 // pred_region
        %p131 = scmp.lt.s32.totalorder %s9, 1
        %s132 = scalar_select %p131, %s9, 1
        %s133 = smul.addr %s132, 100
        %s134 = smul.addr %s133, 4
        %s135 = scalar_lea.vmem %s0, %s134
      $region28: #{net_forward.3} parent=23 // pred_fallthru
        _
    $region24: #{net_forward.3} parent=5 // pred_fallthru
      _
    %p136 = scmp.le.s32.totalorder 1, %s9
    %p137 = scmp.lt.s32.totalorder %s9, 3
    %p138 = pnand %p136, %p137
    %p139 = pneg %p138
    // Predicated region
    $region29: #{net_forward.3} parent=5 // pred_check
      _
    $region30: #{net_forward.3} parent=5 // pred_check_branch
      %141 = sbr.rel (%p138) target = $region32
    $region31: #{net_forward.3} parent=5 // pred_region
      %s142 = ssub.s32 %s9, 1
      %p143 = scmp.lt.s32.totalorder %s14, 1
      %s144 = scalar_select %p143, %s14, 1
      %s145 = smul.addr %s144, 100
      %s146 = smul.addr %s145, 4
      %s147 = scalar_lea.vmem %s0, %s146
      %p148 = pneg %p35
      %p149 = pneg %p32
      %p150 = pneg %p56
      %p151 = pneg %p53
      %p152 = pneg %p77
      %p153 = pneg %p74
      %p154 = pneg %p103
      %p155 = pneg %p100
      %p156 = scmp.lt.s32.totalorder %s14, 1
      %s157 = scalar_select %p156, %s14, 1
      %s158 = smul.addr %s157, 25
      %s159 = smul.addr %s158, 4
      %s160 = scalar_lea.vmem %s3, %s159
      %p161 = scmp.lt.s32.totalorder %s14, 1
      %s162 = scalar_select %p161, %s14, 1
      %s163 = smul.addr %s162, 100
      %s164 = smul.addr %s163, 4
      %s165 = scalar_lea.vmem %s0, %s164
      %p166 = scmp.lt.s32.totalorder %s14, 1
      %s167 = scalar_select %p166, %s14, 1
      %s168 = smul.addr %s167, 25
      %s169 = smul.addr %s168, 4
      %s170 = scalar_lea.vmem %s3, %s169
      %v172 = vld [vmem:[%s1] sm:$0xf]
      %v173 = vld [vmem:[%s1 + $0x4] sm:$0xf]
      %v174 = vld [vmem:[%s1 + $0x8] sm:$0xf]
      %v175 = vld [vmem:[%s1 + $0xc] sm:$0xf]
      %v176 = vld [vmem:[%s1 + $0x10] sm:$0xf]
      %v177 = vld [vmem:[%s1 + $0x14] sm:$0xf]
      %v178 = vld [vmem:[%s1 + $0x18] sm:$0xf]
      %v179 = vld [vmem:[%s1 + $0x1c] sm:$0xf]
      %v180 = vld [vmem:[%s1 + $0x20] sm:$0xf]
      %v181 = vld [vmem:[%s1 + $0x24] sm:$0x3]
      %v182 = vld [vmem:[%s165] sm:$0xf]
      %v183 = vld [vmem:[%s165 + $0x4] sm:$0xf]
      %v184 = vld [vmem:[%s165 + $0x8] sm:$0xf]
      %v185 = vld [vmem:[%s165 + $0xc] sm:$0xf]
      %v186 = vld [vmem:[%s165 + $0x10] sm:$0xf]
      %v187 = vld [vmem:[%s165 + $0x14] sm:$0xf]
      %v188 = vld [vmem:[%s165 + $0x18] sm:$0xf]
      %v189 = vld [vmem:[%s165 + $0x1c] sm:$0xf]
      %v190 = vld [vmem:[%s165 + $0x20] sm:$0xf]
      %v191 = vld [vmem:[%s165 + $0x24] sm:$0xf]
      %v192 = vld [vmem:[%s165 + $0x28] sm:$0xf]
      %v193 = vld [vmem:[%s165 + $0x2c] sm:$0xf]
      %v194 = vld [vmem:[%s165 + $0x30] sm:$0xf]
      %v195 = vld [vmem:[%s165 + $0x34] sm:$0xf]
      %v196 = vld [vmem:[%s165 + $0x38] sm:$0xf]
      %v197 = vld [vmem:[%s165 + $0x3c] sm:$0xf]
      %v198 = vld [vmem:[%s165 + $0x40] sm:$0xf]
      %v199 = vld [vmem:[%s165 + $0x44] sm:$0xf]
      %v200 = vld [vmem:[%s165 + $0x48] sm:$0xf]
      %v201 = vld [vmem:[%s165 + $0x4c] sm:$0xf]
      %v202 = vld [vmem:[%s165 + $0x50] sm:$0xf]
      %v203 = vld [vmem:[%s165 + $0x54] sm:$0xf]
      %v204 = vld [vmem:[%s165 + $0x58] sm:$0xf]
      %v205 = vld [vmem:[%s165 + $0x5c] sm:$0xf]
      %v206 = vld [vmem:[%s165 + $0x60] sm:$0x3]
      %v232 = vunpack.c.l.b16 %v182
      %v233 = vunpack.c.l.b16 %v183
      %v234 = vunpack.c.l.b16 %v184
      %v235 = vunpack.c.l.b16 %v185
      %v236 = vunpack.c.l.b16 %v186
      %v237 = vunpack.c.l.b16 %v187
      %v238 = vunpack.c.l.b16 %v188
      %v239 = vunpack.c.l.b16 %v189
      %v240 = vunpack.c.l.b16 %v190
      %v241 = vunpack.c.l.b16 %v191
      %v242 = vunpack.c.l.b16 %v192
      %v243 = vunpack.c.l.b16 %v193
      %v244 = vunpack.c.l.b16 %v194
      %v245 = vunpack.c.l.b16 %v195
      %v246 = vunpack.c.l.b16 %v196
      %v247 = vunpack.c.l.b16 %v197
      %v248 = vunpack.c.l.b16 %v198
      %v249 = vunpack.c.l.b16 %v199
      %v250 = vunpack.c.l.b16 %v200
      %v251 = vunpack.c.l.b16 %v201
      %v252 = vunpack.c.l.b16 %v202
      %v253 = vunpack.c.l.b16 %v203
      %v254 = vunpack.c.l.b16 %v204
      %v255 = vunpack.c.l.b16 %v205
      %v256 = vunpack.c.l.b16 %v206
      %v257 = vpack.c.b16 %v233, %v232
      %v258 = vpack.c.b16 %v235, %v234
      %v259 = vpack.c.b16 %v237, %v236
      %v260 = vpack.c.b16 %v239, %v238
      %v261 = vpack.c.b16 %v241, %v240
      %v262 = vpack.c.b16 %v243, %v242
      %v263 = vpack.c.b16 %v245, %v244
      %v264 = vpack.c.b16 %v247, %v246
      %v265 = vpack.c.b16 %v249, %v248
      %v266 = vpack.c.b16 %v251, %v250
      %v267 = vpack.c.b16 %v253, %v252
      %v268 = vpack.c.b16 %v255, %v254
      %v269 = vpack.c.b16 %v256, %v256
      %v280 = vunpack.c.l.b16 %v172
      %v281 = vunpack.c.l.b16 %v173
      %v282 = vunpack.c.l.b16 %v174
      %v283 = vunpack.c.l.b16 %v175
      %v284 = vunpack.c.l.b16 %v176
      %v285 = vunpack.c.l.b16 %v177
      %v286 = vunpack.c.l.b16 %v178
      %v287 = vunpack.c.l.b16 %v179
      %v288 = vunpack.c.l.b16 %v180
      %v289 = vunpack.c.l.b16 %v181
      %v290 = vpack.c.b16 %v281, %v280
      %v291 = vpack.c.b16 %v283, %v282
      %v292 = vpack.c.b16 %v285, %v284
      %v293 = vpack.c.b16 %v287, %v286
      %v294 = vpack.c.b16 %v289, %v288
      %vm299 = vcmask 613376
      %v301 = vsel %vm299, %v257, 0
      %v304 = vsel %vm299, %v258, 0
      %v307 = vsel %vm299, %v259, 0
      %v310 = vsel %vm299, %v260, 0
      %v313 = vsel %vm299, %v261, 0
      %v316 = vsel %vm299, %v262, 0
      %v319 = vsel %vm299, %v263, 0
      %v322 = vsel %vm299, %v264, 0
      %v325 = vsel %vm299, %v265, 0
      %v328 = vsel %vm299, %v266, 0
      %v331 = vsel %vm299, %v267, 0
      %v334 = vsel %vm299, %v268, 0
      %v337 = vsel %vm299, %v269, 0
      %vm339 = vcmask 1044480
      %vm340 = vcmask 1045504
      %v341 = vsel %vm339, 4294967295, 65535
      %v342 = vsel %vm340, %v341, 0
      %v344 = vand.u32 %v294, %v342
      %346 = vmatprep.subr.bf16.mxu0 0
      %347 = vmatpush1.bf16.msra.mxu0 0
      %348 = vmatprep.subr.bf16.mxu0 0
      %349 = vmatpush1.bf16.msra.mxu0 0
      %350 = vmatprep.subr.bf16.mxu0 0
      %351 = vmatpush1.bf16.msra.mxu0 0
      %352 = vmatprep.subr.bf16.mxu0 0
      %353 = vmatpush1.bf16.msra.mxu0 %v344
      %354 = vmatprep.subr.bf16.mxu0 0
      %355 = vmatpush1.bf16.msra.mxu0 %v293
      %356 = vmatprep.subr.bf16.mxu0 0
      %357 = vmatpush1.bf16.msra.mxu0 %v292
      %358 = vmatprep.subr.bf16.mxu0 0
      %359 = vmatpush1.bf16.msra.mxu0 %v291
      %360 = vmatprep.subr.bf16.mxu0 0
      %361 = vmatpush1.bf16.msra.mxu0 %v290
      %362 = vmatprep.subr.bf16.mxu0 0
      %363 = vmatpush2.bf16.msra.mxu0 0
      %364 = vmatprep.subr.bf16.mxu0 0
      %365 = vmatpush2.bf16.msra.mxu0 0
      %366 = vmatprep.subr.bf16.mxu0 0
      %367 = vmatpush2.bf16.msra.mxu0 0
      %368 = vmatprep.subr.bf16.mxu0 0
      %369 = vmatpush2.bf16.msra.mxu0 0
      %370 = vmatprep.subr.bf16.mxu0 0
      %371 = vmatpush2.bf16.msra.mxu0 0
      %372 = vmatprep.subr.bf16.mxu0 0
      %373 = vmatpush2.bf16.msra.mxu0 0
      %374 = vmatprep.subr.bf16.mxu0 0
      %375 = vmatpush2.bf16.msra.mxu0 0
      %376 = vmatprep.subr.bf16.mxu0 0
      %377 = vmatpush2.bf16.msra.mxu0 0
      %378 = vmatprep.mubr.bf16.mxu0 0
      %379 = vmatmul.mubr.bf16.gmra.mxu0 %v301
      %v380 = vpop.f32.mrf.mxu0
      %v381 = vadd.f32 0.0, %v380
      %v382 = vpop.f32.mrf.mxu0
      %v383 = vpop.f32.mrf.mxu0
      %v384 = vadd.f32 0.0, %v383
      %v385 = vpop.f32.mrf.mxu0
      %386 = vmatprep.mubr.bf16.mxu0 0
      %387 = vmatmul.mubr.bf16.gmra.mxu0 %v304
      %v388 = vpop.f32.mrf.mxu0
      %v389 = vadd.f32 0.0, %v388
      %v390 = vpop.f32.mrf.mxu0
      %v391 = vpop.f32.mrf.mxu0
      %v392 = vadd.f32 0.0, %v391
      %v393 = vpop.f32.mrf.mxu0
      %394 = vmatprep.mubr.bf16.mxu0 0
      %395 = vmatmul.mubr.bf16.gmra.mxu0 %v307
      %v396 = vpop.f32.mrf.mxu0
      %v397 = vadd.f32 0.0, %v396
      %v398 = vpop.f32.mrf.mxu0
      %v399 = vpop.f32.mrf.mxu0
      %v400 = vadd.f32 0.0, %v399
      %v401 = vpop.f32.mrf.mxu0
      %402 = vmatprep.mubr.bf16.mxu0 0
      %403 = vmatmul.mubr.bf16.gmra.mxu0 %v310
      %v404 = vpop.f32.mrf.mxu0
      %v405 = vadd.f32 0.0, %v404
      %v406 = vpop.f32.mrf.mxu0
      %v407 = vpop.f32.mrf.mxu0
      %v408 = vadd.f32 0.0, %v407
      %v409 = vpop.f32.mrf.mxu0
      %410 = vmatprep.mubr.bf16.mxu0 0
      %411 = vmatmul.mubr.bf16.gmra.mxu0 %v313
      %v412 = vpop.f32.mrf.mxu0
      %v413 = vadd.f32 0.0, %v412
      %v414 = vpop.f32.mrf.mxu0
      %v415 = vpop.f32.mrf.mxu0
      %v416 = vadd.f32 0.0, %v415
      %v417 = vpop.f32.mrf.mxu0
      %418 = vmatprep.mubr.bf16.mxu0 0
      %419 = vmatmul.mubr.bf16.gmra.mxu0 %v316
      %v420 = vpop.f32.mrf.mxu0
      %v421 = vadd.f32 0.0, %v420
      %v422 = vpop.f32.mrf.mxu0
      %v423 = vpop.f32.mrf.mxu0
      %v424 = vadd.f32 0.0, %v423
      %v425 = vpop.f32.mrf.mxu0
      %426 = vmatprep.mubr.bf16.mxu0 0
      %427 = vmatmul.mubr.bf16.gmra.mxu0 %v319
      %v428 = vpop.f32.mrf.mxu0
      %v429 = vadd.f32 0.0, %v428
      %v430 = vpop.f32.mrf.mxu0
      %v431 = vpop.f32.mrf.mxu0
      %v432 = vadd.f32 0.0, %v431
      %v433 = vpop.f32.mrf.mxu0
      %434 = vmatprep.mubr.bf16.mxu0 0
      %435 = vmatmul.mubr.bf16.gmra.mxu0 %v322
      %v436 = vpop.f32.mrf.mxu0
      %v437 = vadd.f32 0.0, %v436
      %v438 = vpop.f32.mrf.mxu0
      %v439 = vpop.f32.mrf.mxu0
      %v440 = vadd.f32 0.0, %v439
      %v441 = vpop.f32.mrf.mxu0
      %442 = vmatprep.mubr.bf16.mxu0 0
      %443 = vmatmul.mubr.bf16.gmra.mxu0 %v325
      %v444 = vpop.f32.mrf.mxu0
      %v445 = vadd.f32 0.0, %v444
      %v446 = vpop.f32.mrf.mxu0
      %v447 = vpop.f32.mrf.mxu0
      %v448 = vadd.f32 0.0, %v447
      %v449 = vpop.f32.mrf.mxu0
      %450 = vmatprep.mubr.bf16.mxu0 0
      %451 = vmatmul.mubr.bf16.gmra.mxu0 %v328
      %v452 = vpop.f32.mrf.mxu0
      %v453 = vadd.f32 0.0, %v452
      %v454 = vpop.f32.mrf.mxu0
      %v455 = vpop.f32.mrf.mxu0
      %v456 = vadd.f32 0.0, %v455
      %v457 = vpop.f32.mrf.mxu0
      %458 = vmatprep.mubr.bf16.mxu0 0
      %459 = vmatmul.mubr.bf16.gmra.mxu0 %v331
      %v460 = vpop.f32.mrf.mxu0
      %v461 = vadd.f32 0.0, %v460
      %v462 = vpop.f32.mrf.mxu0
      %v463 = vpop.f32.mrf.mxu0
      %v464 = vadd.f32 0.0, %v463
      %v465 = vpop.f32.mrf.mxu0
      %466 = vmatprep.mubr.bf16.mxu0 0
      %467 = vmatmul.mubr.bf16.gmra.mxu0 %v334
      %v468 = vpop.f32.mrf.mxu0
      %v469 = vadd.f32 0.0, %v468
      %v470 = vpop.f32.mrf.mxu0
      %v471 = vpop.f32.mrf.mxu0
      %v472 = vadd.f32 0.0, %v471
      %v473 = vpop.f32.mrf.mxu0
      %474 = vmatprep.mubr.bf16.mxu0 0
      %475 = vmatmul.mubr.bf16.gmra.mxu0 %v337
      %v476 = vpop.f32.mrf.mxu0
      %v477 = vadd.f32 0.0, %v476
      %v478 = vpop.f32.mrf.mxu0
      %v479 = vpop.f32.mrf.mxu0
      %v480 = vpop.f32.mrf.mxu0
      %481 = vdwg.mxu0
      %s482 = scalar_lea.vmem %s165, 100
      %v483 = vld [vmem:[%s482] sm:$0xf]
      %v484 = vld [vmem:[%s482 + $0x4] sm:$0xf]
      %v485 = vld [vmem:[%s482 + $0x8] sm:$0xf]
      %v486 = vld [vmem:[%s482 + $0xc] sm:$0xf]
      %v487 = vld [vmem:[%s482 + $0x10] sm:$0xf]
      %v488 = vld [vmem:[%s482 + $0x14] sm:$0xf]
      %v489 = vld [vmem:[%s482 + $0x18] sm:$0xf]
      %v490 = vld [vmem:[%s482 + $0x1c] sm:$0xf]
      %v491 = vld [vmem:[%s482 + $0x20] sm:$0xf]
      %v492 = vld [vmem:[%s482 + $0x24] sm:$0xf]
      %v493 = vld [vmem:[%s482 + $0x28] sm:$0xf]
      %v494 = vld [vmem:[%s482 + $0x2c] sm:$0xf]
      %v495 = vld [vmem:[%s482 + $0x30] sm:$0xf]
      %v496 = vld [vmem:[%s482 + $0x34] sm:$0xf]
      %v497 = vld [vmem:[%s482 + $0x38] sm:$0xf]
      %v498 = vld [vmem:[%s482 + $0x3c] sm:$0xf]
      %v499 = vld [vmem:[%s482 + $0x40] sm:$0xf]
      %v500 = vld [vmem:[%s482 + $0x44] sm:$0xf]
      %v501 = vld [vmem:[%s482 + $0x48] sm:$0xf]
      %v502 = vld [vmem:[%s482 + $0x4c] sm:$0xf]
      %v503 = vld [vmem:[%s482 + $0x50] sm:$0xf]
      %v504 = vld [vmem:[%s482 + $0x54] sm:$0xf]
      %v505 = vld [vmem:[%s482 + $0x58] sm:$0xf]
      %v506 = vld [vmem:[%s482 + $0x5c] sm:$0xf]
      %v507 = vld [vmem:[%s482 + $0x60] sm:$0x3]
      %v533 = vunpack.c.l.b16 %v483
      %v534 = vunpack.c.l.b16 %v484
      %v535 = vunpack.c.l.b16 %v485
      %v536 = vunpack.c.l.b16 %v486
      %v537 = vunpack.c.l.b16 %v487
      %v538 = vunpack.c.l.b16 %v488
      %v539 = vunpack.c.l.b16 %v489
      %v540 = vunpack.c.l.b16 %v490
      %v541 = vunpack.c.l.b16 %v491
      %v542 = vunpack.c.l.b16 %v492
      %v543 = vunpack.c.l.b16 %v493
      %v544 = vunpack.c.l.b16 %v494
      %v545 = vunpack.c.l.b16 %v495
      %v546 = vunpack.c.l.b16 %v496
      %v547 = vunpack.c.l.b16 %v497
      %v548 = vunpack.c.l.b16 %v498
      %v549 = vunpack.c.l.b16 %v499
      %v550 = vunpack.c.l.b16 %v500
      %v551 = vunpack.c.l.b16 %v501
      %v552 = vunpack.c.l.b16 %v502
      %v553 = vunpack.c.l.b16 %v503
      %v554 = vunpack.c.l.b16 %v504
      %v555 = vunpack.c.l.b16 %v505
      %v556 = vunpack.c.l.b16 %v506
      %v557 = vunpack.c.l.b16 %v507
      %v558 = vpack.c.b16 %v534, %v533
      %v559 = vpack.c.b16 %v536, %v535
      %v560 = vpack.c.b16 %v538, %v537
      %v561 = vpack.c.b16 %v540, %v539
      %v562 = vpack.c.b16 %v542, %v541
      %v563 = vpack.c.b16 %v544, %v543
      %v564 = vpack.c.b16 %v546, %v545
      %v565 = vpack.c.b16 %v548, %v547
      %v566 = vpack.c.b16 %v550, %v549
      %v567 = vpack.c.b16 %v552, %v551
      %v568 = vpack.c.b16 %v554, %v553
      %v569 = vpack.c.b16 %v556, %v555
      %v570 = vpack.c.b16 %v557, %v557
      %v572 = vsel %vm299, %v558, 0
      %v575 = vsel %vm299, %v559, 0
      %v578 = vsel %vm299, %v560, 0
      %v581 = vsel %vm299, %v561, 0
      %v584 = vsel %vm299, %v562, 0
      %v587 = vsel %vm299, %v563, 0
      %v590 = vsel %vm299, %v564, 0
      %v593 = vsel %vm299, %v565, 0
      %v596 = vsel %vm299, %v566, 0
      %v599 = vsel %vm299, %v567, 0
      %v602 = vsel %vm299, %v568, 0
      %v605 = vsel %vm299, %v569, 0
      %v608 = vsel %vm299, %v570, 0
      %610 = vmatprep.subr.bf16.mxu0 0
      %611 = vmatpush1.bf16.msra.mxu0 0
      %612 = vmatprep.subr.bf16.mxu0 0
      %613 = vmatpush1.bf16.msra.mxu0 0
      %614 = vmatprep.subr.bf16.mxu0 0
      %615 = vmatpush1.bf16.msra.mxu0 0
      %616 = vmatprep.subr.bf16.mxu0 0
      %617 = vmatpush1.bf16.msra.mxu0 %v344
      %618 = vmatprep.subr.bf16.mxu0 0
      %619 = vmatpush1.bf16.msra.mxu0 %v293
      %620 = vmatprep.subr.bf16.mxu0 0
      %621 = vmatpush1.bf16.msra.mxu0 %v292
      %622 = vmatprep.subr.bf16.mxu0 0
      %623 = vmatpush1.bf16.msra.mxu0 %v291
      %624 = vmatprep.subr.bf16.mxu0 0
      %625 = vmatpush1.bf16.msra.mxu0 %v290
      %626 = vmatprep.subr.bf16.mxu0 0
      %627 = vmatpush2.bf16.msra.mxu0 0
      %628 = vmatprep.subr.bf16.mxu0 0
      %629 = vmatpush2.bf16.msra.mxu0 0
      %630 = vmatprep.subr.bf16.mxu0 0
      %631 = vmatpush2.bf16.msra.mxu0 0
      %632 = vmatprep.subr.bf16.mxu0 0
      %633 = vmatpush2.bf16.msra.mxu0 0
      %634 = vmatprep.subr.bf16.mxu0 0
      %635 = vmatpush2.bf16.msra.mxu0 0
      %636 = vmatprep.subr.bf16.mxu0 0
      %637 = vmatpush2.bf16.msra.mxu0 0
      %638 = vmatprep.subr.bf16.mxu0 0
      %639 = vmatpush2.bf16.msra.mxu0 0
      %640 = vmatprep.subr.bf16.mxu0 0
      %641 = vmatpush2.bf16.msra.mxu0 0
      %642 = vmatprep.mubr.bf16.mxu0 0
      %643 = vmatmul.mubr.bf16.gmra.mxu0 %v572
      %v644 = vpop.f32.mrf.mxu0
      %v645 = vadd.f32 0.0, %v644
      %v646 = vpop.f32.mrf.mxu0
      %v647 = vpop.f32.mrf.mxu0
      %v648 = vadd.f32 0.0, %v647
      %v649 = vpop.f32.mrf.mxu0
      %650 = vmatprep.mubr.bf16.mxu0 0
      %651 = vmatmul.mubr.bf16.gmra.mxu0 %v575
      %v652 = vpop.f32.mrf.mxu0
      %v653 = vadd.f32 0.0, %v652
      %v654 = vpop.f32.mrf.mxu0
      %v655 = vpop.f32.mrf.mxu0
      %v656 = vadd.f32 0.0, %v655
      %v657 = vpop.f32.mrf.mxu0
      %658 = vmatprep.mubr.bf16.mxu0 0
      %659 = vmatmul.mubr.bf16.gmra.mxu0 %v578
      %v660 = vpop.f32.mrf.mxu0
      %v661 = vadd.f32 0.0, %v660
      %v662 = vpop.f32.mrf.mxu0
      %v663 = vpop.f32.mrf.mxu0
      %v664 = vadd.f32 0.0, %v663
      %v665 = vpop.f32.mrf.mxu0
      %666 = vmatprep.mubr.bf16.mxu0 0
      %667 = vmatmul.mubr.bf16.gmra.mxu0 %v581
      %v668 = vpop.f32.mrf.mxu0
      %v669 = vadd.f32 0.0, %v668
      %v670 = vpop.f32.mrf.mxu0
      %v671 = vpop.f32.mrf.mxu0
      %v672 = vadd.f32 0.0, %v671
      %v673 = vpop.f32.mrf.mxu0
      %674 = vmatprep.mubr.bf16.mxu0 0
      %675 = vmatmul.mubr.bf16.gmra.mxu0 %v584
      %v676 = vpop.f32.mrf.mxu0
      %v677 = vadd.f32 0.0, %v676
      %v678 = vpop.f32.mrf.mxu0
      %v679 = vpop.f32.mrf.mxu0
      %v680 = vadd.f32 0.0, %v679
      %v681 = vpop.f32.mrf.mxu0
      %682 = vmatprep.mubr.bf16.mxu0 0
      %683 = vmatmul.mubr.bf16.gmra.mxu0 %v587
      %v684 = vpop.f32.mrf.mxu0
      %v685 = vadd.f32 0.0, %v684
      %v686 = vpop.f32.mrf.mxu0
      %v687 = vpop.f32.mrf.mxu0
      %v688 = vadd.f32 0.0, %v687
      %v689 = vpop.f32.mrf.mxu0
      %690 = vmatprep.mubr.bf16.mxu0 0
      %691 = vmatmul.mubr.bf16.gmra.mxu0 %v590
      %v692 = vpop.f32.mrf.mxu0
      %v693 = vadd.f32 0.0, %v692
      %v694 = vpop.f32.mrf.mxu0
      %v695 = vpop.f32.mrf.mxu0
      %v696 = vadd.f32 0.0, %v695
      %v697 = vpop.f32.mrf.mxu0
      %698 = vmatprep.mubr.bf16.mxu0 0
      %699 = vmatmul.mubr.bf16.gmra.mxu0 %v593
      %v700 = vpop.f32.mrf.mxu0
      %v701 = vadd.f32 0.0, %v700
      %v702 = vpop.f32.mrf.mxu0
      %v703 = vpop.f32.mrf.mxu0
      %v704 = vadd.f32 0.0, %v703
      %v705 = vpop.f32.mrf.mxu0
      %706 = vmatprep.mubr.bf16.mxu0 0
      %707 = vmatmul.mubr.bf16.gmra.mxu0 %v596
      %v708 = vpop.f32.mrf.mxu0
      %v709 = vadd.f32 0.0, %v708
      %v710 = vpop.f32.mrf.mxu0
      %v711 = vpop.f32.mrf.mxu0
      %v712 = vadd.f32 0.0, %v711
      %v713 = vpop.f32.mrf.mxu0
      %714 = vmatprep.mubr.bf16.mxu0 0
      %715 = vmatmul.mubr.bf16.gmra.mxu0 %v599
      %v716 = vpop.f32.mrf.mxu0
      %v717 = vadd.f32 0.0, %v716
      %v718 = vpop.f32.mrf.mxu0
      %v719 = vpop.f32.mrf.mxu0
      %v720 = vadd.f32 0.0, %v719
      %v721 = vpop.f32.mrf.mxu0
      %722 = vmatprep.mubr.bf16.mxu0 0
      %723 = vmatmul.mubr.bf16.gmra.mxu0 %v602
      %v724 = vpop.f32.mrf.mxu0
      %v725 = vadd.f32 0.0, %v724
      %v726 = vpop.f32.mrf.mxu0
      %v727 = vpop.f32.mrf.mxu0
      %v728 = vadd.f32 0.0, %v727
      %v729 = vpop.f32.mrf.mxu0
      %730 = vmatprep.mubr.bf16.mxu0 0
      %731 = vmatmul.mubr.bf16.gmra.mxu0 %v605
      %v732 = vpop.f32.mrf.mxu0
      %v733 = vadd.f32 0.0, %v732
      %v734 = vpop.f32.mrf.mxu0
      %v735 = vpop.f32.mrf.mxu0
      %v736 = vadd.f32 0.0, %v735
      %v737 = vpop.f32.mrf.mxu0
      %738 = vmatprep.mubr.bf16.mxu0 0
      %739 = vmatmul.mubr.bf16.gmra.mxu0 %v608
      %v740 = vpop.f32.mrf.mxu0
      %v741 = vadd.f32 0.0, %v740
      %v742 = vpop.f32.mrf.mxu0
      %v743 = vpop.f32.mrf.mxu0
      %v744 = vpop.f32.mrf.mxu0
      %745 = vdwg.mxu0
      %v746 = vmax.f32 %v381, %v645
      %v747 = vmax.f32 %v384, %v648
      %v748 = vmax.f32 %v389, %v653
      %v749 = vmax.f32 %v392, %v656
      %v750 = vmax.f32 %v397, %v661
      %v751 = vmax.f32 %v400, %v664
      %v752 = vmax.f32 %v405, %v669
      %v753 = vmax.f32 %v408, %v672
      %v754 = vmax.f32 %v413, %v677
      %v755 = vmax.f32 %v416, %v680
      %v756 = vmax.f32 %v421, %v685
      %v757 = vmax.f32 %v424, %v688
      %v758 = vmax.f32 %v429, %v693
      %v759 = vmax.f32 %v432, %v696
      %v760 = vmax.f32 %v437, %v701
      %v761 = vmax.f32 %v440, %v704
      %v762 = vmax.f32 %v445, %v709
      %v763 = vmax.f32 %v448, %v712
      %v764 = vmax.f32 %v453, %v717
      %v765 = vmax.f32 %v456, %v720
      %v766 = vmax.f32 %v461, %v725
      %v767 = vmax.f32 %v464, %v728
      %v768 = vmax.f32 %v469, %v733
      %v769 = vmax.f32 %v472, %v736
      %v770 = vmax.f32 %v477, %v741
      %s771 = scalar_lea.vmem %s165, 200
      %v772 = vld [vmem:[%s771] sm:$0xf]
      %v773 = vld [vmem:[%s771 + $0x4] sm:$0xf]
      %v774 = vld [vmem:[%s771 + $0x8] sm:$0xf]
      %v775 = vld [vmem:[%s771 + $0xc] sm:$0xf]
      %v776 = vld [vmem:[%s771 + $0x10] sm:$0xf]
      %v777 = vld [vmem:[%s771 + $0x14] sm:$0xf]
      %v778 = vld [vmem:[%s771 + $0x18] sm:$0xf]
      %v779 = vld [vmem:[%s771 + $0x1c] sm:$0xf]
      %v780 = vld [vmem:[%s771 + $0x20] sm:$0xf]
      %v781 = vld [vmem:[%s771 + $0x24] sm:$0xf]
      %v782 = vld [vmem:[%s771 + $0x28] sm:$0xf]
      %v783 = vld [vmem:[%s771 + $0x2c] sm:$0xf]
      %v784 = vld [vmem:[%s771 + $0x30] sm:$0xf]
      %v785 = vld [vmem:[%s771 + $0x34] sm:$0xf]
      %v786 = vld [vmem:[%s771 + $0x38] sm:$0xf]
      %v787 = vld [vmem:[%s771 + $0x3c] sm:$0xf]
      %v788 = vld [vmem:[%s771 + $0x40] sm:$0xf]
      %v789 = vld [vmem:[%s771 + $0x44] sm:$0xf]
      %v790 = vld [vmem:[%s771 + $0x48] sm:$0xf]
      %v791 = vld [vmem:[%s771 + $0x4c] sm:$0xf]
      %v792 = vld [vmem:[%s771 + $0x50] sm:$0xf]
      %v793 = vld [vmem:[%s771 + $0x54] sm:$0xf]
      %v794 = vld [vmem:[%s771 + $0x58] sm:$0xf]
      %v795 = vld [vmem:[%s771 + $0x5c] sm:$0xf]
      %v796 = vld [vmem:[%s771 + $0x60] sm:$0x3]
      %v822 = vunpack.c.l.b16 %v772
      %v823 = vunpack.c.l.b16 %v773
      %v824 = vunpack.c.l.b16 %v774
      %v825 = vunpack.c.l.b16 %v775
      %v826 = vunpack.c.l.b16 %v776
      %v827 = vunpack.c.l.b16 %v777
      %v828 = vunpack.c.l.b16 %v778
      %v829 = vunpack.c.l.b16 %v779
      %v830 = vunpack.c.l.b16 %v780
      %v831 = vunpack.c.l.b16 %v781
      %v832 = vunpack.c.l.b16 %v782
      %v833 = vunpack.c.l.b16 %v783
      %v834 = vunpack.c.l.b16 %v784
      %v835 = vunpack.c.l.b16 %v785
      %v836 = vunpack.c.l.b16 %v786
      %v837 = vunpack.c.l.b16 %v787
      %v838 = vunpack.c.l.b16 %v788
      %v839 = vunpack.c.l.b16 %v789
      %v840 = vunpack.c.l.b16 %v790
      %v841 = vunpack.c.l.b16 %v791
      %v842 = vunpack.c.l.b16 %v792
      %v843 = vunpack.c.l.b16 %v793
      %v844 = vunpack.c.l.b16 %v794
      %v845 = vunpack.c.l.b16 %v795
      %v846 = vunpack.c.l.b16 %v796
      %v847 = vpack.c.b16 %v823, %v822
      %v848 = vpack.c.b16 %v825, %v824
      %v849 = vpack.c.b16 %v827, %v826
      %v850 = vpack.c.b16 %v829, %v828
      %v851 = vpack.c.b16 %v831, %v830
      %v852 = vpack.c.b16 %v833, %v832
      %v853 = vpack.c.b16 %v835, %v834
      %v854 = vpack.c.b16 %v837, %v836
      %v855 = vpack.c.b16 %v839, %v838
      %v856 = vpack.c.b16 %v841, %v840
      %v857 = vpack.c.b16 %v843, %v842
      %v858 = vpack.c.b16 %v845, %v844
      %v859 = vpack.c.b16 %v846, %v846
      %v861 = vsel %vm299, %v847, 0
      %v864 = vsel %vm299, %v848, 0
      %v867 = vsel %vm299, %v849, 0
      %v870 = vsel %vm299, %v850, 0
      %v873 = vsel %vm299, %v851, 0
      %v876 = vsel %vm299, %v852, 0
      %v879 = vsel %vm299, %v853, 0
      %v882 = vsel %vm299, %v854, 0
      %v885 = vsel %vm299, %v855, 0
      %v888 = vsel %vm299, %v856, 0
      %v891 = vsel %vm299, %v857, 0
      %v894 = vsel %vm299, %v858, 0
      %v897 = vsel %vm299, %v859, 0
      %899 = vmatprep.subr.bf16.mxu0 0
      %900 = vmatpush1.bf16.msra.mxu0 0
      %901 = vmatprep.subr.bf16.mxu0 0
      %902 = vmatpush1.bf16.msra.mxu0 0
      %903 = vmatprep.subr.bf16.mxu0 0
      %904 = vmatpush1.bf16.msra.mxu0 0
      %905 = vmatprep.subr.bf16.mxu0 0
      %906 = vmatpush1.bf16.msra.mxu0 %v344
      %907 = vmatprep.subr.bf16.mxu0 0
      %908 = vmatpush1.bf16.msra.mxu0 %v293
      %909 = vmatprep.subr.bf16.mxu0 0
      %910 = vmatpush1.bf16.msra.mxu0 %v292
      %911 = vmatprep.subr.bf16.mxu0 0
      %912 = vmatpush1.bf16.msra.mxu0 %v291
      %913 = vmatprep.subr.bf16.mxu0 0
      %914 = vmatpush1.bf16.msra.mxu0 %v290
      %915 = vmatprep.subr.bf16.mxu0 0
      %916 = vmatpush2.bf16.msra.mxu0 0
      %917 = vmatprep.subr.bf16.mxu0 0
      %918 = vmatpush2.bf16.msra.mxu0 0
      %919 = vmatprep.subr.bf16.mxu0 0
      %920 = vmatpush2.bf16.msra.mxu0 0
      %921 = vmatprep.subr.bf16.mxu0 0
      %922 = vmatpush2.bf16.msra.mxu0 0
      %923 = vmatprep.subr.bf16.mxu0 0
      %924 = vmatpush2.bf16.msra.mxu0 0
      %925 = vmatprep.subr.bf16.mxu0 0
      %926 = vmatpush2.bf16.msra.mxu0 0
      %927 = vmatprep.subr.bf16.mxu0 0
      %928 = vmatpush2.bf16.msra.mxu0 0
      %929 = vmatprep.subr.bf16.mxu0 0
      %930 = vmatpush2.bf16.msra.mxu0 0
      %931 = vmatprep.mubr.bf16.mxu0 0
      %932 = vmatmul.mubr.bf16.gmra.mxu0 %v861
      %v933 = vpop.f32.mrf.mxu0
      %v934 = vadd.f32 0.0, %v933
      %v935 = vpop.f32.mrf.mxu0
      %v936 = vpop.f32.mrf.mxu0
      %v937 = vadd.f32 0.0, %v936
      %v938 = vpop.f32.mrf.mxu0
      %939 = vmatprep.mubr.bf16.mxu0 0
      %940 = vmatmul.mubr.bf16.gmra.mxu0 %v864
      %v941 = vpop.f32.mrf.mxu0
      %v942 = vadd.f32 0.0, %v941
      %v943 = vpop.f32.mrf.mxu0
      %v944 = vpop.f32.mrf.mxu0
      %v945 = vadd.f32 0.0, %v944
      %v946 = vpop.f32.mrf.mxu0
      %947 = vmatprep.mubr.bf16.mxu0 0
      %948 = vmatmul.mubr.bf16.gmra.mxu0 %v867
      %v949 = vpop.f32.mrf.mxu0
      %v950 = vadd.f32 0.0, %v949
      %v951 = vpop.f32.mrf.mxu0
      %v952 = vpop.f32.mrf.mxu0
      %v953 = vadd.f32 0.0, %v952
      %v954 = vpop.f32.mrf.mxu0
      %955 = vmatprep.mubr.bf16.mxu0 0
      %956 = vmatmul.mubr.bf16.gmra.mxu0 %v870
      %v957 = vpop.f32.mrf.mxu0
      %v958 = vadd.f32 0.0, %v957
      %v959 = vpop.f32.mrf.mxu0
      %v960 = vpop.f32.mrf.mxu0
      %v961 = vadd.f32 0.0, %v960
      %v962 = vpop.f32.mrf.mxu0
      %963 = vmatprep.mubr.bf16.mxu0 0
      %964 = vmatmul.mubr.bf16.gmra.mxu0 %v873
      %v965 = vpop.f32.mrf.mxu0
      %v966 = vadd.f32 0.0, %v965
      %v967 = vpop.f32.mrf.mxu0
      %v968 = vpop.f32.mrf.mxu0
      %v969 = vadd.f32 0.0, %v968
      %v970 = vpop.f32.mrf.mxu0
      %971 = vmatprep.mubr.bf16.mxu0 0
      %972 = vmatmul.mubr.bf16.gmra.mxu0 %v876
      %v973 = vpop.f32.mrf.mxu0
      %v974 = vadd.f32 0.0, %v973
      %v975 = vpop.f32.mrf.mxu0
      %v976 = vpop.f32.mrf.mxu0
      %v977 = vadd.f32 0.0, %v976
      %v978 = vpop.f32.mrf.mxu0
      %979 = vmatprep.mubr.bf16.mxu0 0
      %980 = vmatmul.mubr.bf16.gmra.mxu0 %v879
      %v981 = vpop.f32.mrf.mxu0
      %v982 = vadd.f32 0.0, %v981
      %v983 = vpop.f32.mrf.mxu0
      %v984 = vpop.f32.mrf.mxu0
      %v985 = vadd.f32 0.0, %v984
      %v986 = vpop.f32.mrf.mxu0
      %987 = vmatprep.mubr.bf16.mxu0 0
      %988 = vmatmul.mubr.bf16.gmra.mxu0 %v882
      %v989 = vpop.f32.mrf.mxu0
      %v990 = vadd.f32 0.0, %v989
      %v991 = vpop.f32.mrf.mxu0
      %v992 = vpop.f32.mrf.mxu0
      %v993 = vadd.f32 0.0, %v992
      %v994 = vpop.f32.mrf.mxu0
      %995 = vmatprep.mubr.bf16.mxu0 0
      %996 = vmatmul.mubr.bf16.gmra.mxu0 %v885
      %v997 = vpop.f32.mrf.mxu0
      %v998 = vadd.f32 0.0, %v997
      %v999 = vpop.f32.mrf.mxu0
      %v1000 = vpop.f32.mrf.mxu0
      %v1001 = vadd.f32 0.0, %v1000
      %v1002 = vpop.f32.mrf.mxu0
      %1003 = vmatprep.mubr.bf16.mxu0 0
      %1004 = vmatmul.mubr.bf16.gmra.mxu0 %v888
      %v1005 = vpop.f32.mrf.mxu0
      %v1006 = vadd.f32 0.0, %v1005
      %v1007 = vpop.f32.mrf.mxu0
      %v1008 = vpop.f32.mrf.mxu0
      %v1009 = vadd.f32 0.0, %v1008
      %v1010 = vpop.f32.mrf.mxu0
      %1011 = vmatprep.mubr.bf16.mxu0 0
      %1012 = vmatmul.mubr.bf16.gmra.mxu0 %v891
      %v1013 = vpop.f32.mrf.mxu0
      %v1014 = vadd.f32 0.0, %v1013
      %v1015 = vpop.f32.mrf.mxu0
      %v1016 = vpop.f32.mrf.mxu0
      %v1017 = vadd.f32 0.0, %v1016
      %v1018 = vpop.f32.mrf.mxu0
      %1019 = vmatprep.mubr.bf16.mxu0 0
      %1020 = vmatmul.mubr.bf16.gmra.mxu0 %v894
      %v1021 = vpop.f32.mrf.mxu0
      %v1022 = vadd.f32 0.0, %v1021
      %v1023 = vpop.f32.mrf.mxu0
      %v1024 = vpop.f32.mrf.mxu0
      %v1025 = vadd.f32 0.0, %v1024
      %v1026 = vpop.f32.mrf.mxu0
      %1027 = vmatprep.mubr.bf16.mxu0 0
      %1028 = vmatmul.mubr.bf16.gmra.mxu0 %v897
      %v1029 = vpop.f32.mrf.mxu0
      %v1030 = vadd.f32 0.0, %v1029
      %v1031 = vpop.f32.mrf.mxu0
      %v1032 = vpop.f32.mrf.mxu0
      %v1033 = vpop.f32.mrf.mxu0
      %1034 = vdwg.mxu0
      %v1035 = vmax.f32 %v746, %v934
      %v1036 = vmax.f32 %v747, %v937
      %v1037 = vmax.f32 %v748, %v942
      %v1038 = vmax.f32 %v749, %v945
      %v1039 = vmax.f32 %v750, %v950
      %v1040 = vmax.f32 %v751, %v953
      %v1041 = vmax.f32 %v752, %v958
      %v1042 = vmax.f32 %v753, %v961
      %v1043 = vmax.f32 %v754, %v966
      %v1044 = vmax.f32 %v755, %v969
      %v1045 = vmax.f32 %v756, %v974
      %v1046 = vmax.f32 %v757, %v977
      %v1047 = vmax.f32 %v758, %v982
      %v1048 = vmax.f32 %v759, %v985
      %v1049 = vmax.f32 %v760, %v990
      %v1050 = vmax.f32 %v761, %v993
      %v1051 = vmax.f32 %v762, %v998
      %v1052 = vmax.f32 %v763, %v1001
      %v1053 = vmax.f32 %v764, %v1006
      %v1054 = vmax.f32 %v765, %v1009
      %v1055 = vmax.f32 %v766, %v1014
      %v1056 = vmax.f32 %v767, %v1017
      %v1057 = vmax.f32 %v768, %v1022
      %v1058 = vmax.f32 %v769, %v1025
      %v1059 = vmax.f32 %v770, %v1030
      %s1060 = scalar_lea.vmem %s165, 300
      %v1061 = vld [vmem:[%s1060] sm:$0xf]
      %v1062 = vld [vmem:[%s1060 + $0x4] sm:$0xf]
      %v1063 = vld [vmem:[%s1060 + $0x8] sm:$0xf]
      %v1064 = vld [vmem:[%s1060 + $0xc] sm:$0xf]
      %v1065 = vld [vmem:[%s1060 + $0x10] sm:$0xf]
      %v1066 = vld [vmem:[%s1060 + $0x14] sm:$0xf]
      %v1067 = vld [vmem:[%s1060 + $0x18] sm:$0xf]
      %v1068 = vld [vmem:[%s1060 + $0x1c] sm:$0xf]
      %v1069 = vld [vmem:[%s1060 + $0x20] sm:$0xf]
      %v1070 = vld [vmem:[%s1060 + $0x24] sm:$0xf]
      %v1071 = vld [vmem:[%s1060 + $0x28] sm:$0xf]
      %v1072 = vld [vmem:[%s1060 + $0x2c] sm:$0xf]
      %v1073 = vld [vmem:[%s1060 + $0x30] sm:$0xf]
      %v1074 = vld [vmem:[%s1060 + $0x34] sm:$0xf]
      %v1075 = vld [vmem:[%s1060 + $0x38] sm:$0xf]
      %v1076 = vld [vmem:[%s1060 + $0x3c] sm:$0xf]
      %v1077 = vld [vmem:[%s1060 + $0x40] sm:$0xf]
      %v1078 = vld [vmem:[%s1060 + $0x44] sm:$0xf]
      %v1079 = vld [vmem:[%s1060 + $0x48] sm:$0xf]
      %v1080 = vld [vmem:[%s1060 + $0x4c] sm:$0xf]
      %v1081 = vld [vmem:[%s1060 + $0x50] sm:$0xf]
      %v1082 = vld [vmem:[%s1060 + $0x54] sm:$0xf]
      %v1083 = vld [vmem:[%s1060 + $0x58] sm:$0xf]
      %v1084 = vld [vmem:[%s1060 + $0x5c] sm:$0xf]
      %v1085 = vld [vmem:[%s1060 + $0x60] sm:$0x3]
      %v1111 = vunpack.c.l.b16 %v1061
      %v1112 = vunpack.c.l.b16 %v1062
      %v1113 = vunpack.c.l.b16 %v1063
      %v1114 = vunpack.c.l.b16 %v1064
      %v1115 = vunpack.c.l.b16 %v1065
      %v1116 = vunpack.c.l.b16 %v1066
      %v1117 = vunpack.c.l.b16 %v1067
      %v1118 = vunpack.c.l.b16 %v1068
      %v1119 = vunpack.c.l.b16 %v1069
      %v1120 = vunpack.c.l.b16 %v1070
      %v1121 = vunpack.c.l.b16 %v1071
      %v1122 = vunpack.c.l.b16 %v1072
      %v1123 = vunpack.c.l.b16 %v1073
      %v1124 = vunpack.c.l.b16 %v1074
      %v1125 = vunpack.c.l.b16 %v1075
      %v1126 = vunpack.c.l.b16 %v1076
      %v1127 = vunpack.c.l.b16 %v1077
      %v1128 = vunpack.c.l.b16 %v1078
      %v1129 = vunpack.c.l.b16 %v1079
      %v1130 = vunpack.c.l.b16 %v1080
      %v1131 = vunpack.c.l.b16 %v1081
      %v1132 = vunpack.c.l.b16 %v1082
      %v1133 = vunpack.c.l.b16 %v1083
      %v1134 = vunpack.c.l.b16 %v1084
      %v1135 = vunpack.c.l.b16 %v1085
      %v1136 = vpack.c.b16 %v1112, %v1111
      %v1137 = vpack.c.b16 %v1114, %v1113
      %v1138 = vpack.c.b16 %v1116, %v1115
      %v1139 = vpack.c.b16 %v1118, %v1117
      %v1140 = vpack.c.b16 %v1120, %v1119
      %v1141 = vpack.c.b16 %v1122, %v1121
      %v1142 = vpack.c.b16 %v1124, %v1123
      %v1143 = vpack.c.b16 %v1126, %v1125
      %v1144 = vpack.c.b16 %v1128, %v1127
      %v1145 = vpack.c.b16 %v1130, %v1129
      %v1146 = vpack.c.b16 %v1132, %v1131
      %v1147 = vpack.c.b16 %v1134, %v1133
      %v1148 = vpack.c.b16 %v1135, %v1135
      %v1150 = vsel %vm299, %v1136, 0
      %v1153 = vsel %vm299, %v1137, 0
      %v1156 = vsel %vm299, %v1138, 0
      %v1159 = vsel %vm299, %v1139, 0
      %v1162 = vsel %vm299, %v1140, 0
      %v1165 = vsel %vm299, %v1141, 0
      %v1168 = vsel %vm299, %v1142, 0
      %v1171 = vsel %vm299, %v1143, 0
      %v1174 = vsel %vm299, %v1144, 0
      %v1177 = vsel %vm299, %v1145, 0
      %v1180 = vsel %vm299, %v1146, 0
      %v1183 = vsel %vm299, %v1147, 0
      %v1186 = vsel %vm299, %v1148, 0
      %1188 = vmatprep.subr.bf16.mxu0 0
      %1189 = vmatpush1.bf16.msra.mxu0 0
      %1190 = vmatprep.subr.bf16.mxu0 0
      %1191 = vmatpush1.bf16.msra.mxu0 0
      %1192 = vmatprep.subr.bf16.mxu0 0
      %1193 = vmatpush1.bf16.msra.mxu0 0
      %1194 = vmatprep.subr.bf16.mxu0 0
      %1195 = vmatpush1.bf16.msra.mxu0 %v344
      %1196 = vmatprep.subr.bf16.mxu0 0
      %1197 = vmatpush1.bf16.msra.mxu0 %v293
      %1198 = vmatprep.subr.bf16.mxu0 0
      %1199 = vmatpush1.bf16.msra.mxu0 %v292
      %1200 = vmatprep.subr.bf16.mxu0 0
      %1201 = vmatpush1.bf16.msra.mxu0 %v291
      %1202 = vmatprep.subr.bf16.mxu0 0
      %1203 = vmatpush1.bf16.msra.mxu0 %v290
      %1204 = vmatprep.subr.bf16.mxu0 0
      %1205 = vmatpush2.bf16.msra.mxu0 0
      %1206 = vmatprep.subr.bf16.mxu0 0
      %1207 = vmatpush2.bf16.msra.mxu0 0
      %1208 = vmatprep.subr.bf16.mxu0 0
      %1209 = vmatpush2.bf16.msra.mxu0 0
      %1210 = vmatprep.subr.bf16.mxu0 0
      %1211 = vmatpush2.bf16.msra.mxu0 0
      %1212 = vmatprep.subr.bf16.mxu0 0
      %1213 = vmatpush2.bf16.msra.mxu0 0
      %1214 = vmatprep.subr.bf16.mxu0 0
      %1215 = vmatpush2.bf16.msra.mxu0 0
      %1216 = vmatprep.subr.bf16.mxu0 0
      %1217 = vmatpush2.bf16.msra.mxu0 0
      %1218 = vmatprep.subr.bf16.mxu0 0
      %1219 = vmatpush2.bf16.msra.mxu0 0
      %1220 = vmatprep.mubr.bf16.mxu0 0
      %1221 = vmatmul.mubr.bf16.gmra.mxu0 %v1150
      %v1222 = vpop.f32.mrf.mxu0
      %v1223 = vadd.f32 0.0, %v1222
      %v1224 = vpop.f32.mrf.mxu0
      %v1225 = vpop.f32.mrf.mxu0
      %v1226 = vadd.f32 0.0, %v1225
      %v1227 = vpop.f32.mrf.mxu0
      %1228 = vmatprep.mubr.bf16.mxu0 0
      %1229 = vmatmul.mubr.bf16.gmra.mxu0 %v1153
      %v1230 = vpop.f32.mrf.mxu0
      %v1231 = vadd.f32 0.0, %v1230
      %v1232 = vpop.f32.mrf.mxu0
      %v1233 = vpop.f32.mrf.mxu0
      %v1234 = vadd.f32 0.0, %v1233
      %v1235 = vpop.f32.mrf.mxu0
      %1236 = vmatprep.mubr.bf16.mxu0 0
      %1237 = vmatmul.mubr.bf16.gmra.mxu0 %v1156
      %v1238 = vpop.f32.mrf.mxu0
      %v1239 = vadd.f32 0.0, %v1238
      %v1240 = vpop.f32.mrf.mxu0
      %v1241 = vpop.f32.mrf.mxu0
      %v1242 = vadd.f32 0.0, %v1241
      %v1243 = vpop.f32.mrf.mxu0
      %1244 = vmatprep.mubr.bf16.mxu0 0
      %1245 = vmatmul.mubr.bf16.gmra.mxu0 %v1159
      %v1246 = vpop.f32.mrf.mxu0
      %v1247 = vadd.f32 0.0, %v1246
      %v1248 = vpop.f32.mrf.mxu0
      %v1249 = vpop.f32.mrf.mxu0
      %v1250 = vadd.f32 0.0, %v1249
      %v1251 = vpop.f32.mrf.mxu0
      %1252 = vmatprep.mubr.bf16.mxu0 0
      %1253 = vmatmul.mubr.bf16.gmra.mxu0 %v1162
      %v1254 = vpop.f32.mrf.mxu0
      %v1255 = vadd.f32 0.0, %v1254
      %v1256 = vpop.f32.mrf.mxu0
      %v1257 = vpop.f32.mrf.mxu0
      %v1258 = vadd.f32 0.0, %v1257
      %v1259 = vpop.f32.mrf.mxu0
      %1260 = vmatprep.mubr.bf16.mxu0 0
      %1261 = vmatmul.mubr.bf16.gmra.mxu0 %v1165
      %v1262 = vpop.f32.mrf.mxu0
      %v1263 = vadd.f32 0.0, %v1262
      %v1264 = vpop.f32.mrf.mxu0
      %v1265 = vpop.f32.mrf.mxu0
      %v1266 = vadd.f32 0.0, %v1265
      %v1267 = vpop.f32.mrf.mxu0
      %1268 = vmatprep.mubr.bf16.mxu0 0
      %1269 = vmatmul.mubr.bf16.gmra.mxu0 %v1168
      %v1270 = vpop.f32.mrf.mxu0
      %v1271 = vadd.f32 0.0, %v1270
      %v1272 = vpop.f32.mrf.mxu0
      %v1273 = vpop.f32.mrf.mxu0
      %v1274 = vadd.f32 0.0, %v1273
      %v1275 = vpop.f32.mrf.mxu0
      %1276 = vmatprep.mubr.bf16.mxu0 0
      %1277 = vmatmul.mubr.bf16.gmra.mxu0 %v1171
      %v1278 = vpop.f32.mrf.mxu0
      %v1279 = vadd.f32 0.0, %v1278
      %v1280 = vpop.f32.mrf.mxu0
      %v1281 = vpop.f32.mrf.mxu0
      %v1282 = vadd.f32 0.0, %v1281
      %v1283 = vpop.f32.mrf.mxu0
      %1284 = vmatprep.mubr.bf16.mxu0 0
      %1285 = vmatmul.mubr.bf16.gmra.mxu0 %v1174
      %v1286 = vpop.f32.mrf.mxu0
      %v1287 = vadd.f32 0.0, %v1286
      %v1288 = vpop.f32.mrf.mxu0
      %v1289 = vpop.f32.mrf.mxu0
      %v1290 = vadd.f32 0.0, %v1289
      %v1291 = vpop.f32.mrf.mxu0
      %1292 = vmatprep.mubr.bf16.mxu0 0
      %1293 = vmatmul.mubr.bf16.gmra.mxu0 %v1177
      %v1294 = vpop.f32.mrf.mxu0
      %v1295 = vadd.f32 0.0, %v1294
      %v1296 = vpop.f32.mrf.mxu0
      %v1297 = vpop.f32.mrf.mxu0
      %v1298 = vadd.f32 0.0, %v1297
      %v1299 = vpop.f32.mrf.mxu0
      %1300 = vmatprep.mubr.bf16.mxu0 0
      %1301 = vmatmul.mubr.bf16.gmra.mxu0 %v1180
      %v1302 = vpop.f32.mrf.mxu0
      %v1303 = vadd.f32 0.0, %v1302
      %v1304 = vpop.f32.mrf.mxu0
      %v1305 = vpop.f32.mrf.mxu0
      %v1306 = vadd.f32 0.0, %v1305
      %v1307 = vpop.f32.mrf.mxu0
      %1308 = vmatprep.mubr.bf16.mxu0 0
      %1309 = vmatmul.mubr.bf16.gmra.mxu0 %v1183
      %v1310 = vpop.f32.mrf.mxu0
      %v1311 = vadd.f32 0.0, %v1310
      %v1312 = vpop.f32.mrf.mxu0
      %v1313 = vpop.f32.mrf.mxu0
      %v1314 = vadd.f32 0.0, %v1313
      %v1315 = vpop.f32.mrf.mxu0
      %1316 = vmatprep.mubr.bf16.mxu0 0
      %1317 = vmatmul.mubr.bf16.gmra.mxu0 %v1186
      %v1318 = vpop.f32.mrf.mxu0
      %v1319 = vadd.f32 0.0, %v1318
      %v1320 = vpop.f32.mrf.mxu0
      %v1321 = vpop.f32.mrf.mxu0
      %v1322 = vpop.f32.mrf.mxu0
      %1323 = vdwg.mxu0
      %v1324 = vmax.f32 %v1035, %v1223
      %v1325 = vmax.f32 %v1036, %v1226
      %v1326 = vmax.f32 %v1037, %v1231
      %v1327 = vmax.f32 %v1038, %v1234
      %v1328 = vmax.f32 %v1039, %v1239
      %v1329 = vmax.f32 %v1040, %v1242
      %v1330 = vmax.f32 %v1041, %v1247
      %v1331 = vmax.f32 %v1042, %v1250
      %v1332 = vmax.f32 %v1043, %v1255
      %v1333 = vmax.f32 %v1044, %v1258
      %v1334 = vmax.f32 %v1045, %v1263
      %v1335 = vmax.f32 %v1046, %v1266
      %v1336 = vmax.f32 %v1047, %v1271
      %v1337 = vmax.f32 %v1048, %v1274
      %v1338 = vmax.f32 %v1049, %v1279
      %v1339 = vmax.f32 %v1050, %v1282
      %v1340 = vmax.f32 %v1051, %v1287
      %v1341 = vmax.f32 %v1052, %v1290
      %v1342 = vmax.f32 %v1053, %v1295
      %v1343 = vmax.f32 %v1054, %v1298
      %v1344 = vmax.f32 %v1055, %v1303
      %v1345 = vmax.f32 %v1056, %v1306
      %v1346 = vmax.f32 %v1057, %v1311
      %v1347 = vmax.f32 %v1058, %v1314
      %v1348 = vmax.f32 %v1059, %v1319
      %v1349 = vld [vmem:[%s2] sm:$0x1]
      %v1351 = vlaneseq
      %v1352 = vshrl.u32 %v1351, 7
      %v1353 = vsub.s32 0, %v1352
      %v1354 = vrot.slane %v1349, %v1353
      %v1356 = vadd.f32 %v1324, %v1354
      %v1357 = vadd.f32 %v1325, %v1354
      %v1358 = vadd.f32 %v1326, %v1354
      %v1359 = vadd.f32 %v1327, %v1354
      %v1360 = vadd.f32 %v1328, %v1354
      %v1361 = vadd.f32 %v1329, %v1354
      %v1362 = vadd.f32 %v1330, %v1354
      %v1363 = vadd.f32 %v1331, %v1354
      %v1364 = vadd.f32 %v1332, %v1354
      %v1365 = vadd.f32 %v1333, %v1354
      %v1366 = vadd.f32 %v1334, %v1354
      %v1367 = vadd.f32 %v1335, %v1354
      %v1368 = vadd.f32 %v1336, %v1354
      %v1369 = vadd.f32 %v1337, %v1354
      %v1370 = vadd.f32 %v1338, %v1354
      %v1371 = vadd.f32 %v1339, %v1354
      %v1372 = vadd.f32 %v1340, %v1354
      %v1373 = vadd.f32 %v1341, %v1354
      %v1374 = vadd.f32 %v1342, %v1354
      %v1375 = vadd.f32 %v1343, %v1354
      %v1376 = vadd.f32 %v1344, %v1354
      %v1377 = vadd.f32 %v1345, %v1354
      %v1378 = vadd.f32 %v1346, %v1354
      %v1379 = vadd.f32 %v1347, %v1354
      %v1380 = vadd.f32 %v1348, %v1354
      %v1381 = vmax.f32 %v1356, 0.0
      %v1382 = vmax.f32 %v1357, 0.0
      %v1383 = vmax.f32 %v1358, 0.0
      %v1384 = vmax.f32 %v1359, 0.0
      %v1385 = vmax.f32 %v1360, 0.0
      %v1386 = vmax.f32 %v1361, 0.0
      %v1387 = vmax.f32 %v1362, 0.0
      %v1388 = vmax.f32 %v1363, 0.0
      %v1389 = vmax.f32 %v1364, 0.0
      %v1390 = vmax.f32 %v1365, 0.0
      %v1391 = vmax.f32 %v1366, 0.0
      %v1392 = vmax.f32 %v1367, 0.0
      %v1393 = vmax.f32 %v1368, 0.0
      %v1394 = vmax.f32 %v1369, 0.0
      %v1395 = vmax.f32 %v1370, 0.0
      %v1396 = vmax.f32 %v1371, 0.0
      %v1397 = vmax.f32 %v1372, 0.0
      %v1398 = vmax.f32 %v1373, 0.0
      %v1399 = vmax.f32 %v1374, 0.0
      %v1400 = vmax.f32 %v1375, 0.0
      %v1401 = vmax.f32 %v1376, 0.0
      %v1402 = vmax.f32 %v1377, 0.0
      %v1403 = vmax.f32 %v1378, 0.0
      %v1404 = vmax.f32 %v1379, 0.0
      %v1405 = vmax.f32 %v1380, 0.0
      %v1406 = vpack.c.bf16 %v1382, %v1381
      %v1407 = vpack.c.bf16 %v1384, %v1383
      %v1408 = vpack.c.bf16 %v1386, %v1385
      %v1409 = vpack.c.bf16 %v1388, %v1387
      %v1410 = vpack.c.bf16 %v1390, %v1389
      %v1411 = vpack.c.bf16 %v1392, %v1391
      %v1412 = vpack.c.bf16 %v1394, %v1393
      %v1413 = vpack.c.bf16 %v1396, %v1395
      %v1414 = vpack.c.bf16 %v1398, %v1397
      %v1415 = vpack.c.bf16 %v1400, %v1399
      %v1416 = vpack.c.bf16 %v1402, %v1401
      %v1417 = vpack.c.bf16 %v1404, %v1403
      %v1418 = vpack.c.bf16 %v1405, %v1405
      %v1432 = vunpack.c.l.b16 %v1406
      %v1433 = vunpack.c.h.b16 %v1406
      %v1434 = vunpack.c.l.b16 %v1407
      %v1435 = vunpack.c.h.b16 %v1407
      %v1436 = vunpack.c.l.b16 %v1408
      %v1437 = vunpack.c.h.b16 %v1408
      %v1438 = vunpack.c.l.b16 %v1409
      %v1439 = vunpack.c.h.b16 %v1409
      %v1440 = vunpack.c.l.b16 %v1410
      %v1441 = vunpack.c.h.b16 %v1410
      %v1442 = vunpack.c.l.b16 %v1411
      %v1443 = vunpack.c.h.b16 %v1411
      %v1444 = vunpack.c.l.b16 %v1412
      %v1445 = vunpack.c.h.b16 %v1412
      %v1446 = vunpack.c.l.b16 %v1413
      %v1447 = vunpack.c.h.b16 %v1413
      %v1448 = vunpack.c.l.b16 %v1414
      %v1449 = vunpack.c.h.b16 %v1414
      %v1450 = vunpack.c.l.b16 %v1415
      %v1451 = vunpack.c.h.b16 %v1415
      %v1452 = vunpack.c.l.b16 %v1416
      %v1453 = vunpack.c.h.b16 %v1416
      %v1454 = vunpack.c.l.b16 %v1417
      %v1455 = vunpack.c.h.b16 %v1417
      %v1456 = vunpack.c.l.b16 %v1418
      %v1457 = vpack.c.b16 %v1432, %v1432
      %v1458 = vpack.c.b16 %v1433, %v1433
      %v1459 = vpack.c.b16 %v1434, %v1434
      %v1460 = vpack.c.b16 %v1435, %v1435
      %v1461 = vpack.c.b16 %v1436, %v1436
      %v1462 = vpack.c.b16 %v1437, %v1437
      %v1463 = vpack.c.b16 %v1438, %v1438
      %v1464 = vpack.c.b16 %v1439, %v1439
      %v1465 = vpack.c.b16 %v1440, %v1440
      %v1466 = vpack.c.b16 %v1441, %v1441
      %v1467 = vpack.c.b16 %v1442, %v1442
      %v1468 = vpack.c.b16 %v1443, %v1443
      %v1469 = vpack.c.b16 %v1444, %v1444
      %v1470 = vpack.c.b16 %v1445, %v1445
      %v1471 = vpack.c.b16 %v1446, %v1446
      %v1472 = vpack.c.b16 %v1447, %v1447
      %v1473 = vpack.c.b16 %v1448, %v1448
      %v1474 = vpack.c.b16 %v1449, %v1449
      %v1475 = vpack.c.b16 %v1450, %v1450
      %v1476 = vpack.c.b16 %v1451, %v1451
      %v1477 = vpack.c.b16 %v1452, %v1452
      %v1478 = vpack.c.b16 %v1453, %v1453
      %v1479 = vpack.c.b16 %v1454, %v1454
      %v1480 = vpack.c.b16 %v1455, %v1455
      %v1481 = vpack.c.b16 %v1456, %v1456
      %1507 = vst [vmem:[%s170] sm:$0xf] %v1457
      %1508 = vst [vmem:[%s170 + $0x4] sm:$0xf] %v1458
      %1509 = vst [vmem:[%s170 + $0x8] sm:$0xf] %v1459
      %1510 = vst [vmem:[%s170 + $0xc] sm:$0xf] %v1460
      %1511 = vst [vmem:[%s170 + $0x10] sm:$0xf] %v1461
      %1512 = vst [vmem:[%s170 + $0x14] sm:$0xf] %v1462
      %1513 = vst [vmem:[%s170 + $0x18] sm:$0xf] %v1463
      %1514 = vst [vmem:[%s170 + $0x1c] sm:$0xf] %v1464
      %1515 = vst [vmem:[%s170 + $0x20] sm:$0xf] %v1465
      %1516 = vst [vmem:[%s170 + $0x24] sm:$0xf] %v1466
      %1517 = vst [vmem:[%s170 + $0x28] sm:$0xf] %v1467
      %1518 = vst [vmem:[%s170 + $0x2c] sm:$0xf] %v1468
      %1519 = vst [vmem:[%s170 + $0x30] sm:$0xf] %v1469
      %1520 = vst [vmem:[%s170 + $0x34] sm:$0xf] %v1470
      %1521 = vst [vmem:[%s170 + $0x38] sm:$0xf] %v1471
      %1522 = vst [vmem:[%s170 + $0x3c] sm:$0xf] %v1472
      %1523 = vst [vmem:[%s170 + $0x40] sm:$0xf] %v1473
      %1524 = vst [vmem:[%s170 + $0x44] sm:$0xf] %v1474
      %1525 = vst [vmem:[%s170 + $0x48] sm:$0xf] %v1475
      %1526 = vst [vmem:[%s170 + $0x4c] sm:$0xf] %v1476
      %1527 = vst [vmem:[%s170 + $0x50] sm:$0xf] %v1477
      %1528 = vst [vmem:[%s170 + $0x54] sm:$0xf] %v1478
      %1529 = vst [vmem:[%s170 + $0x58] sm:$0xf] %v1479
      %1530 = vst [vmem:[%s170 + $0x5c] sm:$0xf] %v1480
      %1531 = vst [vmem:[%s170 + $0x60] sm:$0x3] %v1481
      %p1532 = scmp.lt.s32.totalorder %s14, 1
      %s1533 = scalar_select %p1532, %s14, 1
      %s1534 = smul.addr %s1533, 25
      %s1535 = smul.addr %s1534, 4
      %s1536 = scalar_lea.vmem %s3, %s1535
      // Predicated region
      $region33: #{net_forward.3} parent=31 // pred_check
        %p1537 = pneg %p100
      $region34: #{net_forward.3} parent=31 // pred_check_branch
        %1539 = sbr.rel (%p1537) target = $region36
      $region35: #{net_forward.3} parent=31 // pred_region
        _
      $region36: #{net_forward.3} parent=31 // pred_fallthru
        _
    $region32: #{net_forward.3} parent=5 // pred_fallthru
      _
    %p1540 = scmp.le.s32.totalorder 2, %s9
    // Predicated region
    $region37: #{net_forward.3} parent=5 // pred_check
      %p1541 = pneg %p1540
    $region38: #{net_forward.3} parent=5 // pred_check_branch
      %1543 = sbr.rel (%p1541) target = $region40
    $region39: #{net_forward.3} parent=5 // pred_region
      %s1544 = ssub.s32 %s9, 2
      // Predicated region
      $region41: #{net_forward.3} parent=39 // pred_check
        %p1545 = pneg %p106
      $region42: #{net_forward.3} parent=39 // pred_check_branch
        %1547 = sbr.rel (%p1545) target = $region44
      $region43: #{net_forward.3} parent=39 // pred_region
        %p1548 = scmp.lt.s32.totalorder %s15, 1
        %s1549 = scalar_select %p1548, %s15, 1
        %s1550 = smul.addr %s1549, 25
        %s1551 = smul.addr %s1550, 4
        %s1552 = scalar_lea.vmem %s3, %s1551
      $region44: #{net_forward.3} parent=39 // pred_fallthru
        _
    $region40: #{net_forward.3} parent=5 // pred_fallthru
      _
  $region6: #{net_forward.3} parent=0 // loop_footer
    %s13 = sadd.s32 1, %s9
  $region7: #{net_forward.3} parent=0 // loop_footer_branch
    %8 = sbr.rel target = $region3
  $region8: #{net_forward.3} parent=0 // loop_exit
    _

// kernel: net_forward.4
$region0: #{net_forward.4}
  #allocation0 [shape = 'u32[]', space=smem, size = 0x4, offset = 0x4, fixed_abs, tag = 'smem constant byte address 0x4 - core index']
  #allocation1 [shape = 'u32[144,128]{1,0:T(1,128)}', space=vmem, size = 0x12000, scoped, tag = 'internal scratch']
  %s0 = inlined_call_operand.vmem [shape: bf16[2,4,25,150], index: 0, kind: input, shape index: {}]
  %s1 = inlined_call_operand.vmem [shape: bf16[150,128], index: 1, kind: input, shape index: {}]
  %s2 = inlined_call_operand.vmem [shape: f32[1,128], index: 2, kind: input, shape index: {}]
  %s3 = inlined_call_operand.vmem [shape: bf16[2,25,128], index: 3, kind: output, shape index: {}]
  %s4 = sld [smem:[#allocation0]]
  $region45: #{net_forward.4} parent=0
    _
  %s6 = ssub.s32 1, %s4
  %s7 = scalar_select 0, %s6, %s4
  loop: start=0, step=1, limit=4
  $region2: #{net_forward.4} parent=0 // loop_pre_header
    _
  $region3: #{net_forward.4} parent=0 // loop_header
    %s9 = sphi 0, %s13
    %p10 = scmp.ge.s32.totalorder %s9, 4
    %s19 = sphi 0, %s21
    %s22 = sphi 0, %s19
    %s23 = sphi 0, %s22
    %s39 = sphi 0, %s23
    %s43 = sphi 0, %s43
    %s45 = sphi 0, %s43
    %s46 = sphi 0, %s45
    %s60 = sphi 0, %s46
    %s64 = sphi 0, %s64
    %s66 = sphi 0, %s64
    %s67 = sphi 0, %s66
    %s81 = sphi 0, %s67
    %s87 = sphi 0, %s89
    %s90 = sphi 0, %s87
    %s91 = sphi 0, %s90
    %s107 = sphi 0, %s91
  $region4: #{net_forward.4} parent=0 // loop_header_branch
    %12 = sbr.rel (%p10) target = $region8
  $region5: #{net_forward.4} parent=0 // loop_body
    %s14 = ssub.s32 %s9, 1
    %s15 = ssub.s32 %s9, 2
    %s16 = sadd.s32 %s9, 1
    %s17 = ssub.s32 %s9, %s16
    %p18 = scmp.eq.s32.totalorder %s17, 0
    %s20 = sadd.s32 %s19, 1
    %s21 = scalar_select %p18, %s19, %s20
    %p24 = pneg %p18
    %p25 = scmp.eq.s32.totalorder %s9, 1
    %p26 = por %p24, %p25
    %p27 = scmp.ne.s32.totalorder %s19, %s22
    %p28 = scmp.eq.s32.totalorder %s9, 0
    %p29 = por %p27, %p28
    %p30 = scmp.ne.s32.totalorder %s19, %s22
    %p31 = scmp.eq.s32.totalorder %s14, 1
    %p32 = por %p30, %p31
    %p33 = scmp.ne.s32.totalorder %s22, %s23
    %p34 = scmp.eq.s32.totalorder %s14, 0
    %p35 = por %p33, %p34
    %p36 = scmp.ne.s32.totalorder %s22, %s23
    %p37 = scmp.eq.s32.totalorder %s15, 1
    %p38 = por %p36, %p37
    %p40 = scmp.ne.s32.totalorder %s23, %s39
    %p41 = scmp.eq.s32.totalorder %s15, 0
    %p42 = por %p40, %p41
    %s44 = sadd.s32 %s43, 1
    %p47 = scmp.eq.s32.totalorder %s9, 1
    %p48 = scmp.ne.s32.totalorder %s43, %s45
    %p49 = scmp.eq.s32.totalorder %s9, 0
    %p50 = por %p48, %p49
    %p51 = scmp.ne.s32.totalorder %s43, %s45
    %p52 = scmp.eq.s32.totalorder %s14, 1
    %p53 = por %p51, %p52
    %p54 = scmp.ne.s32.totalorder %s45, %s46
    %p55 = scmp.eq.s32.totalorder %s14, 0
    %p56 = por %p54, %p55
    %p57 = scmp.ne.s32.totalorder %s45, %s46
    %p58 = scmp.eq.s32.totalorder %s15, 1
    %p59 = por %p57, %p58
    %p61 = scmp.ne.s32.totalorder %s46, %s60
    %p62 = scmp.eq.s32.totalorder %s15, 0
    %p63 = por %p61, %p62
    %s65 = sadd.s32 %s64, 1
    %p68 = scmp.eq.s32.totalorder %s9, 1
    %p69 = scmp.ne.s32.totalorder %s64, %s66
    %p70 = scmp.eq.s32.totalorder %s9, 0
    %p71 = por %p69, %p70
    %p72 = scmp.ne.s32.totalorder %s64, %s66
    %p73 = scmp.eq.s32.totalorder %s14, 1
    %p74 = por %p72, %p73
    %p75 = scmp.ne.s32.totalorder %s66, %s67
    %p76 = scmp.eq.s32.totalorder %s14, 0
    %p77 = por %p75, %p76
    %p78 = scmp.ne.s32.totalorder %s66, %s67
    %p79 = scmp.eq.s32.totalorder %s15, 1
    %p80 = por %p78, %p79
    %p82 = scmp.ne.s32.totalorder %s67, %s81
    %p83 = scmp.eq.s32.totalorder %s15, 0
    %p84 = por %p82, %p83
    %s85 = ssub.s32 %s9, %s16
    %p86 = scmp.eq.s32.totalorder %s85, 0
    %s88 = sadd.s32 %s87, 1
    %s89 = scalar_select %p86, %s87, %s88
    %p92 = pneg %p86
    %p93 = scmp.eq.s32.totalorder %s9, 1
    %p94 = por %p92, %p93
    %p95 = scmp.ne.s32.totalorder %s87, %s90
    %p96 = scmp.eq.s32.totalorder %s9, 0
    %p97 = por %p95, %p96
    %p98 = scmp.ne.s32.totalorder %s87, %s90
    %p99 = scmp.eq.s32.totalorder %s14, 1
    %p100 = por %p98, %p99
    %p101 = scmp.ne.s32.totalorder %s90, %s91
    %p102 = scmp.eq.s32.totalorder %s14, 0
    %p103 = por %p101, %p102
    %p104 = scmp.ne.s32.totalorder %s90, %s91
    %p105 = scmp.eq.s32.totalorder %s15, 1
    %p106 = por %p104, %p105
    %p108 = scmp.ne.s32.totalorder %s91, %s107
    %p109 = scmp.eq.s32.totalorder %s15, 0
    %p110 = por %p108, %p109
    %p111 = scmp.le.s32.totalorder 1, %s9
    %p112 = scmp.lt.s32.totalorder %s9, 3
    %p113 = pnand %p111, %p112
    %p114 = pneg %p113
    // Predicated region
    $region9: #{net_forward.4} parent=5 // pred_check
      _
    $region10: #{net_forward.4} parent=5 // pred_check_branch
      %116 = sbr.rel (%p113) target = $region12
    $region11: #{net_forward.4} parent=5 // pred_region
      %s117 = ssub.s32 %s9, 1
      // Predicated region
      $region13: #{net_forward.4} parent=11 // pred_check
        %p118 = pneg %p56
      $region14: #{net_forward.4} parent=11 // pred_check_branch
        %120 = sbr.rel (%p118) target = $region16
      $region15: #{net_forward.4} parent=11 // pred_region
        _
      $region16: #{net_forward.4} parent=11 // pred_fallthru
        _
      // Predicated region
      $region17: #{net_forward.4} parent=11 // pred_check
        %p121 = pneg %p77
      $region18: #{net_forward.4} parent=11 // pred_check_branch
        %123 = sbr.rel (%p121) target = $region20
      $region19: #{net_forward.4} parent=11 // pred_region
        _
      $region20: #{net_forward.4} parent=11 // pred_fallthru
        _
    $region12: #{net_forward.4} parent=5 // pred_fallthru
      _
    %p124 = scmp.lt.s32.totalorder %s9, 2
    // Predicated region
    $region21: #{net_forward.4} parent=5 // pred_check
      %p125 = pneg %p124
    $region22: #{net_forward.4} parent=5 // pred_check_branch
      %127 = sbr.rel (%p125) target = $region24
    $region23: #{net_forward.4} parent=5 // pred_region
      // Predicated region
      $region25: #{net_forward.4} parent=23 // pred_check
        %p128 = pneg %p29
      $region26: #{net_forward.4} parent=23 // pred_check_branch
        %130 = sbr.rel (%p128) target = $region28
      $region27: #{net_forward.4} parent=23 // pred_region
        %p131 = scmp.lt.s32.totalorder %s9, 1
        %s132 = scalar_select %p131, %s9, 1
        %s133 = smul.addr %s132, 32
        %s134 = smul.addr %s133, 4
        %s135 = scalar_lea.vmem %s0, %s134
      $region28: #{net_forward.4} parent=23 // pred_fallthru
        _
    $region24: #{net_forward.4} parent=5 // pred_fallthru
      _
    %p136 = scmp.le.s32.totalorder 1, %s9
    %p137 = scmp.lt.s32.totalorder %s9, 3
    %p138 = pnand %p136, %p137
    %p139 = pneg %p138
    // Predicated region
    $region29: #{net_forward.4} parent=5 // pred_check
      _
    $region30: #{net_forward.4} parent=5 // pred_check_branch
      %141 = sbr.rel (%p138) target = $region32
    $region31: #{net_forward.4} parent=5 // pred_region
      %s142 = ssub.s32 %s9, 1
      %p143 = scmp.lt.s32.totalorder %s14, 1
      %s144 = scalar_select %p143, %s14, 1
      %s145 = smul.addr %s144, 32
      %s146 = smul.addr %s145, 4
      %s147 = scalar_lea.vmem %s0, %s146
      %p148 = pneg %p35
      %p149 = pneg %p32
      %p150 = pneg %p56
      %p151 = pneg %p53
      %p152 = pneg %p77
      %p153 = pneg %p74
      %p154 = pneg %p103
      %p155 = pneg %p100
      %p156 = scmp.lt.s32.totalorder %s14, 1
      %s157 = scalar_select %p156, %s14, 1
      %s158 = smul.addr %s157, 4
      %s159 = smul.addr %s158, 4
      %s160 = scalar_lea.vmem %s3, %s159
      %p161 = scmp.lt.s32.totalorder %s14, 1
      %s162 = scalar_select %p161, %s14, 1
      %s163 = smul.addr %s162, 32
      %s164 = smul.addr %s163, 4
      %s165 = scalar_lea.vmem %s0, %s164
      %p166 = scmp.lt.s32.totalorder %s14, 1
      %s167 = scalar_select %p166, %s14, 1
      %s168 = smul.addr %s167, 4
      %s169 = smul.addr %s168, 4
      %s170 = scalar_lea.vmem %s3, %s169
      %v172 = vld [vmem:[%s1] sm:$0xf]
      %v173 = vld [vmem:[%s1 + $0x4] sm:$0xf]
      %v174 = vld [vmem:[%s1 + $0x8] sm:$0xf]
      %v175 = vld [vmem:[%s1 + $0xc] sm:$0xf]
      %v176 = vld [vmem:[%s1 + $0x10] sm:$0xf]
      %v177 = vld [vmem:[%s1 + $0x14] sm:$0xf]
      %v178 = vld [vmem:[%s1 + $0x18] sm:$0xf]
      %v179 = vld [vmem:[%s1 + $0x1c] sm:$0xf]
      %v180 = vld [vmem:[%s1 + $0x20] sm:$0xf]
      %v181 = vld [vmem:[%s1 + $0x24] sm:$0xf]
      %v182 = vld [vmem:[%s1 + $0x28] sm:$0xf]
      %v183 = vld [vmem:[%s1 + $0x2c] sm:$0xf]
      %v184 = vld [vmem:[%s1 + $0x30] sm:$0xf]
      %v185 = vld [vmem:[%s1 + $0x34] sm:$0xf]
      %v186 = vld [vmem:[%s1 + $0x38] sm:$0xf]
      %v187 = vld [vmem:[%s1 + $0x3c] sm:$0xf]
      %v188 = vld [vmem:[%s1 + $0x40] sm:$0xf]
      %v189 = vld [vmem:[%s1 + $0x44] sm:$0xf]
      %v190 = vld [vmem:[%s1 + $0x48] sm:$0x7]
      %v191 = vld [vmem:[%s165] sm:$0xff]
      %v192 = vld [vmem:[%s165 + $0x8] sm:$0xff]
      %v193 = vld [vmem:[%s165 + $0x10] sm:$0xff]
      %v194 = vld [vmem:[%s165 + $0x18] sm:$0x11]
      %v199 = vunpack.c.l.b16 %v191
      %v200 = vunpack.c.h.b16 %v191
      %v201 = vunpack.c.l.b16 %v192
      %v202 = vunpack.c.h.b16 %v192
      %v203 = vunpack.c.l.b16 %v193
      %v204 = vunpack.c.h.b16 %v193
      %v205 = vunpack.c.l.b16 %v194
      %v206 = vunpack.c.h.b16 %v194
      %v207 = vpack.c.b16 %v201, %v199
      %v208 = vpack.c.b16 %v202, %v200
      %v209 = vpack.c.b16 %v205, %v203
      %v210 = vpack.c.b16 %v206, %v204
      %v232 = vunpack.c.l.b16 %v172
      %v233 = vunpack.c.l.b16 %v173
      %v234 = vunpack.c.l.b16 %v174
      %v235 = vunpack.c.l.b16 %v175
      %v236 = vunpack.c.l.b16 %v176
      %v237 = vunpack.c.l.b16 %v177
      %v238 = vunpack.c.l.b16 %v178
      %v239 = vunpack.c.l.b16 %v179
      %v240 = vunpack.c.l.b16 %v180
      %v241 = vunpack.c.l.b16 %v181
      %v242 = vunpack.c.l.b16 %v182
      %v243 = vunpack.c.l.b16 %v183
      %v244 = vunpack.c.l.b16 %v184
      %v245 = vunpack.c.l.b16 %v185
      %v246 = vunpack.c.l.b16 %v186
      %v247 = vunpack.c.l.b16 %v187
      %v248 = vunpack.c.l.b16 %v188
      %v249 = vunpack.c.l.b16 %v189
      %v250 = vunpack.c.l.b16 %v190
      %v251 = vpack.c.b16 %v233, %v232
      %v252 = vpack.c.b16 %v235, %v234
      %v253 = vpack.c.b16 %v237, %v236
      %v254 = vpack.c.b16 %v239, %v238
      %v255 = vpack.c.b16 %v241, %v240
      %v256 = vpack.c.b16 %v243, %v242
      %v257 = vpack.c.b16 %v245, %v244
      %v258 = vpack.c.b16 %v247, %v246
      %v259 = vpack.c.b16 %v249, %v248
      %v260 = vpack.c.b16 %v250, %v250
      %vm270 = vcmask 179200
      %v272 = vsel %vm270, %v208, 0
      %v275 = vsel %vm270, %v210, 0
      %vm277 = vcmask 1042432
      %v279 = vsel %vm277, %v260, 0
      %281 = vmatprep.subr.bf16.mxu0 0
      %282 = vmatpush1.bf16.msra.mxu0 %v258
      %283 = vmatprep.subr.bf16.mxu0 0
      %284 = vmatpush1.bf16.msra.mxu0 %v257
      %285 = vmatprep.subr.bf16.mxu0 0
      %286 = vmatpush1.bf16.msra.mxu0 %v256
      %287 = vmatprep.subr.bf16.mxu0 0
      %288 = vmatpush1.bf16.msra.mxu0 %v255
      %289 = vmatprep.subr.bf16.mxu0 0
      %290 = vmatpush1.bf16.msra.mxu0 %v254
      %291 = vmatprep.subr.bf16.mxu0 0
      %292 = vmatpush1.bf16.msra.mxu0 %v253
      %293 = vmatprep.subr.bf16.mxu0 0
      %294 = vmatpush1.bf16.msra.mxu0 %v252
      %295 = vmatprep.subr.bf16.mxu0 0
      %296 = vmatpush1.bf16.msra.mxu0 %v251
      %297 = vmatprep.subr.bf16.mxu0 0
      %298 = vmatpush2.bf16.msra.mxu0 0
      %299 = vmatprep.subr.bf16.mxu0 0
      %300 = vmatpush2.bf16.msra.mxu0 0
      %301 = vmatprep.subr.bf16.mxu0 0
      %302 = vmatpush2.bf16.msra.mxu0 0
      %303 = vmatprep.subr.bf16.mxu0 0
      %304 = vmatpush2.bf16.msra.mxu0 0
      %305 = vmatprep.subr.bf16.mxu0 0
      %306 = vmatpush2.bf16.msra.mxu0 0
      %307 = vmatprep.subr.bf16.mxu0 0
      %308 = vmatpush2.bf16.msra.mxu0 0
      %309 = vmatprep.subr.bf16.mxu0 0
      %310 = vmatpush2.bf16.msra.mxu0 %v279
      %311 = vmatprep.subr.bf16.mxu0 0
      %312 = vmatpush2.bf16.msra.mxu0 %v259
      %313 = vmatprep.mubr.bf16.mxu0 %v272
      %314 = vmatmul.mubr.bf16.gmra.mxu0 %v207
      %v315 = vpop.f32.mrf.mxu0
      %v316 = vadd.f32 0.0, %v315
      %v317 = vpop.f32.mrf.mxu0
      %v318 = vpop.f32.mrf.mxu0
      %v319 = vadd.f32 0.0, %v318
      %v320 = vpop.f32.mrf.mxu0
      %321 = vmatprep.mubr.bf16.mxu0 %v275
      %322 = vmatmul.mubr.bf16.gmra.mxu0 %v209
      %v323 = vpop.f32.mrf.mxu0
      %v324 = vadd.f32 0.0, %v323
      %v325 = vpop.f32.mrf.mxu0
      %v326 = vpop.f32.mrf.mxu0
      %v327 = vadd.f32 0.0, %v326
      %v328 = vpop.f32.mrf.mxu0
      %329 = vdwg.mxu0
      %s330 = scalar_lea.vmem %s165, 32
      %v331 = vld [vmem:[%s330] sm:$0xff]
      %v332 = vld [vmem:[%s330 + $0x8] sm:$0xff]
      %v333 = vld [vmem:[%s330 + $0x10] sm:$0xff]
      %v334 = vld [vmem:[%s330 + $0x18] sm:$0x11]
      %v339 = vunpack.c.l.b16 %v331
      %v340 = vunpack.c.h.b16 %v331
      %v341 = vunpack.c.l.b16 %v332
      %v342 = vunpack.c.h.b16 %v332
      %v343 = vunpack.c.l.b16 %v333
      %v344 = vunpack.c.h.b16 %v333
      %v345 = vunpack.c.l.b16 %v334
      %v346 = vunpack.c.h.b16 %v334
      %v347 = vpack.c.b16 %v341, %v339
      %v348 = vpack.c.b16 %v342, %v340
      %v349 = vpack.c.b16 %v345, %v343
      %v350 = vpack.c.b16 %v346, %v344
      %v354 = vsel %vm270, %v348, 0
      %v357 = vsel %vm270, %v350, 0
      %359 = vmatprep.subr.bf16.mxu0 0
      %360 = vmatpush1.bf16.msra.mxu0 %v258
      %361 = vmatprep.subr.bf16.mxu0 0
      %362 = vmatpush1.bf16.msra.mxu0 %v257
      %363 = vmatprep.subr.bf16.mxu0 0
      %364 = vmatpush1.bf16.msra.mxu0 %v256
      %365 = vmatprep.subr.bf16.mxu0 0
      %366 = vmatpush1.bf16.msra.mxu0 %v255
      %367 = vmatprep.subr.bf16.mxu0 0
      %368 = vmatpush1.bf16.msra.mxu0 %v254
      %369 = vmatprep.subr.bf16.mxu0 0
      %370 = vmatpush1.bf16.msra.mxu0 %v253
      %371 = vmatprep.subr.bf16.mxu0 0
      %372 = vmatpush1.bf16.msra.mxu0 %v252
      %373 = vmatprep.subr.bf16.mxu0 0
      %374 = vmatpush1.bf16.msra.mxu0 %v251
      %375 = vmatprep.subr.bf16.mxu0 0
      %376 = vmatpush2.bf16.msra.mxu0 0
      %377 = vmatprep.subr.bf16.mxu0 0
      %378 = vmatpush2.bf16.msra.mxu0 0
      %379 = vmatprep.subr.bf16.mxu0 0
      %380 = vmatpush2.bf16.msra.mxu0 0
      %381 = vmatprep.subr.bf16.mxu0 0
      %382 = vmatpush2.bf16.msra.mxu0 0
      %383 = vmatprep.subr.bf16.mxu0 0
      %384 = vmatpush2.bf16.msra.mxu0 0
      %385 = vmatprep.subr.bf16.mxu0 0
      %386 = vmatpush2.bf16.msra.mxu0 0
      %387 = vmatprep.subr.bf16.mxu0 0
      %388 = vmatpush2.bf16.msra.mxu0 %v279
      %389 = vmatprep.subr.bf16.mxu0 0
      %390 = vmatpush2.bf16.msra.mxu0 %v259
      %391 = vmatprep.mubr.bf16.mxu0 %v354
      %392 = vmatmul.mubr.bf16.gmra.mxu0 %v347
      %v393 = vpop.f32.mrf.mxu0
      %v394 = vadd.f32 0.0, %v393
      %v395 = vpop.f32.mrf.mxu0
      %v396 = vpop.f32.mrf.mxu0
      %v397 = vadd.f32 0.0, %v396
      %v398 = vpop.f32.mrf.mxu0
      %399 = vmatprep.mubr.bf16.mxu0 %v357
      %400 = vmatmul.mubr.bf16.gmra.mxu0 %v349
      %v401 = vpop.f32.mrf.mxu0
      %v402 = vadd.f32 0.0, %v401
      %v403 = vpop.f32.mrf.mxu0
      %v404 = vpop.f32.mrf.mxu0
      %v405 = vadd.f32 0.0, %v404
      %v406 = vpop.f32.mrf.mxu0
      %407 = vdwg.mxu0
      %v408 = vmax.f32 %v316, %v394
      %v409 = vmax.f32 %v319, %v397
      %v410 = vmax.f32 %v324, %v402
      %v411 = vmax.f32 %v327, %v405
      %s412 = scalar_lea.vmem %s165, 64
      %v413 = vld [vmem:[%s412] sm:$0xff]
      %v414 = vld [vmem:[%s412 + $0x8] sm:$0xff]
      %v415 = vld [vmem:[%s412 + $0x10] sm:$0xff]
      %v416 = vld [vmem:[%s412 + $0x18] sm:$0x11]
      %v421 = vunpack.c.l.b16 %v413
      %v422 = vunpack.c.h.b16 %v413
      %v423 = vunpack.c.l.b16 %v414
      %v424 = vunpack.c.h.b16 %v414
      %v425 = vunpack.c.l.b16 %v415
      %v426 = vunpack.c.h.b16 %v415
      %v427 = vunpack.c.l.b16 %v416
      %v428 = vunpack.c.h.b16 %v416
      %v429 = vpack.c.b16 %v423, %v421
      %v430 = vpack.c.b16 %v424, %v422
      %v431 = vpack.c.b16 %v427, %v425
      %v432 = vpack.c.b16 %v428, %v426
      %v436 = vsel %vm270, %v430, 0
      %v439 = vsel %vm270, %v432, 0
      %441 = vmatprep.subr.bf16.mxu0 0
      %442 = vmatpush1.bf16.msra.mxu0 %v258
      %443 = vmatprep.subr.bf16.mxu0 0
      %444 = vmatpush1.bf16.msra.mxu0 %v257
      %445 = vmatprep.subr.bf16.mxu0 0
      %446 = vmatpush1.bf16.msra.mxu0 %v256
      %447 = vmatprep.subr.bf16.mxu0 0
      %448 = vmatpush1.bf16.msra.mxu0 %v255
      %449 = vmatprep.subr.bf16.mxu0 0
      %450 = vmatpush1.bf16.msra.mxu0 %v254
      %451 = vmatprep.subr.bf16.mxu0 0
      %452 = vmatpush1.bf16.msra.mxu0 %v253
      %453 = vmatprep.subr.bf16.mxu0 0
      %454 = vmatpush1.bf16.msra.mxu0 %v252
      %455 = vmatprep.subr.bf16.mxu0 0
      %456 = vmatpush1.bf16.msra.mxu0 %v251
      %457 = vmatprep.subr.bf16.mxu0 0
      %458 = vmatpush2.bf16.msra.mxu0 0
      %459 = vmatprep.subr.bf16.mxu0 0
      %460 = vmatpush2.bf16.msra.mxu0 0
      %461 = vmatprep.subr.bf16.mxu0 0
      %462 = vmatpush2.bf16.msra.mxu0 0
      %463 = vmatprep.subr.bf16.mxu0 0
      %464 = vmatpush2.bf16.msra.mxu0 0
      %465 = vmatprep.subr.bf16.mxu0 0
      %466 = vmatpush2.bf16.msra.mxu0 0
      %467 = vmatprep.subr.bf16.mxu0 0
      %468 = vmatpush2.bf16.msra.mxu0 0
      %469 = vmatprep.subr.bf16.mxu0 0
      %470 = vmatpush2.bf16.msra.mxu0 %v279
      %471 = vmatprep.subr.bf16.mxu0 0
      %472 = vmatpush2.bf16.msra.mxu0 %v259
      %473 = vmatprep.mubr.bf16.mxu0 %v436
      %474 = vmatmul.mubr.bf16.gmra.mxu0 %v429
      %v475 = vpop.f32.mrf.mxu0
      %v476 = vadd.f32 0.0, %v475
      %v477 = vpop.f32.mrf.mxu0
      %v478 = vpop.f32.mrf.mxu0
      %v479 = vadd.f32 0.0, %v478
      %v480 = vpop.f32.mrf.mxu0
      %481 = vmatprep.mubr.bf16.mxu0 %v439
      %482 = vmatmul.mubr.bf16.gmra.mxu0 %v431
      %v483 = vpop.f32.mrf.mxu0
      %v484 = vadd.f32 0.0, %v483
      %v485 = vpop.f32.mrf.mxu0
      %v486 = vpop.f32.mrf.mxu0
      %v487 = vadd.f32 0.0, %v486
      %v488 = vpop.f32.mrf.mxu0
      %489 = vdwg.mxu0
      %v490 = vmax.f32 %v408, %v476
      %v491 = vmax.f32 %v409, %v479
      %v492 = vmax.f32 %v410, %v484
      %v493 = vmax.f32 %v411, %v487
      %s494 = scalar_lea.vmem %s165, 96
      %v495 = vld [vmem:[%s494] sm:$0xff]
      %v496 = vld [vmem:[%s494 + $0x8] sm:$0xff]
      %v497 = vld [vmem:[%s494 + $0x10] sm:$0xff]
      %v498 = vld [vmem:[%s494 + $0x18] sm:$0x11]
      %v503 = vunpack.c.l.b16 %v495
      %v504 = vunpack.c.h.b16 %v495
      %v505 = vunpack.c.l.b16 %v496
      %v506 = vunpack.c.h.b16 %v496
      %v507 = vunpack.c.l.b16 %v497
      %v508 = vunpack.c.h.b16 %v497
      %v509 = vunpack.c.l.b16 %v498
      %v510 = vunpack.c.h.b16 %v498
      %v511 = vpack.c.b16 %v505, %v503
      %v512 = vpack.c.b16 %v506, %v504
      %v513 = vpack.c.b16 %v509, %v507
      %v514 = vpack.c.b16 %v510, %v508
      %v518 = vsel %vm270, %v512, 0
      %v521 = vsel %vm270, %v514, 0
      %523 = vmatprep.subr.bf16.mxu0 0
      %524 = vmatpush1.bf16.msra.mxu0 %v258
      %525 = vmatprep.subr.bf16.mxu0 0
      %526 = vmatpush1.bf16.msra.mxu0 %v257
      %527 = vmatprep.subr.bf16.mxu0 0
      %528 = vmatpush1.bf16.msra.mxu0 %v256
      %529 = vmatprep.subr.bf16.mxu0 0
      %530 = vmatpush1.bf16.msra.mxu0 %v255
      %531 = vmatprep.subr.bf16.mxu0 0
      %532 = vmatpush1.bf16.msra.mxu0 %v254
      %533 = vmatprep.subr.bf16.mxu0 0
      %534 = vmatpush1.bf16.msra.mxu0 %v253
      %535 = vmatprep.subr.bf16.mxu0 0
      %536 = vmatpush1.bf16.msra.mxu0 %v252
      %537 = vmatprep.subr.bf16.mxu0 0
      %538 = vmatpush1.bf16.msra.mxu0 %v251
      %539 = vmatprep.subr.bf16.mxu0 0
      %540 = vmatpush2.bf16.msra.mxu0 0
      %541 = vmatprep.subr.bf16.mxu0 0
      %542 = vmatpush2.bf16.msra.mxu0 0
      %543 = vmatprep.subr.bf16.mxu0 0
      %544 = vmatpush2.bf16.msra.mxu0 0
      %545 = vmatprep.subr.bf16.mxu0 0
      %546 = vmatpush2.bf16.msra.mxu0 0
      %547 = vmatprep.subr.bf16.mxu0 0
      %548 = vmatpush2.bf16.msra.mxu0 0
      %549 = vmatprep.subr.bf16.mxu0 0
      %550 = vmatpush2.bf16.msra.mxu0 0
      %551 = vmatprep.subr.bf16.mxu0 0
      %552 = vmatpush2.bf16.msra.mxu0 %v279
      %553 = vmatprep.subr.bf16.mxu0 0
      %554 = vmatpush2.bf16.msra.mxu0 %v259
      %555 = vmatprep.mubr.bf16.mxu0 %v518
      %556 = vmatmul.mubr.bf16.gmra.mxu0 %v511
      %v557 = vpop.f32.mrf.mxu0
      %v558 = vadd.f32 0.0, %v557
      %v559 = vpop.f32.mrf.mxu0
      %v560 = vpop.f32.mrf.mxu0
      %v561 = vadd.f32 0.0, %v560
      %v562 = vpop.f32.mrf.mxu0
      %563 = vmatprep.mubr.bf16.mxu0 %v521
      %564 = vmatmul.mubr.bf16.gmra.mxu0 %v513
      %v565 = vpop.f32.mrf.mxu0
      %v566 = vadd.f32 0.0, %v565
      %v567 = vpop.f32.mrf.mxu0
      %v568 = vpop.f32.mrf.mxu0
      %v569 = vadd.f32 0.0, %v568
      %v570 = vpop.f32.mrf.mxu0
      %571 = vdwg.mxu0
      %v572 = vmax.f32 %v490, %v558
      %v573 = vmax.f32 %v491, %v561
      %v574 = vmax.f32 %v492, %v566
      %v575 = vmax.f32 %v493, %v569
      %v576 = vld [vmem:[%s2] sm:$0x1]
      %v578 = vlaneseq
      %v579 = vshrl.u32 %v578, 7
      %v580 = vsub.s32 0, %v579
      %v581 = vrot.slane %v576, %v580
      %v583 = vadd.f32 %v572, %v581
      %v584 = vadd.f32 %v573, %v581
      %v585 = vadd.f32 %v574, %v581
      %v586 = vadd.f32 %v575, %v581
      %v587 = vmax.f32 %v583, 0.0
      %v588 = vmax.f32 %v584, 0.0
      %v589 = vmax.f32 %v585, 0.0
      %v590 = vmax.f32 %v586, 0.0
      %v591 = vpack.c.bf16 %v588, %v587
      %v592 = vpack.c.bf16 %v590, %v589
      %v595 = vunpack.c.l.b16 %v591
      %v596 = vunpack.c.h.b16 %v591
      %v597 = vunpack.c.l.b16 %v592
      %v598 = vunpack.c.h.b16 %v592
      %v599 = vpack.c.b16 %v595, %v595
      %v600 = vpack.c.b16 %v596, %v596
      %v601 = vpack.c.b16 %v597, %v597
      %v602 = vpack.c.b16 %v598, %v598
      %607 = vst [vmem:[%s170] sm:$0xf] %v599
      %608 = vst [vmem:[%s170 + $0x4] sm:$0xf] %v600
      %609 = vst [vmem:[%s170 + $0x8] sm:$0xf] %v601
      %vm610 = vcmask 1040384
      %vm611 = vsmask.f32 256
      %vm612 = vmand %vm610, %vm611
      %v613 = vld [vmem:[%s170 + $0xc] sm:$0x1]
      %v614 = vsel %vm612, %v602, %v613
      %615 = vst [vmem:[%s170 + $0xc] sm:$0x1] %v614
      %p616 = scmp.lt.s32.totalorder %s14, 1
      %s617 = scalar_select %p616, %s14, 1
      %s618 = smul.addr %s617, 4
      %s619 = smul.addr %s618, 4
      %s620 = scalar_lea.vmem %s3, %s619
      // Predicated region
      $region33: #{net_forward.4} parent=31 // pred_check
        %p621 = pneg %p100
      $region34: #{net_forward.4} parent=31 // pred_check_branch
        %623 = sbr.rel (%p621) target = $region36
      $region35: #{net_forward.4} parent=31 // pred_region
        _
      $region36: #{net_forward.4} parent=31 // pred_fallthru
        _
    $region32: #{net_forward.4} parent=5 // pred_fallthru
      _
    %p624 = scmp.le.s32.totalorder 2, %s9
    // Predicated region
    $region37: #{net_forward.4} parent=5 // pred_check
      %p625 = pneg %p624
    $region38: #{net_forward.4} parent=5 // pred_check_branch
      %627 = sbr.rel (%p625) target = $region40
    $region39: #{net_forward.4} parent=5 // pred_region
      %s628 = ssub.s32 %s9, 2
      // Predicated region
      $region41: #{net_forward.4} parent=39 // pred_check
        %p629 = pneg %p106
      $region42: #{net_forward.4} parent=39 // pred_check_branch
        %631 = sbr.rel (%p629) target = $region44
      $region43: #{net_forward.4} parent=39 // pred_region
        %p632 = scmp.lt.s32.totalorder %s15, 1
        %s633 = scalar_select %p632, %s15, 1
        %s634 = smul.addr %s633, 4
        %s635 = smul.addr %s634, 4
        %s636 = scalar_lea.vmem %s3, %s635
      $region44: #{net_forward.4} parent=39 // pred_fallthru
        _
    $region40: #{net_forward.4} parent=5 // pred_fallthru
      _
  $region6: #{net_forward.4} parent=0 // loop_footer
    %s13 = sadd.s32 1, %s9
  $region7: #{net_forward.4} parent=0 // loop_footer_branch
    %8 = sbr.rel target = $region3
  $region8: #{net_forward.4} parent=0 // loop_exit
    _

// kernel: net_forward.5
$region0: #{net_forward.5}
  #allocation0 [shape = 'u32[]', space=smem, size = 0x4, offset = 0x4, fixed_abs, tag = 'smem constant byte address 0x4 - core index']
  #allocation1 [shape = 'u32[144,128]{1,0:T(1,128)}', space=vmem, size = 0x12000, scoped, tag = 'internal scratch']
  %s0 = inlined_call_operand.vmem [shape: bf16[2,1,400], index: 0, kind: input, shape index: {}]
  %s1 = inlined_call_operand.vmem [shape: bf16[400,128], index: 1, kind: input, shape index: {}]
  %s2 = inlined_call_operand.vmem [shape: f32[1,128], index: 2, kind: input, shape index: {}]
  %s3 = inlined_call_operand.vmem [shape: bf16[128,128], index: 3, kind: input, shape index: {}]
  %s4 = inlined_call_operand.vmem [shape: f32[1,128], index: 4, kind: input, shape index: {}]
  %s5 = inlined_call_operand.vmem [shape: bf16[128,256], index: 5, kind: input, shape index: {}]
  %s6 = inlined_call_operand.vmem [shape: f32[1,256], index: 6, kind: input, shape index: {}]
  %s7 = inlined_call_operand.vmem [shape: f32[128,128], index: 7, kind: input, shape index: {}]
  %s8 = inlined_call_operand.vmem [shape: bf16[128,128], index: 8, kind: input, shape index: {}]
  %s9 = inlined_call_operand.vmem [shape: f32[1,128], index: 9, kind: input, shape index: {}]
  %s10 = inlined_call_operand.hbm [shape: f32[2,1,128], index: 10, kind: output, shape index: {}]
  %s11 = sld [smem:[#allocation0]]
  $region73: #{net_forward.5} parent=0
    _
  %s13 = ssub.s32 1, %s11
  %s14 = scalar_select 0, %s13, %s11
  $region1: #{net_forward.5} parent=0
    #allocation2 [shape = 'u8[1024]{0}', space=vmem, size = 0x400, scoped, tag = 'output window, operand 0']
    #allocation3 [shape = 's32[2]{0}', space=sflag, size = 0x8, scoped, tag = 'scoped memory for net_forward.5']
    %15 = vsyncpa [#allocation3], 0
    %s16 = scalar_lea.sflag [#allocation3], 1
    %17 = vsyncpa %s16, 0
    loop: start=0, step=1, limit=4
    $region2: #{net_forward.5} parent=1 // loop_pre_header
      _
    $region3: #{net_forward.5} parent=1 // loop_header
      %s19 = sphi 0, %s23
      %p20 = scmp.ge.s32.totalorder %s19, 4
      %s29 = sphi 0, %s31
      %s32 = sphi 0, %s29
      %s33 = sphi 0, %s32
      %s49 = sphi 0, %s33
      %s53 = sphi 0, %s53
      %s55 = sphi 0, %s53
      %s56 = sphi 0, %s55
      %s70 = sphi 0, %s56
      %s74 = sphi 0, %s74
      %s76 = sphi 0, %s74
      %s77 = sphi 0, %s76
      %s91 = sphi 0, %s77
      %s95 = sphi 0, %s95
      %s97 = sphi 0, %s95
      %s98 = sphi 0, %s97
      %s112 = sphi 0, %s98
      %s116 = sphi 0, %s116
      %s118 = sphi 0, %s116
      %s119 = sphi 0, %s118
      %s133 = sphi 0, %s119
      %s137 = sphi 0, %s137
      %s139 = sphi 0, %s137
      %s140 = sphi 0, %s139
      %s154 = sphi 0, %s140
      %s158 = sphi 0, %s158
      %s160 = sphi 0, %s158
      %s161 = sphi 0, %s160
      %s175 = sphi 0, %s161
      %s179 = sphi 0, %s179
      %s181 = sphi 0, %s179
      %s182 = sphi 0, %s181
      %s196 = sphi 0, %s182
      %s200 = sphi 0, %s200
      %s202 = sphi 0, %s200
      %s203 = sphi 0, %s202
      %s217 = sphi 0, %s203
      %s221 = sphi 0, %s221
      %s223 = sphi 0, %s221
      %s224 = sphi 0, %s223
      %s238 = sphi 0, %s224
      %s244 = sphi 0, %s246
      %s247 = sphi 0, %s244
      %s248 = sphi 0, %s247
      %s264 = sphi 0, %s248
    $region4: #{net_forward.5} parent=1 // loop_header_branch
      %22 = sbr.rel (%p20) target = $region8
    $region5: #{net_forward.5} parent=1 // loop_body
      %s24 = ssub.s32 %s19, 1
      %s25 = ssub.s32 %s19, 2
      %s26 = sadd.s32 %s19, 1
      %s27 = ssub.s32 %s19, %s26
      %p28 = scmp.eq.s32.totalorder %s27, 0
      %s30 = sadd.s32 %s29, 1
      %s31 = scalar_select %p28, %s29, %s30
      %p34 = pneg %p28
      %p35 = scmp.eq.s32.totalorder %s19, 1
      %p36 = por %p34, %p35
      %p37 = scmp.ne.s32.totalorder %s29, %s32
      %p38 = scmp.eq.s32.totalorder %s19, 0
      %p39 = por %p37, %p38
      %p40 = scmp.ne.s32.totalorder %s29, %s32
      %p41 = scmp.eq.s32.totalorder %s24, 1
      %p42 = por %p40, %p41
      %p43 = scmp.ne.s32.totalorder %s32, %s33
      %p44 = scmp.eq.s32.totalorder %s24, 0
      %p45 = por %p43, %p44
      %p46 = scmp.ne.s32.totalorder %s32, %s33
      %p47 = scmp.eq.s32.totalorder %s25, 1
      %p48 = por %p46, %p47
      %p50 = scmp.ne.s32.totalorder %s33, %s49
      %p51 = scmp.eq.s32.totalorder %s25, 0
      %p52 = por %p50, %p51
      %s54 = sadd.s32 %s53, 1
      %p57 = scmp.eq.s32.totalorder %s19, 1
      %p58 = scmp.ne.s32.totalorder %s53, %s55
      %p59 = scmp.eq.s32.totalorder %s19, 0
      %p60 = por %p58, %p59
      %p61 = scmp.ne.s32.totalorder %s53, %s55
      %p62 = scmp.eq.s32.totalorder %s24, 1
      %p63 = por %p61, %p62
      %p64 = scmp.ne.s32.totalorder %s55, %s56
      %p65 = scmp.eq.s32.totalorder %s24, 0
      %p66 = por %p64, %p65
      %p67 = scmp.ne.s32.totalorder %s55, %s56
      %p68 = scmp.eq.s32.totalorder %s25, 1
      %p69 = por %p67, %p68
      %p71 = scmp.ne.s32.totalorder %s56, %s70
      %p72 = scmp.eq.s32.totalorder %s25, 0
      %p73 = por %p71, %p72
      %s75 = sadd.s32 %s74, 1
      %p78 = scmp.eq.s32.totalorder %s19, 1
      %p79 = scmp.ne.s32.totalorder %s74, %s76
      %p80 = scmp.eq.s32.totalorder %s19, 0
      %p81 = por %p79, %p80
      %p82 = scmp.ne.s32.totalorder %s74, %s76
      %p83 = scmp.eq.s32.totalorder %s24, 1
      %p84 = por %p82, %p83
      %p85 = scmp.ne.s32.totalorder %s76, %s77
      %p86 = scmp.eq.s32.totalorder %s24, 0
      %p87 = por %p85, %p86
      %p88 = scmp.ne.s32.totalorder %s76, %s77
      %p89 = scmp.eq.s32.totalorder %s25, 1
      %p90 = por %p88, %p89
      %p92 = scmp.ne.s32.totalorder %s77, %s91
      %p93 = scmp.eq.s32.totalorder %s25, 0
      %p94 = por %p92, %p93
      %s96 = sadd.s32 %s95, 1
      %p99 = scmp.eq.s32.totalorder %s19, 1
      %p100 = scmp.ne.s32.totalorder %s95, %s97
      %p101 = scmp.eq.s32.totalorder %s19, 0
      %p102 = por %p100, %p101
      %p103 = scmp.ne.s32.totalorder %s95, %s97
      %p104 = scmp.eq.s32.totalorder %s24, 1
      %p105 = por %p103, %p104
      %p106 = scmp.ne.s32.totalorder %s97, %s98
      %p107 = scmp.eq.s32.totalorder %s24, 0
      %p108 = por %p106, %p107
      %p109 = scmp.ne.s32.totalorder %s97, %s98
      %p110 = scmp.eq.s32.totalorder %s25, 1
      %p111 = por %p109, %p110
      %p113 = scmp.ne.s32.totalorder %s98, %s112
      %p114 = scmp.eq.s32.totalorder %s25, 0
      %p115 = por %p113, %p114
      %s117 = sadd.s32 %s116, 1
      %p120 = scmp.eq.s32.totalorder %s19, 1
      %p121 = scmp.ne.s32.totalorder %s116, %s118
      %p122 = scmp.eq.s32.totalorder %s19, 0
      %p123 = por %p121, %p122
      %p124 = scmp.ne.s32.totalorder %s116, %s118
      %p125 = scmp.eq.s32.totalorder %s24, 1
      %p126 = por %p124, %p125
      %p127 = scmp.ne.s32.totalorder %s118, %s119
      %p128 = scmp.eq.s32.totalorder %s24, 0
      %p129 = por %p127, %p128
      %p130 = scmp.ne.s32.totalorder %s118, %s119
      %p131 = scmp.eq.s32.totalorder %s25, 1
      %p132 = por %p130, %p131
      %p134 = scmp.ne.s32.totalorder %s119, %s133
      %p135 = scmp.eq.s32.totalorder %s25, 0
      %p136 = por %p134, %p135
      %s138 = sadd.s32 %s137, 1
      %p141 = scmp.eq.s32.totalorder %s19, 1
      %p142 = scmp.ne.s32.totalorder %s137, %s139
      %p143 = scmp.eq.s32.totalorder %s19, 0
      %p144 = por %p142, %p143
      %p145 = scmp.ne.s32.totalorder %s137, %s139
      %p146 = scmp.eq.s32.totalorder %s24, 1
      %p147 = por %p145, %p146
      %p148 = scmp.ne.s32.totalorder %s139, %s140
      %p149 = scmp.eq.s32.totalorder %s24, 0
      %p150 = por %p148, %p149
      %p151 = scmp.ne.s32.totalorder %s139, %s140
      %p152 = scmp.eq.s32.totalorder %s25, 1
      %p153 = por %p151, %p152
      %p155 = scmp.ne.s32.totalorder %s140, %s154
      %p156 = scmp.eq.s32.totalorder %s25, 0
      %p157 = por %p155, %p156
      %s159 = sadd.s32 %s158, 1
      %p162 = scmp.eq.s32.totalorder %s19, 1
      %p163 = scmp.ne.s32.totalorder %s158, %s160
      %p164 = scmp.eq.s32.totalorder %s19, 0
      %p165 = por %p163, %p164
      %p166 = scmp.ne.s32.totalorder %s158, %s160
      %p167 = scmp.eq.s32.totalorder %s24, 1
      %p168 = por %p166, %p167
      %p169 = scmp.ne.s32.totalorder %s160, %s161
      %p170 = scmp.eq.s32.totalorder %s24, 0
      %p171 = por %p169, %p170
      %p172 = scmp.ne.s32.totalorder %s160, %s161
      %p173 = scmp.eq.s32.totalorder %s25, 1
      %p174 = por %p172, %p173
      %p176 = scmp.ne.s32.totalorder %s161, %s175
      %p177 = scmp.eq.s32.totalorder %s25, 0
      %p178 = por %p176, %p177
      %s180 = sadd.s32 %s179, 1
      %p183 = scmp.eq.s32.totalorder %s19, 1
      %p184 = scmp.ne.s32.totalorder %s179, %s181
      %p185 = scmp.eq.s32.totalorder %s19, 0
      %p186 = por %p184, %p185
      %p187 = scmp.ne.s32.totalorder %s179, %s181
      %p188 = scmp.eq.s32.totalorder %s24, 1
      %p189 = por %p187, %p188
      %p190 = scmp.ne.s32.totalorder %s181, %s182
      %p191 = scmp.eq.s32.totalorder %s24, 0
      %p192 = por %p190, %p191
      %p193 = scmp.ne.s32.totalorder %s181, %s182
      %p194 = scmp.eq.s32.totalorder %s25, 1
      %p195 = por %p193, %p194
      %p197 = scmp.ne.s32.totalorder %s182, %s196
      %p198 = scmp.eq.s32.totalorder %s25, 0
      %p199 = por %p197, %p198
      %s201 = sadd.s32 %s200, 1
      %p204 = scmp.eq.s32.totalorder %s19, 1
      %p205 = scmp.ne.s32.totalorder %s200, %s202
      %p206 = scmp.eq.s32.totalorder %s19, 0
      %p207 = por %p205, %p206
      %p208 = scmp.ne.s32.totalorder %s200, %s202
      %p209 = scmp.eq.s32.totalorder %s24, 1
      %p210 = por %p208, %p209
      %p211 = scmp.ne.s32.totalorder %s202, %s203
      %p212 = scmp.eq.s32.totalorder %s24, 0
      %p213 = por %p211, %p212
      %p214 = scmp.ne.s32.totalorder %s202, %s203
      %p215 = scmp.eq.s32.totalorder %s25, 1
      %p216 = por %p214, %p215
      %p218 = scmp.ne.s32.totalorder %s203, %s217
      %p219 = scmp.eq.s32.totalorder %s25, 0
      %p220 = por %p218, %p219
      %s222 = sadd.s32 %s221, 1
      %p225 = scmp.eq.s32.totalorder %s19, 1
      %p226 = scmp.ne.s32.totalorder %s221, %s223
      %p227 = scmp.eq.s32.totalorder %s19, 0
      %p228 = por %p226, %p227
      %p229 = scmp.ne.s32.totalorder %s221, %s223
      %p230 = scmp.eq.s32.totalorder %s24, 1
      %p231 = por %p229, %p230
      %p232 = scmp.ne.s32.totalorder %s223, %s224
      %p233 = scmp.eq.s32.totalorder %s24, 0
      %p234 = por %p232, %p233
      %p235 = scmp.ne.s32.totalorder %s223, %s224
      %p236 = scmp.eq.s32.totalorder %s25, 1
      %p237 = por %p235, %p236
      %p239 = scmp.ne.s32.totalorder %s224, %s238
      %p240 = scmp.eq.s32.totalorder %s25, 0
      %p241 = por %p239, %p240
      %s242 = ssub.s32 %s19, %s26
      %p243 = scmp.eq.s32.totalorder %s242, 0
      %s245 = sadd.s32 %s244, 1
      %s246 = scalar_select %p243, %s244, %s245
      %p249 = pneg %p243
      %p250 = scmp.eq.s32.totalorder %s19, 1
      %p251 = por %p249, %p250
      %p252 = scmp.ne.s32.totalorder %s244, %s247
      %p253 = scmp.eq.s32.totalorder %s19, 0
      %p254 = por %p252, %p253
      %p255 = scmp.ne.s32.totalorder %s244, %s247
      %p256 = scmp.eq.s32.totalorder %s24, 1
      %p257 = por %p255, %p256
      %p258 = scmp.ne.s32.totalorder %s247, %s248
      %p259 = scmp.eq.s32.totalorder %s24, 0
      %p260 = por %p258, %p259
      %p261 = scmp.ne.s32.totalorder %s247, %s248
      %p262 = scmp.eq.s32.totalorder %s25, 1
      %p263 = por %p261, %p262
      %p265 = scmp.ne.s32.totalorder %s248, %s264
      %p266 = scmp.eq.s32.totalorder %s25, 0
      %p267 = por %p265, %p266
      %p268 = scmp.le.s32.totalorder 1, %s19
      %p269 = scmp.lt.s32.totalorder %s19, 3
      %p270 = pnand %p268, %p269
      %p271 = pneg %p270
      // Predicated region
      $region9: #{net_forward.5} parent=5 // pred_check
        _
      $region10: #{net_forward.5} parent=5 // pred_check_branch
        %273 = sbr.rel (%p270) target = $region12
      $region11: #{net_forward.5} parent=5 // pred_region
        %s274 = ssub.s32 %s19, 1
        // Predicated region
        $region13: #{net_forward.5} parent=11 // pred_check
          %p275 = pneg %p66
        $region14: #{net_forward.5} parent=11 // pred_check_branch
          %277 = sbr.rel (%p275) target = $region16
        $region15: #{net_forward.5} parent=11 // pred_region
          _
        $region16: #{net_forward.5} parent=11 // pred_fallthru
          _
        // Predicated region
        $region17: #{net_forward.5} parent=11 // pred_check
          %p278 = pneg %p87
        $region18: #{net_forward.5} parent=11 // pred_check_branch
          %280 = sbr.rel (%p278) target = $region20
        $region19: #{net_forward.5} parent=11 // pred_region
          _
        $region20: #{net_forward.5} parent=11 // pred_fallthru
          _
        // Predicated region
        $region21: #{net_forward.5} parent=11 // pred_check
          %p281 = pneg %p108
        $region22: #{net_forward.5} parent=11 // pred_check_branch
          %283 = sbr.rel (%p281) target = $region24
        $region23: #{net_forward.5} parent=11 // pred_region
          _
        $region24: #{net_forward.5} parent=11 // pred_fallthru
          _
        // Predicated region
        $region25: #{net_forward.5} parent=11 // pred_check
          %p284 = pneg %p129
        $region26: #{net_forward.5} parent=11 // pred_check_branch
          %286 = sbr.rel (%p284) target = $region28
        $region27: #{net_forward.5} parent=11 // pred_region
          _
        $region28: #{net_forward.5} parent=11 // pred_fallthru
          _
        // Predicated region
        $region29: #{net_forward.5} parent=11 // pred_check
          %p287 = pneg %p150
        $region30: #{net_forward.5} parent=11 // pred_check_branch
          %289 = sbr.rel (%p287) target = $region32
        $region31: #{net_forward.5} parent=11 // pred_region
          _
        $region32: #{net_forward.5} parent=11 // pred_fallthru
          _
        // Predicated region
        $region33: #{net_forward.5} parent=11 // pred_check
          %p290 = pneg %p171
        $region34: #{net_forward.5} parent=11 // pred_check_branch
          %292 = sbr.rel (%p290) target = $region36
        $region35: #{net_forward.5} parent=11 // pred_region
          _
        $region36: #{net_forward.5} parent=11 // pred_fallthru
          _
        // Predicated region
        $region37: #{net_forward.5} parent=11 // pred_check
          %p293 = pneg %p192
        $region38: #{net_forward.5} parent=11 // pred_check_branch
          %295 = sbr.rel (%p293) target = $region40
        $region39: #{net_forward.5} parent=11 // pred_region
          _
        $region40: #{net_forward.5} parent=11 // pred_fallthru
          _
        // Predicated region
        $region41: #{net_forward.5} parent=11 // pred_check
          %p296 = pneg %p213
        $region42: #{net_forward.5} parent=11 // pred_check_branch
          %298 = sbr.rel (%p296) target = $region44
        $region43: #{net_forward.5} parent=11 // pred_region
          _
        $region44: #{net_forward.5} parent=11 // pred_fallthru
          _
        // Predicated region
        $region45: #{net_forward.5} parent=11 // pred_check
          %p299 = pneg %p234
        $region46: #{net_forward.5} parent=11 // pred_check_branch
          %301 = sbr.rel (%p299) target = $region48
        $region47: #{net_forward.5} parent=11 // pred_region
          _
        $region48: #{net_forward.5} parent=11 // pred_fallthru
          _
      $region12: #{net_forward.5} parent=5 // pred_fallthru
        _
      %p302 = scmp.lt.s32.totalorder %s19, 2
      // Predicated region
      $region49: #{net_forward.5} parent=5 // pred_check
        %p303 = pneg %p302
      $region50: #{net_forward.5} parent=5 // pred_check_branch
        %305 = sbr.rel (%p303) target = $region52
      $region51: #{net_forward.5} parent=5 // pred_region
        // Predicated region
        $region53: #{net_forward.5} parent=51 // pred_check
          %p306 = pneg %p39
        $region54: #{net_forward.5} parent=51 // pred_check_branch
          %308 = sbr.rel (%p306) target = $region56
        $region55: #{net_forward.5} parent=51 // pred_region
          %p309 = scmp.lt.s32.totalorder %s19, 1
          %s310 = scalar_select %p309, %s19, 1
          %s311 = smul.addr %s310, 4
          %s312 = scalar_lea.vmem %s0, %s311
        $region56: #{net_forward.5} parent=51 // pred_fallthru
          _
      $region52: #{net_forward.5} parent=5 // pred_fallthru
        _
      %p313 = scmp.le.s32.totalorder 1, %s19
      %p314 = scmp.lt.s32.totalorder %s19, 3
      %p315 = pnand %p313, %p314
      %p316 = pneg %p315
      // Predicated region
      $region57: #{net_forward.5} parent=5 // pred_check
        _
      $region58: #{net_forward.5} parent=5 // pred_check_branch
        %318 = sbr.rel (%p315) target = $region60
      $region59: #{net_forward.5} parent=5 // pred_region
        %s319 = ssub.s32 %s19, 1
        %p320 = scmp.lt.s32.totalorder %s24, 1
        %s321 = scalar_select %p320, %s24, 1
        %s322 = smul.addr %s321, 4
        %s323 = scalar_lea.vmem %s0, %s322
        %p324 = pneg %p45
        %p325 = pneg %p42
        %p326 = pneg %p66
        %p327 = pneg %p63
        %p328 = pneg %p87
        %p329 = pneg %p84
        %p330 = pneg %p108
        %p331 = pneg %p105
        %p332 = pneg %p129
        %p333 = pneg %p126
        %p334 = pneg %p150
        %p335 = pneg %p147
        %p336 = pneg %p171
        %p337 = pneg %p168
        %p338 = pneg %p192
        %p339 = pneg %p189
        %p340 = pneg %p213
        %p341 = pneg %p210
        %p342 = pneg %p234
        %p343 = pneg %p231
        %p344 = pneg %p260
        %p345 = pneg %p257
        %s346 = sand.u32 %s247, 1
        %s347 = scalar_lea.sflag [#allocation3], %s346
        %s348 = sand.u32 %s247, 1
        %s349 = scalar_lea.vmem [#allocation2], %s348
        %p350 = scmp.lt.s32.totalorder %s24, 1
        %s351 = scalar_select %p350, %s24, 1
        %s352 = smul.addr %s351, 4
        %s353 = scalar_lea.vmem %s0, %s352
        %v355 = vld [vmem:[%s353] sm:$0xf]
        %v356 = vld [vmem:[%s1] sm:$0xf]
        %v357 = vld [vmem:[%s1 + $0x4] sm:$0xf]
        %v358 = vld [vmem:[%s1 + $0x8] sm:$0xf]
        %v359 = vld [vmem:[%s1 + $0xc] sm:$0xf]
        %v360 = vld [vmem:[%s1 + $0x10] sm:$0xf]
        %v361 = vld [vmem:[%s1 + $0x14] sm:$0xf]
        %v362 = vld [vmem:[%s1 + $0x18] sm:$0xf]
        %v363 = vld [vmem:[%s1 + $0x1c] sm:$0xf]
        %v364 = vld [vmem:[%s1 + $0x20] sm:$0xf]
        %v365 = vld [vmem:[%s1 + $0x24] sm:$0xf]
        %v366 = vld [vmem:[%s1 + $0x28] sm:$0xf]
        %v367 = vld [vmem:[%s1 + $0x2c] sm:$0xf]
        %v368 = vld [vmem:[%s1 + $0x30] sm:$0xf]
        %v369 = vld [vmem:[%s1 + $0x34] sm:$0xf]
        %v370 = vld [vmem:[%s1 + $0x38] sm:$0xf]
        %v371 = vld [vmem:[%s1 + $0x3c] sm:$0xf]
        %v372 = vld [vmem:[%s1 + $0x40] sm:$0xf]
        %v373 = vld [vmem:[%s1 + $0x44] sm:$0xf]
        %v374 = vld [vmem:[%s1 + $0x48] sm:$0xf]
        %v375 = vld [vmem:[%s1 + $0x4c] sm:$0xf]
        %v376 = vld [vmem:[%s1 + $0x50] sm:$0xf]
        %v377 = vld [vmem:[%s1 + $0x54] sm:$0xf]
        %v378 = vld [vmem:[%s1 + $0x58] sm:$0xf]
        %v379 = vld [vmem:[%s1 + $0x5c] sm:$0xf]
        %v380 = vld [vmem:[%s1 + $0x60] sm:$0xf]
        %v381 = vld [vmem:[%s1 + $0x64] sm:$0xf]
        %v382 = vld [vmem:[%s1 + $0x68] sm:$0xf]
        %v383 = vld [vmem:[%s1 + $0x6c] sm:$0xf]
        %v384 = vld [vmem:[%s1 + $0x70] sm:$0xf]
        %v385 = vld [vmem:[%s1 + $0x74] sm:$0xf]
        %v386 = vld [vmem:[%s1 + $0x78] sm:$0xf]
        %v387 = vld [vmem:[%s1 + $0x7c] sm:$0xf]
        %v388 = vld [vmem:[%s1 + $0x80] sm:$0xf]
        %v389 = vld [vmem:[%s1 + $0x84] sm:$0xf]
        %v390 = vld [vmem:[%s1 + $0x88] sm:$0xf]
        %v391 = vld [vmem:[%s1 + $0x8c] sm:$0xf]
        %v392 = vld [vmem:[%s1 + $0x90] sm:$0xf]
        %v393 = vld [vmem:[%s1 + $0x94] sm:$0xf]
        %v394 = vld [vmem:[%s1 + $0x98] sm:$0xf]
        %v395 = vld [vmem:[%s1 + $0x9c] sm:$0xf]
        %v396 = vld [vmem:[%s1 + $0xa0] sm:$0xf]
        %v397 = vld [vmem:[%s1 + $0xa4] sm:$0xf]
        %v398 = vld [vmem:[%s1 + $0xa8] sm:$0xf]
        %v399 = vld [vmem:[%s1 + $0xac] sm:$0xf]
        %v400 = vld [vmem:[%s1 + $0xb0] sm:$0xf]
        %v401 = vld [vmem:[%s1 + $0xb4] sm:$0xf]
        %v402 = vld [vmem:[%s1 + $0xb8] sm:$0xf]
        %v403 = vld [vmem:[%s1 + $0xbc] sm:$0xf]
        %v404 = vld [vmem:[%s1 + $0xc0] sm:$0xf]
        %v405 = vld [vmem:[%s1 + $0xc4] sm:$0xf]
        %v406 = vld [vmem:[%s2] sm:$0x1]
        %v409 = vunpack.c.l.s4 1966171168
        %v410 = vunpack.c.0.s8 %v409
        %v411 = vlaneseq
        %v412 = vshrl.u32 %v411, 7
        %v413 = vsub.s32 %v410, %v412
        %v414 = vrot.slane %v355, %v413
        %v415 = vcombine.high %v414, %v414
        %v417 = vunpack.c.l.s4 1966171168
        %v418 = vunpack.c.0.s8 %v417
        %v419 = vlaneseq
        %v420 = vshrl.u32 %v419, 7
        %v421 = vsub.s32 %v418, %v420
        %v422 = vrot.slane %v414, %v421
        %v424 = vunpack.c.l.s4 1966171168
        %v425 = vunpack.c.0.s8 %v424
        %v426 = vlaneseq
        %v427 = vshrl.u32 %v426, 7
        %v428 = vsub.s32 %v425, %v427
        %v429 = vrot.slane %v415, %v428
        %v430 = vcombine.high %v422, %v422
        %v431 = vcombine.high %v429, %v429
        %v485 = vunpack.c.l.b16 %v356
        %v486 = vunpack.c.l.b16 %v357
        %v487 = vunpack.c.l.b16 %v358
        %v488 = vunpack.c.l.b16 %v359
        %v489 = vunpack.c.l.b16 %v360
        %v490 = vunpack.c.l.b16 %v361
        %v491 = vunpack.c.l.b16 %v362
        %v492 = vunpack.c.l.b16 %v363
        %v493 = vunpack.c.l.b16 %v364
        %v494 = vunpack.c.l.b16 %v365
        %v495 = vunpack.c.l.b16 %v366
        %v496 = vunpack.c.l.b16 %v367
        %v497 = vunpack.c.l.b16 %v368
        %v498 = vunpack.c.l.b16 %v369
        %v499 = vunpack.c.l.b16 %v370
        %v500 = vunpack.c.l.b16 %v371
        %v501 = vunpack.c.l.b16 %v372
        %v502 = vunpack.c.l.b16 %v373
        %v503 = vunpack.c.l.b16 %v374
        %v504 = vunpack.c.l.b16 %v375
        %v505 = vunpack.c.l.b16 %v376
        %v506 = vunpack.c.l.b16 %v377
        %v507 = vunpack.c.l.b16 %v378
        %v508 = vunpack.c.l.b16 %v379
        %v509 = vunpack.c.l.b16 %v380
        %v510 = vunpack.c.l.b16 %v381
        %v511 = vunpack.c.l.b16 %v382
        %v512 = vunpack.c.l.b16 %v383
        %v513 = vunpack.c.l.b16 %v384
        %v514 = vunpack.c.l.b16 %v385
        %v515 = vunpack.c.l.b16 %v386
        %v516 = vunpack.c.l.b16 %v387
        %v517 = vunpack.c.l.b16 %v388
        %v518 = vunpack.c.l.b16 %v389
        %v519 = vunpack.c.l.b16 %v390
        %v520 = vunpack.c.l.b16 %v391
        %v521 = vunpack.c.l.b16 %v392
        %v522 = vunpack.c.l.b16 %v393
        %v523 = vunpack.c.l.b16 %v394
        %v524 = vunpack.c.l.b16 %v395
        %v525 = vunpack.c.l.b16 %v396
        %v526 = vunpack.c.l.b16 %v397
        %v527 = vunpack.c.l.b16 %v398
        %v528 = vunpack.c.l.b16 %v399
        %v529 = vunpack.c.l.b16 %v400
        %v530 = vunpack.c.l.b16 %v401
        %v531 = vunpack.c.l.b16 %v402
        %v532 = vunpack.c.l.b16 %v403
        %v533 = vunpack.c.l.b16 %v404
        %v534 = vunpack.c.l.b16 %v405
        %v535 = vpack.c.b16 %v486, %v485
        %v536 = vpack.c.b16 %v488, %v487
        %v537 = vpack.c.b16 %v490, %v489
        %v538 = vpack.c.b16 %v492, %v491
        %v539 = vpack.c.b16 %v494, %v493
        %v540 = vpack.c.b16 %v496, %v495
        %v541 = vpack.c.b16 %v498, %v497
        %v542 = vpack.c.b16 %v500, %v499
        %v543 = vpack.c.b16 %v502, %v501
        %v544 = vpack.c.b16 %v504, %v503
        %v545 = vpack.c.b16 %v506, %v505
        %v546 = vpack.c.b16 %v508, %v507
        %v547 = vpack.c.b16 %v510, %v509
        %v548 = vpack.c.b16 %v512, %v511
        %v549 = vpack.c.b16 %v514, %v513
        %v550 = vpack.c.b16 %v516, %v515
        %v551 = vpack.c.b16 %v518, %v517
        %v552 = vpack.c.b16 %v520, %v519
        %v553 = vpack.c.b16 %v522, %v521
        %v554 = vpack.c.b16 %v524, %v523
        %v555 = vpack.c.b16 %v526, %v525
        %v556 = vpack.c.b16 %v528, %v527
        %v557 = vpack.c.b16 %v530, %v529
        %v558 = vpack.c.b16 %v532, %v531
        %v559 = vpack.c.b16 %v534, %v533
        %vm585 = vcmask 130048
        %v587 = vsel %vm585, %v431, 0
        %589 = vmatprep.subr.bf16.mxu0 0
        %590 = vmatpush1.bf16.msra.mxu0 %v542
        %591 = vmatprep.subr.bf16.mxu0 0
        %592 = vmatpush1.bf16.msra.mxu0 %v541
        %593 = vmatprep.subr.bf16.mxu0 0
        %594 = vmatpush1.bf16.msra.mxu0 %v540
        %595 = vmatprep.subr.bf16.mxu0 0
        %596 = vmatpush1.bf16.msra.mxu0 %v539
        %597 = vmatprep.subr.bf16.mxu0 0
        %598 = vmatpush1.bf16.msra.mxu0 %v538
        %599 = vmatprep.subr.bf16.mxu0 0
        %600 = vmatpush1.bf16.msra.mxu0 %v537
        %601 = vmatprep.subr.bf16.mxu0 0
        %602 = vmatpush1.bf16.msra.mxu0 %v536
        %603 = vmatprep.subr.bf16.mxu0 0
        %604 = vmatpush1.bf16.msra.mxu0 %v535
        %605 = vmatprep.subr.bf16.mxu0 0
        %606 = vmatpush2.bf16.msra.mxu0 %v550
        %607 = vmatprep.subr.bf16.mxu0 0
        %608 = vmatpush2.bf16.msra.mxu0 %v549
        %609 = vmatprep.subr.bf16.mxu0 0
        %610 = vmatpush2.bf16.msra.mxu0 %v548
        %611 = vmatprep.subr.bf16.mxu0 0
        %612 = vmatpush2.bf16.msra.mxu0 %v547
        %613 = vmatprep.subr.bf16.mxu0 0
        %614 = vmatpush2.bf16.msra.mxu0 %v546
        %615 = vmatprep.subr.bf16.mxu0 0
        %616 = vmatpush2.bf16.msra.mxu0 %v545
        %617 = vmatprep.subr.bf16.mxu0 0
        %618 = vmatpush2.bf16.msra.mxu0 %v544
        %619 = vmatprep.subr.bf16.mxu0 0
        %620 = vmatpush2.bf16.msra.mxu0 %v543
        %621 = vmatprep.mubr.bf16.mxu0 %v429
        %622 = vmatmul.mubr.bf16.gmra.mxu0 %v422
        %v623 = vpop.f32.mrf.mxu0
        %v624 = vadd.f32 %v406, %v623
        %v625 = vpop.f32.mrf.mxu0
        %v626 = vpop.f32.mrf.mxu0
        %v627 = vpop.f32.mrf.mxu0
        %628 = vdwg.mxu0
        %629 = vmatprep.subr.bf16.mxu0 0
        %630 = vmatpush1.bf16.msra.mxu0 %v558
        %631 = vmatprep.subr.bf16.mxu0 0
        %632 = vmatpush1.bf16.msra.mxu0 %v557
        %633 = vmatprep.subr.bf16.mxu0 0
        %634 = vmatpush1.bf16.msra.mxu0 %v556
        %635 = vmatprep.subr.bf16.mxu0 0
        %636 = vmatpush1.bf16.msra.mxu0 %v555
        %637 = vmatprep.subr.bf16.mxu0 0
        %638 = vmatpush1.bf16.msra.mxu0 %v554
        %639 = vmatprep.subr.bf16.mxu0 0
        %640 = vmatpush1.bf16.msra.mxu0 %v553
        %641 = vmatprep.subr.bf16.mxu0 0
        %642 = vmatpush1.bf16.msra.mxu0 %v552
        %643 = vmatprep.subr.bf16.mxu0 0
        %644 = vmatpush1.bf16.msra.mxu0 %v551
        %645 = vmatprep.subr.bf16.mxu0 0
        %646 = vmatpush2.bf16.msra.mxu0 0
        %647 = vmatprep.subr.bf16.mxu0 0
        %648 = vmatpush2.bf16.msra.mxu0 0
        %649 = vmatprep.subr.bf16.mxu0 0
        %650 = vmatpush2.bf16.msra.mxu0 0
        %651 = vmatprep.subr.bf16.mxu0 0
        %652 = vmatpush2.bf16.msra.mxu0 0
        %653 = vmatprep.subr.bf16.mxu0 0
        %654 = vmatpush2.bf16.msra.mxu0 0
        %655 = vmatprep.subr.bf16.mxu0 0
        %656 = vmatpush2.bf16.msra.mxu0 0
        %657 = vmatprep.subr.bf16.mxu0 0
        %658 = vmatpush2.bf16.msra.mxu0 0
        %659 = vmatprep.subr.bf16.mxu0 0
        %660 = vmatpush2.bf16.msra.mxu0 %v559
        %661 = vmatprep.mubr.bf16.mxu0 %v587
        %662 = vmatmul.mubr.bf16.gmra.mxu0 %v430
        %v663 = vpop.f32.mrf.mxu0
        %v664 = vadd.f32 %v624, %v663
        %v665 = vpop.f32.mrf.mxu0
        %v666 = vpop.f32.mrf.mxu0
        %v667 = vpop.f32.mrf.mxu0
        %668 = vdwg.mxu0
        %v669 = vmax.f32 %v664, 0.0
        %v670 = vpack.c.bf16 %v669, %v669
        %v671 = vld [vmem:[%s3] sm:$0xf]
        %v672 = vld [vmem:[%s3 + $0x4] sm:$0xf]
        %v673 = vld [vmem:[%s3 + $0x8] sm:$0xf]
        %v674 = vld [vmem:[%s3 + $0xc] sm:$0xf]
        %v675 = vld [vmem:[%s3 + $0x10] sm:$0xf]
        %v676 = vld [vmem:[%s3 + $0x14] sm:$0xf]
        %v677 = vld [vmem:[%s3 + $0x18] sm:$0xf]
        %v678 = vld [vmem:[%s3 + $0x1c] sm:$0xf]
        %v679 = vld [vmem:[%s3 + $0x20] sm:$0xf]
        %v680 = vld [vmem:[%s3 + $0x24] sm:$0xf]
        %v681 = vld [vmem:[%s3 + $0x28] sm:$0xf]
        %v682 = vld [vmem:[%s3 + $0x2c] sm:$0xf]
        %v683 = vld [vmem:[%s3 + $0x30] sm:$0xf]
        %v684 = vld [vmem:[%s3 + $0x34] sm:$0xf]
        %v685 = vld [vmem:[%s3 + $0x38] sm:$0xf]
        %v686 = vld [vmem:[%s3 + $0x3c] sm:$0xf]
        %v687 = vld [vmem:[%s4] sm:$0x1]
        %v704 = vunpack.c.l.b16 %v671
        %v705 = vunpack.c.l.b16 %v672
        %v706 = vunpack.c.l.b16 %v673
        %v707 = vunpack.c.l.b16 %v674
        %v708 = vunpack.c.l.b16 %v675
        %v709 = vunpack.c.l.b16 %v676
        %v710 = vunpack.c.l.b16 %v677
        %v711 = vunpack.c.l.b16 %v678
        %v712 = vunpack.c.l.b16 %v679
        %v713 = vunpack.c.l.b16 %v680
        %v714 = vunpack.c.l.b16 %v681
        %v715 = vunpack.c.l.b16 %v682
        %v716 = vunpack.c.l.b16 %v683
        %v717 = vunpack.c.l.b16 %v684
        %v718 = vunpack.c.l.b16 %v685
        %v719 = vunpack.c.l.b16 %v686
        %v720 = vpack.c.b16 %v705, %v704
        %v721 = vpack.c.b16 %v707, %v706
        %v722 = vpack.c.b16 %v709, %v708
        %v723 = vpack.c.b16 %v711, %v710
        %v724 = vpack.c.b16 %v713, %v712
        %v725 = vpack.c.b16 %v715, %v714
        %v726 = vpack.c.b16 %v717, %v716
        %v727 = vpack.c.b16 %v719, %v718
        %736 = vmatprep.subr.bf16.mxu0 0
        %737 = vmatpush1.bf16.msra.mxu0 %v727
        %738 = vmatprep.subr.bf16.mxu0 0
        %739 = vmatpush1.bf16.msra.mxu0 %v726
        %740 = vmatprep.subr.bf16.mxu0 0
        %741 = vmatpush1.bf16.msra.mxu0 %v725
        %742 = vmatprep.subr.bf16.mxu0 0
        %743 = vmatpush1.bf16.msra.mxu0 %v724
        %744 = vmatprep.subr.bf16.mxu0 0
        %745 = vmatpush1.bf16.msra.mxu0 %v723
        %746 = vmatprep.subr.bf16.mxu0 0
        %747 = vmatpush1.bf16.msra.mxu0 %v722
        %748 = vmatprep.subr.bf16.mxu0 0
        %749 = vmatpush1.bf16.msra.mxu0 %v721
        %750 = vmatprep.subr.bf16.mxu0 0
        %751 = vmatpush1.bf16.msra.mxu0 %v720
        %752 = vmatprep.subr.bf16.mxu0 0
        %753 = vmatpush2.bf16.msra.mxu0 0
        %754 = vmatprep.subr.bf16.mxu0 0
        %755 = vmatpush2.bf16.msra.mxu0 0
        %756 = vmatprep.subr.bf16.mxu0 0
        %757 = vmatpush2.bf16.msra.mxu0 0
        %758 = vmatprep.subr.bf16.mxu0 0
        %759 = vmatpush2.bf16.msra.mxu0 0
        %760 = vmatprep.subr.bf16.mxu0 0
        %761 = vmatpush2.bf16.msra.mxu0 0
        %762 = vmatprep.subr.bf16.mxu0 0
        %763 = vmatpush2.bf16.msra.mxu0 0
        %764 = vmatprep.subr.bf16.mxu0 0
        %765 = vmatpush2.bf16.msra.mxu0 0
        %766 = vmatprep.subr.bf16.mxu0 0
        %767 = vmatpush2.bf16.msra.mxu0 0
        %768 = vmatprep.mubr.bf16.mxu0 0
        %769 = vmatmul.mubr.bf16.gmra.mxu0 %v670
        %v770 = vpop.f32.mrf.mxu0
        %v771 = vadd.f32 %v687, %v770
        %v772 = vpop.f32.mrf.mxu0
        %v773 = vpop.f32.mrf.mxu0
        %v774 = vpop.f32.mrf.mxu0
        %775 = vdwg.mxu0
        %v776 = vmax.f32 %v771, 0.0
        %v777 = vpack.c.bf16 %v776, %v776
        %v778 = vld [vmem:[%s5] sm:$0xff]
        %v779 = vld [vmem:[%s5 + $0x8] sm:$0xff]
        %v780 = vld [vmem:[%s5 + $0x10] sm:$0xff]
        %v781 = vld [vmem:[%s5 + $0x18] sm:$0xff]
        %v782 = vld [vmem:[%s5 + $0x20] sm:$0xff]
        %v783 = vld [vmem:[%s5 + $0x28] sm:$0xff]
        %v784 = vld [vmem:[%s5 + $0x30] sm:$0xff]
        %v785 = vld [vmem:[%s5 + $0x38] sm:$0xff]
        %v786 = vld [vmem:[%s5 + $0x40] sm:$0xff]
        %v787 = vld [vmem:[%s5 + $0x48] sm:$0xff]
        %v788 = vld [vmem:[%s5 + $0x50] sm:$0xff]
        %v789 = vld [vmem:[%s5 + $0x58] sm:$0xff]
        %v790 = vld [vmem:[%s5 + $0x60] sm:$0xff]
        %v791 = vld [vmem:[%s5 + $0x68] sm:$0xff]
        %v792 = vld [vmem:[%s5 + $0x70] sm:$0xff]
        %v793 = vld [vmem:[%s5 + $0x78] sm:$0xff]
        %v794 = vld [vmem:[%s6] sm:$0x3]
        %v811 = vunpack.c.l.b16 %v778
        %v812 = vunpack.c.h.b16 %v778
        %v813 = vunpack.c.l.b16 %v779
        %v814 = vunpack.c.h.b16 %v779
        %v815 = vunpack.c.l.b16 %v780
        %v816 = vunpack.c.h.b16 %v780
        %v817 = vunpack.c.l.b16 %v781
        %v818 = vunpack.c.h.b16 %v781
        %v819 = vunpack.c.l.b16 %v782
        %v820 = vunpack.c.h.b16 %v782
        %v821 = vunpack.c.l.b16 %v783
        %v822 = vunpack.c.h.b16 %v783
        %v823 = vunpack.c.l.b16 %v784
        %v824 = vunpack.c.h.b16 %v784
        %v825 = vunpack.c.l.b16 %v785
        %v826 = vunpack.c.h.b16 %v785
        %v827 = vunpack.c.l.b16 %v786
        %v828 = vunpack.c.h.b16 %v786
        %v829 = vunpack.c.l.b16 %v787
        %v830 = vunpack.c.h.b16 %v787
        %v831 = vunpack.c.l.b16 %v788
        %v832 = vunpack.c.h.b16 %v788
        %v833 = vunpack.c.l.b16 %v789
        %v834 = vunpack.c.h.b16 %v789
        %v835 = vunpack.c.l.b16 %v790
        %v836 = vunpack.c.h.b16 %v790
        %v837 = vunpack.c.l.b16 %v791
        %v838 = vunpack.c.h.b16 %v791
        %v839 = vunpack.c.l.b16 %v792
        %v840 = vunpack.c.h.b16 %v792
        %v841 = vunpack.c.l.b16 %v793
        %v842 = vunpack.c.h.b16 %v793
        %v843 = vpack.c.b16 %v813, %v811
        %v844 = vpack.c.b16 %v814, %v812
        %v845 = vpack.c.b16 %v817, %v815
        %v846 = vpack.c.b16 %v818, %v816
        %v847 = vpack.c.b16 %v821, %v819
        %v848 = vpack.c.b16 %v822, %v820
        %v849 = vpack.c.b16 %v825, %v823
        %v850 = vpack.c.b16 %v826, %v824
        %v851 = vpack.c.b16 %v829, %v827
        %v852 = vpack.c.b16 %v830, %v828
        %v853 = vpack.c.b16 %v833, %v831
        %v854 = vpack.c.b16 %v834, %v832
        %v855 = vpack.c.b16 %v837, %v835
        %v856 = vpack.c.b16 %v838, %v836
        %v857 = vpack.c.b16 %v841, %v839
        %v858 = vpack.c.b16 %v842, %v840
        %v876 = vlaneseq
        %v877 = vshrl.u32 %v876, 7
        %v878 = vsub.s32 0, %v877
        %v879 = vrot.slane %v794, %v878
        %v880 = vlaneseq
        %v881 = vshrl.u32 %v880, 7
        %v882 = vsub.s32 1, %v881
        %v883 = vrot.slane %v794, %v882
        %886 = vmatprep.subr.bf16.mxu0 %v858
        %887 = vmatpush1.bf16.msra.mxu0 %v857
        %888 = vmatprep.subr.bf16.mxu0 %v856
        %889 = vmatpush1.bf16.msra.mxu0 %v855
        %890 = vmatprep.subr.bf16.mxu0 %v854
        %891 = vmatpush1.bf16.msra.mxu0 %v853
        %892 = vmatprep.subr.bf16.mxu0 %v852
        %893 = vmatpush1.bf16.msra.mxu0 %v851
        %894 = vmatprep.subr.bf16.mxu0 %v850
        %895 = vmatpush1.bf16.msra.mxu0 %v849
        %896 = vmatprep.subr.bf16.mxu0 %v848
        %897 = vmatpush1.bf16.msra.mxu0 %v847
        %898 = vmatprep.subr.bf16.mxu0 %v846
        %899 = vmatpush1.bf16.msra.mxu0 %v845
        %900 = vmatprep.subr.bf16.mxu0 %v844
        %901 = vmatpush1.bf16.msra.mxu0 %v843
        %902 = vmatprep.subr.bf16.mxu0 0
        %903 = vmatpush2.bf16.msra.mxu0 0
        %904 = vmatprep.subr.bf16.mxu0 0
        %905 = vmatpush2.bf16.msra.mxu0 0
        %906 = vmatprep.subr.bf16.mxu0 0
        %907 = vmatpush2.bf16.msra.mxu0 0
        %908 = vmatprep.subr.bf16.mxu0 0
        %909 = vmatpush2.bf16.msra.mxu0 0
        %910 = vmatprep.subr.bf16.mxu0 0
        %911 = vmatpush2.bf16.msra.mxu0 0
        %912 = vmatprep.subr.bf16.mxu0 0
        %913 = vmatpush2.bf16.msra.mxu0 0
        %914 = vmatprep.subr.bf16.mxu0 0
        %915 = vmatpush2.bf16.msra.mxu0 0
        %916 = vmatprep.subr.bf16.mxu0 0
        %917 = vmatpush2.bf16.msra.mxu0 0
        %918 = vmatprep.mubr.bf16.mxu0 0
        %919 = vmatmul.mubr.bf16.gmra.mxu0 %v777
        %v920 = vpop.f32.mrf.mxu0
        %v921 = vadd.f32 %v879, %v920
        %v922 = vpop.f32.mrf.mxu0
        %v923 = vadd.f32 %v883, %v922
        %v924 = vpop.f32.mrf.mxu0
        %v925 = vpop.f32.mrf.mxu0
        %926 = vdwg.mxu0
        %v927 = vld [vmem:[%s7] sm:$0xff]
        %v928 = vld [vmem:[%s7 + $0x8] sm:$0xff]
        %v929 = vld [vmem:[%s7 + $0x10] sm:$0xff]
        %v930 = vld [vmem:[%s7 + $0x18] sm:$0xff]
        %v931 = vld [vmem:[%s7 + $0x20] sm:$0xff]
        %v932 = vld [vmem:[%s7 + $0x28] sm:$0xff]
        %v933 = vld [vmem:[%s7 + $0x30] sm:$0xff]
        %v934 = vld [vmem:[%s7 + $0x38] sm:$0xff]
        %v935 = vld [vmem:[%s7 + $0x40] sm:$0xff]
        %v936 = vld [vmem:[%s7 + $0x48] sm:$0xff]
        %v937 = vld [vmem:[%s7 + $0x50] sm:$0xff]
        %v938 = vld [vmem:[%s7 + $0x58] sm:$0xff]
        %v939 = vld [vmem:[%s7 + $0x60] sm:$0xff]
        %v940 = vld [vmem:[%s7 + $0x68] sm:$0xff]
        %v941 = vld [vmem:[%s7 + $0x70] sm:$0xff]
        %v942 = vld [vmem:[%s7 + $0x78] sm:$0xff]
        %943 = vmatprep.subr.mxu0 0.0
        %944 = vmatpush1.msra.mxu0 %v942
        %945 = vmatprep.subr.mxu0 0.0
        %946 = vmatpush1.msra.mxu0 %v941
        %947 = vmatprep.subr.mxu0 0.0
        %948 = vmatpush1.msra.mxu0 %v940
        %949 = vmatprep.subr.mxu0 0.0
        %950 = vmatpush1.msra.mxu0 %v939
        %951 = vmatprep.subr.mxu0 0.0
        %952 = vmatpush1.msra.mxu0 %v938
        %953 = vmatprep.subr.mxu0 0.0
        %954 = vmatpush1.msra.mxu0 %v937
        %955 = vmatprep.subr.mxu0 0.0
        %956 = vmatpush1.msra.mxu0 %v936
        %957 = vmatprep.subr.mxu0 0.0
        %958 = vmatpush1.msra.mxu0 %v935
        %959 = vmatprep.subr.mxu0 0.0
        %960 = vmatpush1.msra.mxu0 %v934
        %961 = vmatprep.subr.mxu0 0.0
        %962 = vmatpush1.msra.mxu0 %v933
        %963 = vmatprep.subr.mxu0 0.0
        %964 = vmatpush1.msra.mxu0 %v932
        %965 = vmatprep.subr.mxu0 0.0
        %966 = vmatpush1.msra.mxu0 %v931
        %967 = vmatprep.subr.mxu0 0.0
        %968 = vmatpush1.msra.mxu0 %v930
        %969 = vmatprep.subr.mxu0 0.0
        %970 = vmatpush1.msra.mxu0 %v929
        %971 = vmatprep.subr.mxu0 0.0
        %972 = vmatpush1.msra.mxu0 %v928
        %973 = vmatprep.subr.mxu0 0.0
        %974 = vmatpush1.msra.mxu0 %v927
        %975 = vmatprep.subr.mxu0 0.0
        %976 = vmatpush2.msra.mxu0 0.0
        %977 = vmatprep.subr.mxu0 0.0
        %978 = vmatpush2.msra.mxu0 0.0
        %979 = vmatprep.subr.mxu0 0.0
        %980 = vmatpush2.msra.mxu0 0.0
        %981 = vmatprep.subr.mxu0 0.0
        %982 = vmatpush2.msra.mxu0 0.0
        %983 = vmatprep.subr.mxu0 0.0
        %984 = vmatpush2.msra.mxu0 0.0
        %985 = vmatprep.subr.mxu0 0.0
        %986 = vmatpush2.msra.mxu0 0.0
        %987 = vmatprep.subr.mxu0 0.0
        %988 = vmatpush2.msra.mxu0 0.0
        %989 = vmatprep.subr.mxu0 0.0
        %990 = vmatpush2.msra.mxu0 0.0
        %991 = vmatprep.subr.mxu0 0.0
        %992 = vmatpush2.msra.mxu0 0.0
        %993 = vmatprep.subr.mxu0 0.0
        %994 = vmatpush2.msra.mxu0 0.0
        %995 = vmatprep.subr.mxu0 0.0
        %996 = vmatpush2.msra.mxu0 0.0
        %997 = vmatprep.subr.mxu0 0.0
        %998 = vmatpush2.msra.mxu0 0.0
        %999 = vmatprep.subr.mxu0 0.0
        %1000 = vmatpush2.msra.mxu0 0.0
        %1001 = vmatprep.subr.mxu0 0.0
        %1002 = vmatpush2.msra.mxu0 0.0
        %1003 = vmatprep.subr.mxu0 0.0
        %1004 = vmatpush2.msra.mxu0 0.0
        %1005 = vmatprep.subr.mxu0 0.0
        %1006 = vmatpush2.msra.mxu0 0.0
        %1007 = vmatprep.mubr.f32.mxu0 0.0
        %1008 = vmatmul.mubr.f32.gmra.mxu0 %v776
        %v1009 = vpop.f32.mrf.mxu0
        %v1010 = vadd.f32 0.0, %v1009
        %v1011 = vpop.f32.mrf.mxu0
        %1012 = vdwg.mxu0
        %1014 = vrot.lane.b32.xlu0 %v1010, 127
        %v1015 = vpop.permute.xlu0 %1014
        %v1017 = vmax.f32 %v1010, %v1015
        %v1018 = vsub.f32 %v1010, %v1017
        %v1019 = vmul.f32 %v1018, 1.442695
        %v1020 = vpow.pop %v1019
        %1022 = vrot.lane.b32.xlu0 %v1017, 1
        %v1023 = vpop.permute.xlu0 %1022
        %v1025 = vsub.f32 %v1010, %v1023
        %v1026 = vmul.f32 %v1025, 1.442695
        %v1027 = vpow.pop %v1026
        %vm1028 = vcmp.ge.f32.partialorder %v1010, %v1015
        %1030 = vrot.lane.b32.xlu0 %v1027, 127
        %v1031 = vpop.permute.xlu0 %1030
        %v1033 = vsel %vm1028, %v1020, %v1031
        %v1034 = vadd.f32 %v1020, %v1031
        %v1035 = vrcp.pop %v1034
        %v1036 = vmul.f32 %v1033, %v1035
        %v1037 = vsel %vm1028, 1, 0
        %1038 = vset.pattern.permute.xlu0 0
        %1039 = vperm.xlu0 %1038, %v1037
        %v1040 = vpop.permute.xlu0 %1039
        %vm1041 = vcmp.eq.s32.totalorder %v1040, 1
        %v1042 = vsel %vm1041, %v921, %v923
        %1044 = vset.pattern.permute.xlu0 0
        %1045 = vperm.xlu0 %1044, %v1036
        %v1046 = vpop.permute.xlu0 %1045
        %v1048 = vmul.f32 %v1046, %v1042
        %v1049 = vpack.c.bf16 %v1048, %v1048
        %v1050 = vld [vmem:[%s8] sm:$0xf]
        %v1051 = vld [vmem:[%s8 + $0x4] sm:$0xf]
        %v1052 = vld [vmem:[%s8 + $0x8] sm:$0xf]
        %v1053 = vld [vmem:[%s8 + $0xc] sm:$0xf]
        %v1054 = vld [vmem:[%s8 + $0x10] sm:$0xf]
        %v1055 = vld [vmem:[%s8 + $0x14] sm:$0xf]
        %v1056 = vld [vmem:[%s8 + $0x18] sm:$0xf]
        %v1057 = vld [vmem:[%s8 + $0x1c] sm:$0xf]
        %v1058 = vld [vmem:[%s8 + $0x20] sm:$0xf]
        %v1059 = vld [vmem:[%s8 + $0x24] sm:$0xf]
        %v1060 = vld [vmem:[%s8 + $0x28] sm:$0xf]
        %v1061 = vld [vmem:[%s8 + $0x2c] sm:$0xf]
        %v1062 = vld [vmem:[%s8 + $0x30] sm:$0xf]
        %v1063 = vld [vmem:[%s8 + $0x34] sm:$0xf]
        %v1064 = vld [vmem:[%s8 + $0x38] sm:$0xf]
        %v1065 = vld [vmem:[%s8 + $0x3c] sm:$0xf]
        %v1066 = vld [vmem:[%s9] sm:$0x1]
        %v1083 = vunpack.c.l.b16 %v1050
        %v1084 = vunpack.c.l.b16 %v1051
        %v1085 = vunpack.c.l.b16 %v1052
        %v1086 = vunpack.c.l.b16 %v1053
        %v1087 = vunpack.c.l.b16 %v1054
        %v1088 = vunpack.c.l.b16 %v1055
        %v1089 = vunpack.c.l.b16 %v1056
        %v1090 = vunpack.c.l.b16 %v1057
        %v1091 = vunpack.c.l.b16 %v1058
        %v1092 = vunpack.c.l.b16 %v1059
        %v1093 = vunpack.c.l.b16 %v1060
        %v1094 = vunpack.c.l.b16 %v1061
        %v1095 = vunpack.c.l.b16 %v1062
        %v1096 = vunpack.c.l.b16 %v1063
        %v1097 = vunpack.c.l.b16 %v1064
        %v1098 = vunpack.c.l.b16 %v1065
        %v1099 = vpack.c.b16 %v1084, %v1083
        %v1100 = vpack.c.b16 %v1086, %v1085
        %v1101 = vpack.c.b16 %v1088, %v1087
        %v1102 = vpack.c.b16 %v1090, %v1089
        %v1103 = vpack.c.b16 %v1092, %v1091
        %v1104 = vpack.c.b16 %v1094, %v1093
        %v1105 = vpack.c.b16 %v1096, %v1095
        %v1106 = vpack.c.b16 %v1098, %v1097
        %1115 = vmatprep.subr.bf16.mxu0 0
        %1116 = vmatpush1.bf16.msra.mxu0 %v1106
        %1117 = vmatprep.subr.bf16.mxu0 0
        %1118 = vmatpush1.bf16.msra.mxu0 %v1105
        %1119 = vmatprep.subr.bf16.mxu0 0
        %1120 = vmatpush1.bf16.msra.mxu0 %v1104
        %1121 = vmatprep.subr.bf16.mxu0 0
        %1122 = vmatpush1.bf16.msra.mxu0 %v1103
        %1123 = vmatprep.subr.bf16.mxu0 0
        %1124 = vmatpush1.bf16.msra.mxu0 %v1102
        %1125 = vmatprep.subr.bf16.mxu0 0
        %1126 = vmatpush1.bf16.msra.mxu0 %v1101
        %1127 = vmatprep.subr.bf16.mxu0 0
        %1128 = vmatpush1.bf16.msra.mxu0 %v1100
        %1129 = vmatprep.subr.bf16.mxu0 0
        %1130 = vmatpush1.bf16.msra.mxu0 %v1099
        %1131 = vmatprep.subr.bf16.mxu0 0
        %1132 = vmatpush2.bf16.msra.mxu0 0
        %1133 = vmatprep.subr.bf16.mxu0 0
        %1134 = vmatpush2.bf16.msra.mxu0 0
        %1135 = vmatprep.subr.bf16.mxu0 0
        %1136 = vmatpush2.bf16.msra.mxu0 0
        %1137 = vmatprep.subr.bf16.mxu0 0
        %1138 = vmatpush2.bf16.msra.mxu0 0
        %1139 = vmatprep.subr.bf16.mxu0 0
        %1140 = vmatpush2.bf16.msra.mxu0 0
        %1141 = vmatprep.subr.bf16.mxu0 0
        %1142 = vmatpush2.bf16.msra.mxu0 0
        %1143 = vmatprep.subr.bf16.mxu0 0
        %1144 = vmatpush2.bf16.msra.mxu0 0
        %1145 = vmatprep.subr.bf16.mxu0 0
        %1146 = vmatpush2.bf16.msra.mxu0 0
        %1147 = vmatprep.mubr.bf16.mxu0 0
        %1148 = vmatmul.mubr.bf16.gmra.mxu0 %v1049
        %v1149 = vpop.f32.mrf.mxu0
        %v1150 = vadd.f32 %v1066, %v1149
        %v1151 = vpop.f32.mrf.mxu0
        %v1152 = vpop.f32.mrf.mxu0
        %v1153 = vpop.f32.mrf.mxu0
        %1154 = vdwg.mxu0
        %1155 = vst [vmem:[%s349] sm:$0x1] %v1150
        %s1156 = sand.u32 %s247, 1
        %s1157 = scalar_lea.sflag [#allocation3], %s1156
        %s1158 = sand.u32 %s247, 1
        %s1159 = scalar_lea.vmem [#allocation2], %s1158
        // Predicated region
        $region61: #{net_forward.5} parent=59 // pred_check
          %p1160 = pneg %p257
        $region62: #{net_forward.5} parent=59 // pred_check_branch
          %1162 = sbr.rel (%p1160) target = $region64
        $region63: #{net_forward.5} parent=59 // pred_region
          %s1164 = ssub.s32 16, 16
          %1165 = vsyncadd %s1157, %s1164
          %s1166 = smul.addr %s24, 16
          %s1167 = scalar_lea.hbm %s10, %s1166
          %s1169 = sshll.u32 %s1159, 4
          %s1170 = int_to_ptr.vmem [resolvable:$true] %s1169
          %1172 = dma.vmem_to_hbm [thread:$0]  %s1170, 16, %s1167, %s1157
        $region64: #{net_forward.5} parent=59 // pred_fallthru
          _
      $region60: #{net_forward.5} parent=5 // pred_fallthru
        _
      %p1173 = scmp.le.s32.totalorder 2, %s19
      // Predicated region
      $region65: #{net_forward.5} parent=5 // pred_check
        %p1174 = pneg %p1173
      $region66: #{net_forward.5} parent=5 // pred_check_branch
        %1176 = sbr.rel (%p1174) target = $region68
      $region67: #{net_forward.5} parent=5 // pred_region
        %s1177 = ssub.s32 %s19, 2
        // Predicated region
        $region69: #{net_forward.5} parent=67 // pred_check
          %p1178 = pneg %p263
        $region70: #{net_forward.5} parent=67 // pred_check_branch
          %1180 = sbr.rel (%p1178) target = $region72
        $region71: #{net_forward.5} parent=67 // pred_region
          %s1181 = sand.u32 %s248, 1
          %s1182 = scalar_lea.sflag [#allocation3], %s1181
          %s1183 = sand.u32 %s248, 1
          %s1184 = scalar_lea.vmem [#allocation2], %s1183
          %1185 = dma.done %s1182, 16
        $region72: #{net_forward.5} parent=67 // pred_fallthru
          _
      $region68: #{net_forward.5} parent=5 // pred_fallthru
        _
    $region6: #{net_forward.5} parent=1 // loop_footer
      %s23 = sadd.s32 1, %s19
    $region7: #{net_forward.5} parent=1 // loop_footer_branch
      %18 = sbr.rel target = $region3
    $region8: #{net_forward.5} parent=1 // loop_exit
      _
    %1186 = vsyncpa [#allocation3], 1
    %s1187 = scalar_lea.sflag [#allocation3], 1
    %1188 = vsyncpa %s1187, 1

</llo_original>
